<compile_context>
chip_gen: v5e
topology: v5e:2x2
jax: 0.10.0
libtpu: 0.0.40
codegen_flags: <defaults>
</compile_context>

<pallas_src>
import functools

import jax
import jax.numpy as jnp
import numpy as np
from jax.experimental import pallas as pl
from jax.experimental.pallas import tpu as pltpu


# ------------------------------ fused kernel ------------------------------ #

def _fused_basic_block_kernel(*refs, stride, Ho, Wc, H0, use_sc_dot):
    """conv1(3x3,s)+bn1+relu -> conv2(3x3,1)+bn2 -> (+shortcut) -> relu.

    Per-image flattened "grid of width Wc" slabs (Wc = Wo + 2):
      x_ref    (1, s*s, L1, Cin)   conv1 input phase slab (bf16)
      w1_ref   (9, Cin, Coutp)     conv1 weights, bn1 scale folded in (bf16)
      b1_ref   (1, Coutp)          bn1 bias (f32)
      w2_ref   (9, Coutp, Coutp)   conv2 weights, bn2 scale folded in (bf16)
      b2_ref   (1, Coutp)          bn2 bias (f32)
      mask_ref (m, 1)              1.0 on valid output columns, 0.0 on the
                                   wrap-around junk columns (f32)
      [wsc_ref (Cin, Coutp)]       1x1 projection weights (bn folded) OR the
                                   channel-padding selector for the identity
                                   path when planes < Coutp
      [bsc_ref (1, Coutp)]         shortcut bn bias (zeros for the selector)
      o_ref    (1, m, Coutp)       fused block output (bf16)
      h_ref    (L2, Coutp)         VMEM scratch: conv2 input slab (bf16)
      acc_ref  (m, Coutp)          VMEM scratch: f32 matmul accumulator
    """
    if use_sc_dot:
        (x_ref, w1_ref, b1_ref, w2_ref, b2_ref, mask_ref,
         wsc_ref, bsc_ref, o_ref, h_ref, acc_ref) = refs
    else:
        (x_ref, w1_ref, b1_ref, w2_ref, b2_ref, mask_ref,
         o_ref, h_ref, acc_ref) = refs
        wsc_ref = bsc_ref = None

    s = stride
    m = Ho * Wc

    # Zero the conv2-slab halo (everything outside the stored conv1 rows).
    h_ref[...] = jnp.zeros_like(h_ref)

    # ---- conv1: 9 shifted MXU matmuls into the f32 VMEM accumulator -------
    acc_ref[...] = jnp.zeros_like(acc_ref)
    for dy in range(3):
        for dx in range(3):
            ph = (dy % s) * s + (dx % s)
            off = (dy // s) * Wc + (dx // s)
            acc_ref[...] += jnp.dot(x_ref[0, ph, off:off + m, :],
                                    w1_ref[dy * 3 + dx],
                                    preferred_element_type=jnp.float32)

    # bn1 bias + relu; zero the wrap-around junk columns so they act as the
    # zero halo of the conv2 slab; store at the 16-aligned slab offset H0.
    h1 = jnp.maximum(acc_ref[...] + b1_ref[...], 0.0) * mask_ref[...]
    h_ref[H0:H0 + m, :] = h1.astype(h_ref.dtype)

    # ---- conv2: 9 shifted MXU matmuls over the VMEM-resident slab ----------
    acc_ref[...] = jnp.zeros_like(acc_ref)
    for dy in range(3):
        for dx in range(3):
            off = H0 + (dy - 1) * Wc + (dx - 1)
            acc_ref[...] += jnp.dot(h_ref[off:off + m, :],
                                    w2_ref[dy * 3 + dx],
                                    preferred_element_type=jnp.float32)

    # ---- shortcut + bn2 bias + relu ----------------------------------------
    if use_sc_dot:
        # Projection shortcut (1x1 conv stride s, bn folded) OR the channel
        # padding selector for the identity path when planes < Coutp.  Its
        # input is read straight from the conv1 input slab (no extra HBM).
        sc_ph = 0 if s == 1 else s * s - 1
        sc_off = Wc + 1 if s == 1 else 0
        acc_ref[...] += jnp.dot(x_ref[0, sc_ph, sc_off:sc_off + m, :],
                                wsc_ref[...],
                                preferred_element_type=jnp.float32)
        out = acc_ref[...] + b2_ref[...] + bsc_ref[...]
    else:
        # Identity shortcut with planes == Coutp: plain element-wise VPU add,
        # residual taken from the conv1 input slab already in VMEM.
        res = x_ref[0, 0, Wc + 1:Wc + 1 + m, :].astype(jnp.float32)
        out = acc_ref[...] + b2_ref[...] + res

    o_ref[0] = jnp.maximum(out, 0.0).astype(o_ref.dtype)


# ------------------------------ host-side prep ----------------------------- #

def _round_up(v, mult):
    return (v + mult - 1) // mult * mult


def _conv_out(n, stride):
    return (n + 2 - 3) // stride + 1


def _resident_spec(shape):
    nd = len(shape)
    return pl.BlockSpec(tuple(shape), lambda n, _nd=nd: (0,) * _nd)


def _batched_spec(shape):
    nd = len(shape)
    return pl.BlockSpec((1,) + tuple(shape[1:]),
                        lambda n, _nd=nd: (n,) + (0,) * (_nd - 1))


def _nbytes(a):
    return int(np.prod(a.shape)) * np.dtype(a.dtype).itemsize


def _build_input_slab(x_nhwc, stride, Ho, Wo):
    """NHWC -> (N, s*s, (Hph+1)*Wc, C) flattened phase slab, Wc = Wo + 2.

    Each 3x3 tap of the stride-s conv becomes a contiguous (row-offset) slice
    of one phase.  The slab row width Wc equals conv2's padded row width so
    the whole fused kernel uses a single row-indexing scheme.  One extra zero
    row per phase keeps every tap slice in bounds.
    """
    N, H, W, C = x_nhwc.shape
    s = stride
    halo = 2 // s                      # max tap offset (dy//s, dx//s) per axis
    Hph = Ho + halo
    Wc = Wo + 2
    Hp, Wp = s * Hph, s * Wc
    xp = jnp.pad(x_nhwc, ((0, 0), (1, Hp - H - 1), (1, Wp - W - 1), (0, 0)))
    phases = [xp[:, py::s, px::s, :] for py in range(s) for px in range(s)]
    ph = jnp.stack(phases, axis=1)                               # (N,s*s,Hph,Wc,C)
    ph = jnp.pad(ph, ((0, 0), (0, 0), (0, 1), (0, 0), (0, 0)))   # slack row
    return ph.reshape(N, s * s, (Hph + 1) * Wc, C), Wc


def _fold_bn(gamma, beta, mean, var, eps=1e-5):
    scale = gamma * jax.lax.rsqrt(var + eps)
    return scale, beta - mean * scale


def _prep_conv3x3(w_oihw, scale, cin_pad, cout_pad, dtype):
    """(Cout,Cin,3,3) -> (9, cin_pad, cout_pad), BN scale folded per out chan."""
    cout, cin = w_oihw.shape[:2]
    w = w_oihw * scale[:, None, None, None]
    w = jnp.transpose(w, (2, 3, 1, 0)).reshape(9, cin, cout)
    return jnp.pad(w, ((0, 0), (0, cin_pad - cin),
                       (0, cout_pad - cout))).astype(dtype)


def _pad_bias(bias, cout_pad):
    return jnp.pad(bias, (0, cout_pad - bias.shape[0])).reshape(1, -1).astype(
        jnp.float32)


def basic_block_forward(x_nchw, params, stride, compute_dtype=jnp.bfloat16):
    assert stride in (1, 2)
    x = jnp.transpose(x_nchw, (0, 2, 3, 1)).astype(compute_dtype)    # NHWC bf16
    N, H, W, cin = x.shape
    planes = params['conv1_w'].shape[0]
    coutp = _round_up(planes, 128)               # lane-dense output channels
    Ho, Wo = _conv_out(H, stride), _conv_out(W, stride)
    has_proj = (stride != 1) or (cin != planes)
    use_sc_dot = has_proj or (planes != coutp)

    # TODO(synk): build the stride-2 phase slab in-kernel (strided DMA reads)
    # to save the host-side pad/slice/stack passes on downsampling blocks.
    xslab, Wc = _build_input_slab(x, stride, Ho, Wo)
    m = Ho * Wc
    H0 = _round_up(Wc + 1, 16)                   # aligned conv1->slab offset
    L2 = _round_up(H0 + m + Wc + 1, 8)           # conv2 slab rows (incl halo)

    s1, b1 = _fold_bn(**params['bn1'])
    s2, b2 = _fold_bn(**params['bn2'])
    w1 = _prep_conv3x3(params['conv1_w'], s1, cin, coutp, compute_dtype)
    w2 = _prep_conv3x3(params['conv2_w'], s2, coutp, coutp, compute_dtype)
    b1p, b2p = _pad_bias(b1, coutp), _pad_bias(b2, coutp)

    # Valid-column mask: zero the wrap-around junk columns of the flattened
    # conv1 output so they double as the conv2 slab's zero halo.
    mask = jnp.asarray((np.arange(m) % Wc < Wo).astype(np.float32)).reshape(m, 1)

    operands = [xslab, w1, b1p, w2, b2p, mask]
    in_specs = [_batched_spec(xslab.shape), _resident_spec(w1.shape),
                _resident_spec(b1p.shape), _resident_spec(w2.shape),
                _resident_spec(b2p.shape), _resident_spec(mask.shape)]

    if use_sc_dot:
        if has_proj:
            ssc, bsc = _fold_bn(**params['bn_sc'])
            wsc = params['sc_w'][:, :, 0, 0] * ssc[:, None]       # (planes,cin)
            wsc = jnp.transpose(wsc, (1, 0))                      # (cin,planes)
            bscp = _pad_bias(bsc, coutp)
        else:
            # Identity path with planes < coutp: cheap channel-padding
            # selector on the MXU (avoids unaligned lane concat in-kernel).
            wsc = jnp.eye(cin, planes, dtype=jnp.float32)
            bscp = jnp.zeros((1, coutp), jnp.float32)
        wsc = jnp.pad(wsc, ((0, 0), (0, coutp - planes))).astype(compute_dtype)
        operands += [wsc, bscp]
        in_specs += [_resident_spec(wsc.shape), _resident_spec(bscp.shape)]

    kern = functools.partial(_fused_basic_block_kernel, stride=stride, Ho=Ho,
                             Wc=Wc, H0=H0, use_sc_dot=use_sc_dot)

    flops = 2 * N * m * coutp * (9 * cin + 9 * coutp
                                 + (cin if use_sc_dot else 0))
    bytes_accessed = (sum(_nbytes(a) for a in operands)
                      + N * m * coutp * np.dtype(compute_dtype).itemsize)
    cost = pl.CostEstimate(flops=flops, transcendentals=0,
                           bytes_accessed=bytes_accessed)

    out = pl.pallas_call(
        kern,
        out_shape=jax.ShapeDtypeStruct((N, m, coutp), compute_dtype),
        grid=(N,),
        in_specs=in_specs,
        out_specs=_batched_spec((N, m, coutp)),
        scratch_shapes=[pltpu.VMEM((L2, coutp), compute_dtype),
                        pltpu.VMEM((m, coutp), jnp.float32)],
        compiler_params=pltpu.CompilerParams(
            dimension_semantics=("parallel",)),
        cost_estimate=cost,
    )(*operands)

    out = out.reshape(N, Ho, Wc, coutp)[:, :, :Wo, :planes]
    return jnp.transpose(out, (0, 3, 1, 2)).astype(jnp.float32)       # NCHW


# ---------------------------- params / reference --------------------------- #

def init_basic_block_params(key, in_planes, planes, stride):
    ks = jax.random.split(key, 16)

    def bn(k0, k1, k2, k3, c):
        return dict(gamma=1.0 + 0.1 * jax.random.normal(k0, (c,), jnp.float32),
                    beta=0.1 * jax.random.normal(k1, (c,), jnp.float32),
                    mean=0.1 * jax.random.normal(k2, (c,), jnp.float32),
                    var=0.5 + jnp.abs(jax.random.normal(k3, (c,), jnp.float32)))

    params = {
        'conv1_w': 0.1 * jax.random.normal(ks[0], (planes, in_planes, 3, 3),
                                           jnp.float32),
        'conv2_w': 0.1 * jax.random.normal(ks[1], (planes, planes, 3, 3),
                                           jnp.float32),
        'bn1': bn(ks[2], ks[3], ks[4], ks[5], planes),
        'bn2': bn(ks[6], ks[7], ks[8], ks[9], planes),
    }
    if stride != 1 or in_planes != planes:
        params['sc_w'] = 0.1 * jax.random.normal(
            ks[10], (planes, in_planes, 1, 1), jnp.float32)
        params['bn_sc'] = bn(ks[11], ks[12], ks[13], ks[14], planes)
    return params


def _bn_ref(x, bn, eps=1e-5):
    return (x - bn['mean']) / jnp.sqrt(bn['var'] + eps) * bn['gamma'] + bn['beta']


def _ref_forward(x_nchw, params, stride):
    x = jnp.transpose(x_nchw, (0, 2, 3, 1)).astype(jnp.float32)
    cin = x.shape[-1]
    planes = params['conv1_w'].shape[0]

    def conv(inp, w, s, pad):
        return jax.lax.conv_general_dilated(
            inp, jnp.transpose(w, (2, 3, 1, 0)),
            window_strides=(s, s), padding=((pad, pad), (pad, pad)),
            dimension_numbers=('NHWC', 'HWIO', 'NHWC'))

    out = jax.nn.relu(_bn_ref(conv(x, params['conv1_w'], stride, 1),
                              params['bn1']))
    out = _bn_ref(conv(out, params['conv2_w'], 1, 1), params['bn2'])
    if stride != 1 or cin != planes:
        sc = _bn_ref(conv(x, params['sc_w'], stride, 0), params['bn_sc'])
    else:
        sc = x
    out = jax.nn.relu(out + sc)
    return jnp.transpose(out, (0, 3, 1, 2))


# ----------------------------------- main ---------------------------------- #

if __name__ == "__main__":
    key = jax.random.PRNGKey(0)
    configs = [
        # (N, in_planes, planes, H, W, stride)
        (2, 4, 8, 16, 16, 2),   # projection-shortcut path (downsampling block)
        (2, 8, 8, 16, 16, 1),   # identity-shortcut path
    ]
    for (N, in_planes, planes, H, W, stride) in configs:
        kx, kp, key = jax.random.split(key, 3)
        x = jax.random.normal(kx, (N, in_planes, H, W), jnp.float32)
        params = init_basic_block_params(kp, in_planes, planes, stride)

        fwd = jax.jit(functools.partial(basic_block_forward, stride=stride))
        out = jax.block_until_ready(fwd(x, params))
        ref = jax.block_until_ready(_ref_forward(x, params, stride))

        Ho, Wo = _conv_out(H, stride), _conv_out(W, stride)
        assert out.shape == (N, planes, Ho, Wo), out.shape
        # bf16 MXU inputs (two chained convs, folded BN, bf16 residual/output)
        # with f32 accumulation -> relaxed tolerance.
        np.testing.assert_allclose(np.asarray(out), np.asarray(ref),
                                   rtol=4e-2, atol=4e-2)
    print("KERNEL_OK")
</pallas_src>

<mosaic_0001>
module attributes {stable_mosaic.version = 11 : i64} {
  func.func @_fused_basic_block_kernel(%arg0: i32, %arg1: memref<1x4x100x4xbf16, #tpu.memory_space<vmem>>, %arg2: memref<9x4x128xbf16, #tpu.memory_space<vmem>>, %arg3: memref<1x128xf32, #tpu.memory_space<vmem>>, %arg4: memref<9x128x128xbf16, #tpu.memory_space<vmem>>, %arg5: memref<1x128xf32, #tpu.memory_space<vmem>>, %arg6: memref<80x1xf32, #tpu.memory_space<vmem>>, %arg7: memref<4x128xbf16, #tpu.memory_space<vmem>>, %arg8: memref<1x128xf32, #tpu.memory_space<vmem>>, %arg9: memref<1x80x128xbf16, #tpu.memory_space<vmem>>, %arg10: memref<112x128xbf16, #tpu.memory_space<vmem>>, %arg11: memref<80x128xf32, #tpu.memory_space<vmem>>) attributes {dimension_semantics = [#tpu.dimension_semantics<parallel>], iteration_bounds = array<i64: 2>, scalar_prefetch = 0 : i64, scratch_operands = 2 : i64, tpu.core_type = #tpu.core_type<tc>, window_params = [{transform_indices = @transform_0, window_bounds = array<i64: 1, 4, 100, 4>}, {pipeline_mode = #tpu.pipeline_mode<synchronous>, transform_indices = @transform_1, window_bounds = array<i64: 9, 4, 128>}, {pipeline_mode = #tpu.pipeline_mode<synchronous>, transform_indices = @transform_2, window_bounds = array<i64: 1, 128>}, {pipeline_mode = #tpu.pipeline_mode<synchronous>, transform_indices = @transform_3, window_bounds = array<i64: 9, 128, 128>}, {pipeline_mode = #tpu.pipeline_mode<synchronous>, transform_indices = @transform_4, window_bounds = array<i64: 1, 128>}, {pipeline_mode = #tpu.pipeline_mode<synchronous>, transform_indices = @transform_5, window_bounds = array<i64: 80, 1>}, {pipeline_mode = #tpu.pipeline_mode<synchronous>, transform_indices = @transform_6, window_bounds = array<i64: 4, 128>}, {pipeline_mode = #tpu.pipeline_mode<synchronous>, transform_indices = @transform_7, window_bounds = array<i64: 1, 128>}, {transform_indices = @transform_8, window_bounds = array<i64: 1, 80, 128>}]} {
    %cst = arith.constant 0.000000e+00 : bf16
    %0 = vector.broadcast %cst : bf16 to vector<112x128xbf16>
    %c0 = arith.constant 0 : index
    %c0_0 = arith.constant 0 : index
    %1 = vector.load %arg10[%c0, %c0_0] : memref<112x128xbf16, #tpu.memory_space<vmem>>, vector<112x128xbf16>
    tpu.vector_store %arg10[%c0, %c0_0], %0 {strides = array<i32>} : memref<112x128xbf16, #tpu.memory_space<vmem>>, vector<112x128xbf16>,
    %cst_1 = arith.constant 0.000000e+00 : f32
    %2 = vector.broadcast %cst_1 : f32 to vector<80x128xf32>
    %c0_2 = arith.constant 0 : index
    %c0_3 = arith.constant 0 : index
    %3 = vector.load %arg11[%c0_2, %c0_3] : memref<80x128xf32, #tpu.memory_space<vmem>>, vector<80x128xf32>
    tpu.vector_store %arg11[%c0_2, %c0_3], %2 {strides = array<i32>} : memref<80x128xf32, #tpu.memory_space<vmem>>, vector<80x128xf32>,
    %c0_4 = arith.constant 0 : index
    %c0_5 = arith.constant 0 : index
    %4 = vector.load %arg11[%c0_4, %c0_5] : memref<80x128xf32, #tpu.memory_space<vmem>>, vector<80x128xf32>
    %c0_6 = arith.constant 0 : index
    %c0_7 = arith.constant 0 : index
    %c0_8 = arith.constant 0 : index
    %c0_9 = arith.constant 0 : index
    %5 = vector.load %arg1[%c0_6, %c0_7, %c0_8, %c0_9] : memref<1x4x100x4xbf16, #tpu.memory_space<vmem>>, vector<1x1x80x4xbf16>
    %6 = vector.shape_cast %5 : vector<1x1x80x4xbf16> to vector<80x4xbf16>
    %c0_10 = arith.constant 0 : index
    %c0_11 = arith.constant 0 : index
    %c0_12 = arith.constant 0 : index
    %7 = vector.load %arg2[%c0_10, %c0_11, %c0_12] : memref<9x4x128xbf16, #tpu.memory_space<vmem>>, vector<1x4x128xbf16>
    %8 = vector.shape_cast %7 : vector<1x4x128xbf16> to vector<4x128xbf16>
    %cst_13 = arith.constant dense<0.000000e+00> : vector<80x128xf32>
    %9 = tpu.matmul %6, %8, %cst_13 {dimension_numbers = #tpu.dot_dimension_numbers<[1], [0], [0], [1], [0, 0, 1, 1], [], []>} : vector<80x4xbf16>, vector<4x128xbf16>, vector<80x128xf32> -> vector<80x128xf32>
    %10 = arith.addf %4, %9 : vector<80x128xf32>
    %c0_14 = arith.constant 0 : index
    %c0_15 = arith.constant 0 : index
    %11 = vector.load %arg11[%c0_14, %c0_15] : memref<80x128xf32, #tpu.memory_space<vmem>>, vector<80x128xf32>
    tpu.vector_store %arg11[%c0_14, %c0_15], %10 {strides = array<i32>} : memref<80x128xf32, #tpu.memory_space<vmem>>, vector<80x128xf32>,
    %c0_16 = arith.constant 0 : index
    %c0_17 = arith.constant 0 : index
    %12 = vector.load %arg11[%c0_16, %c0_17] : memref<80x128xf32, #tpu.memory_space<vmem>>, vector<80x128xf32>
    %c0_18 = arith.constant 0 : index
    %c1 = arith.constant 1 : index
    %c0_19 = arith.constant 0 : index
    %c0_20 = arith.constant 0 : index
    %13 = vector.load %arg1[%c0_18, %c1, %c0_19, %c0_20] : memref<1x4x100x4xbf16, #tpu.memory_space<vmem>>, vector<1x1x80x4xbf16>
    %14 = vector.shape_cast %13 : vector<1x1x80x4xbf16> to vector<80x4xbf16>
    %c1_21 = arith.constant 1 : index
    %c0_22 = arith.constant 0 : index
    %c0_23 = arith.constant 0 : index
    %15 = vector.load %arg2[%c1_21, %c0_22, %c0_23] : memref<9x4x128xbf16, #tpu.memory_space<vmem>>, vector<1x4x128xbf16>
    %16 = vector.shape_cast %15 : vector<1x4x128xbf16> to vector<4x128xbf16>
    %cst_24 = arith.constant dense<0.000000e+00> : vector<80x128xf32>
    %17 = tpu.matmul %14, %16, %cst_24 {dimension_numbers = #tpu.dot_dimension_numbers<[1], [0], [0], [1], [0, 0, 1, 1], [], []>} : vector<80x4xbf16>, vector<4x128xbf16>, vector<80x128xf32> -> vector<80x128xf32>
    %18 = arith.addf %12, %17 : vector<80x128xf32>
    %c0_25 = arith.constant 0 : index
    %c0_26 = arith.constant 0 : index
    %19 = vector.load %arg11[%c0_25, %c0_26] : memref<80x128xf32, #tpu.memory_space<vmem>>, vector<80x128xf32>
    tpu.vector_store %arg11[%c0_25, %c0_26], %18 {strides = array<i32>} : memref<80x128xf32, #tpu.memory_space<vmem>>, vector<80x128xf32>,
    %c0_27 = arith.constant 0 : index
    %c0_28 = arith.constant 0 : index
    %20 = vector.load %arg11[%c0_27, %c0_28] : memref<80x128xf32, #tpu.memory_space<vmem>>, vector<80x128xf32>
    %c0_29 = arith.constant 0 : index
    %c0_30 = arith.constant 0 : index
    %c1_31 = arith.constant 1 : index
    %c0_32 = arith.constant 0 : index
    %21 = vector.load %arg1[%c0_29, %c0_30, %c1_31, %c0_32] : memref<1x4x100x4xbf16, #tpu.memory_space<vmem>>, vector<1x1x80x4xbf16>
    %22 = vector.shape_cast %21 : vector<1x1x80x4xbf16> to vector<80x4xbf16>
    %c2 = arith.constant 2 : index
    %c0_33 = arith.constant 0 : index
    %c0_34 = arith.constant 0 : index
    %23 = vector.load %arg2[%c2, %c0_33, %c0_34] : memref<9x4x128xbf16, #tpu.memory_space<vmem>>, vector<1x4x128xbf16>
    %24 = vector.shape_cast %23 : vector<1x4x128xbf16> to vector<4x128xbf16>
    %cst_35 = arith.constant dense<0.000000e+00> : vector<80x128xf32>
    %25 = tpu.matmul %22, %24, %cst_35 {dimension_numbers = #tpu.dot_dimension_numbers<[1], [0], [0], [1], [0, 0, 1, 1], [], []>} : vector<80x4xbf16>, vector<4x128xbf16>, vector<80x128xf32> -> vector<80x128xf32>
    %26 = arith.addf %20, %25 : vector<80x128xf32>
    %c0_36 = arith.constant 0 : index
    %c0_37 = arith.constant 0 : index
    %27 = vector.load %arg11[%c0_36, %c0_37] : memref<80x128xf32, #tpu.memory_space<vmem>>, vector<80x128xf32>
    tpu.vector_store %arg11[%c0_36, %c0_37], %26 {strides = array<i32>} : memref<80x128xf32, #tpu.memory_space<vmem>>, vector<80x128xf32>,
    %c0_38 = arith.constant 0 : index
    %c0_39 = arith.constant 0 : index
    %28 = vector.load %arg11[%c0_38, %c0_39] : memref<80x128xf32, #tpu.memory_space<vmem>>, vector<80x128xf32>
    %c0_40 = arith.constant 0 : index
    %c2_41 = arith.constant 2 : index
    %c0_42 = arith.constant 0 : index
    %c0_43 = arith.constant 0 : index
    %29 = vector.load %arg1[%c0_40, %c2_41, %c0_42, %c0_43] : memref<1x4x100x4xbf16, #tpu.memory_space<vmem>>, vector<1x1x80x4xbf16>
    %30 = vector.shape_cast %29 : vector<1x1x80x4xbf16> to vector<80x4xbf16>
    %c3 = arith.constant 3 : index
    %c0_44 = arith.constant 0 : index
    %c0_45 = arith.constant 0 : index
    %31 = vector.load %arg2[%c3, %c0_44, %c0_45] : memref<9x4x128xbf16, #tpu.memory_space<vmem>>, vector<1x4x128xbf16>
    %32 = vector.shape_cast %31 : vector<1x4x128xbf16> to vector<4x128xbf16>
    %cst_46 = arith.constant dense<0.000000e+00> : vector<80x128xf32>
    %33 = tpu.matmul %30, %32, %cst_46 {dimension_numbers = #tpu.dot_dimension_numbers<[1], [0], [0], [1], [0, 0, 1, 1], [], []>} : vector<80x4xbf16>, vector<4x128xbf16>, vector<80x128xf32> -> vector<80x128xf32>
    %34 = arith.addf %28, %33 : vector<80x128xf32>
    %c0_47 = arith.constant 0 : index
    %c0_48 = arith.constant 0 : index
    %35 = vector.load %arg11[%c0_47, %c0_48] : memref<80x128xf32, #tpu.memory_space<vmem>>, vector<80x128xf32>
    tpu.vector_store %arg11[%c0_47, %c0_48], %34 {strides = array<i32>} : memref<80x128xf32, #tpu.memory_space<vmem>>, vector<80x128xf32>,
    %c0_49 = arith.constant 0 : index
    %c0_50 = arith.constant 0 : index
    %36 = vector.load %arg11[%c0_49, %c0_50] : memref<80x128xf32, #tpu.memory_space<vmem>>, vector<80x128xf32>
    %c0_51 = arith.constant 0 : index
    %c3_52 = arith.constant 3 : index
    %c0_53 = arith.constant 0 : index
    %c0_54 = arith.constant 0 : index
    %37 = vector.load %arg1[%c0_51, %c3_52, %c0_53, %c0_54] : memref<1x4x100x4xbf16, #tpu.memory_space<vmem>>, vector<1x1x80x4xbf16>
    %38 = vector.shape_cast %37 : vector<1x1x80x4xbf16> to vector<80x4xbf16>
    %c4 = arith.constant 4 : index
    %c0_55 = arith.constant 0 : index
    %c0_56 = arith.constant 0 : index
    %39 = vector.load %arg2[%c4, %c0_55, %c0_56] : memref<9x4x128xbf16, #tpu.memory_space<vmem>>, vector<1x4x128xbf16>
    %40 = vector.shape_cast %39 : vector<1x4x128xbf16> to vector<4x128xbf16>
    %cst_57 = arith.constant dense<0.000000e+00> : vector<80x128xf32>
    %41 = tpu.matmul %38, %40, %cst_57 {dimension_numbers = #tpu.dot_dimension_numbers<[1], [0], [0], [1], [0, 0, 1, 1], [], []>} : vector<80x4xbf16>, vector<4x128xbf16>, vector<80x128xf32> -> vector<80x128xf32>
    %42 = arith.addf %36, %41 : vector<80x128xf32>
    %c0_58 = arith.constant 0 : index
    %c0_59 = arith.constant 0 : index
    %43 = vector.load %arg11[%c0_58, %c0_59] : memref<80x128xf32, #tpu.memory_space<vmem>>, vector<80x128xf32>
    tpu.vector_store %arg11[%c0_58, %c0_59], %42 {strides = array<i32>} : memref<80x128xf32, #tpu.memory_space<vmem>>, vector<80x128xf32>,
    %c0_60 = arith.constant 0 : index
    %c0_61 = arith.constant 0 : index
    %44 = vector.load %arg11[%c0_60, %c0_61] : memref<80x128xf32, #tpu.memory_space<vmem>>, vector<80x128xf32>
    %c0_62 = arith.constant 0 : index
    %c2_63 = arith.constant 2 : index
    %c1_64 = arith.constant 1 : index
    %c0_65 = arith.constant 0 : index
    %45 = vector.load %arg1[%c0_62, %c2_63, %c1_64, %c0_65] : memref<1x4x100x4xbf16, #tpu.memory_space<vmem>>, vector<1x1x80x4xbf16>
    %46 = vector.shape_cast %45 : vector<1x1x80x4xbf16> to vector<80x4xbf16>
    %c5 = arith.constant 5 : index
    %c0_66 = arith.constant 0 : index
    %c0_67 = arith.constant 0 : index
    %47 = vector.load %arg2[%c5, %c0_66, %c0_67] : memref<9x4x128xbf16, #tpu.memory_space<vmem>>, vector<1x4x128xbf16>
    %48 = vector.shape_cast %47 : vector<1x4x128xbf16> to vector<4x128xbf16>
    %cst_68 = arith.constant dense<0.000000e+00> : vector<80x128xf32>
    %49 = tpu.matmul %46, %48, %cst_68 {dimension_numbers = #tpu.dot_dimension_numbers<[1], [0], [0], [1], [0, 0, 1, 1], [], []>} : vector<80x4xbf16>, vector<4x128xbf16>, vector<80x128xf32> -> vector<80x128xf32>
    %50 = arith.addf %44, %49 : vector<80x128xf32>
    %c0_69 = arith.constant 0 : index
    %c0_70 = arith.constant 0 : index
    %51 = vector.load %arg11[%c0_69, %c0_70] : memref<80x128xf32, #tpu.memory_space<vmem>>, vector<80x128xf32>
    tpu.vector_store %arg11[%c0_69, %c0_70], %50 {strides = array<i32>} : memref<80x128xf32, #tpu.memory_space<vmem>>, vector<80x128xf32>,
    %c0_71 = arith.constant 0 : index
    %c0_72 = arith.constant 0 : index
    %52 = vector.load %arg11[%c0_71, %c0_72] : memref<80x128xf32, #tpu.memory_space<vmem>>, vector<80x128xf32>
    %c0_73 = arith.constant 0 : index
    %c0_74 = arith.constant 0 : index
    %c10 = arith.constant 10 : index
    %c0_75 = arith.constant 0 : index
    %53 = vector.load %arg1[%c0_73, %c0_74, %c10, %c0_75] : memref<1x4x100x4xbf16, #tpu.memory_space<vmem>>, vector<1x1x80x4xbf16>
    %54 = vector.shape_cast %53 : vector<1x1x80x4xbf16> to vector<80x4xbf16>
    %c6 = arith.constant 6 : index
    %c0_76 = arith.constant 0 : index
    %c0_77 = arith.constant 0 : index
    %55 = vector.load %arg2[%c6, %c0_76, %c0_77] : memref<9x4x128xbf16, #tpu.memory_space<vmem>>, vector<1x4x128xbf16>
    %56 = vector.shape_cast %55 : vector<1x4x128xbf16> to vector<4x128xbf16>
    %cst_78 = arith.constant dense<0.000000e+00> : vector<80x128xf32>
    %57 = tpu.matmul %54, %56, %cst_78 {dimension_numbers = #tpu.dot_dimension_numbers<[1], [0], [0], [1], [0, 0, 1, 1], [], []>} : vector<80x4xbf16>, vector<4x128xbf16>, vector<80x128xf32> -> vector<80x128xf32>
    %58 = arith.addf %52, %57 : vector<80x128xf32>
    %c0_79 = arith.constant 0 : index
    %c0_80 = arith.constant 0 : index
    %59 = vector.load %arg11[%c0_79, %c0_80] : memref<80x128xf32, #tpu.memory_space<vmem>>, vector<80x128xf32>
    tpu.vector_store %arg11[%c0_79, %c0_80], %58 {strides = array<i32>} : memref<80x128xf32, #tpu.memory_space<vmem>>, vector<80x128xf32>,
    %c0_81 = arith.constant 0 : index
    %c0_82 = arith.constant 0 : index
    %60 = vector.load %arg11[%c0_81, %c0_82] : memref<80x128xf32, #tpu.memory_space<vmem>>, vector<80x128xf32>
    %c0_83 = arith.constant 0 : index
    %c1_84 = arith.constant 1 : index
    %c10_85 = arith.constant 10 : index
    %c0_86 = arith.constant 0 : index
    %61 = vector.load %arg1[%c0_83, %c1_84, %c10_85, %c0_86] : memref<1x4x100x4xbf16, #tpu.memory_space<vmem>>, vector<1x1x80x4xbf16>
    %62 = vector.shape_cast %61 : vector<1x1x80x4xbf16> to vector<80x4xbf16>
    %c7 = arith.constant 7 : index
    %c0_87 = arith.constant 0 : index
    %c0_88 = arith.constant 0 : index
    %63 = vector.load %arg2[%c7, %c0_87, %c0_88] : memref<9x4x128xbf16, #tpu.memory_space<vmem>>, vector<1x4x128xbf16>
    %64 = vector.shape_cast %63 : vector<1x4x128xbf16> to vector<4x128xbf16>
    %cst_89 = arith.constant dense<0.000000e+00> : vector<80x128xf32>
    %65 = tpu.matmul %62, %64, %cst_89 {dimension_numbers = #tpu.dot_dimension_numbers<[1], [0], [0], [1], [0, 0, 1, 1], [], []>} : vector<80x4xbf16>, vector<4x128xbf16>, vector<80x128xf32> -> vector<80x128xf32>
    %66 = arith.addf %60, %65 : vector<80x128xf32>
    %c0_90 = arith.constant 0 : index
    %c0_91 = arith.constant 0 : index
    %67 = vector.load %arg11[%c0_90, %c0_91] : memref<80x128xf32, #tpu.memory_space<vmem>>, vector<80x128xf32>
    tpu.vector_store %arg11[%c0_90, %c0_91], %66 {strides = array<i32>} : memref<80x128xf32, #tpu.memory_space<vmem>>, vector<80x128xf32>,
    %c0_92 = arith.constant 0 : index
    %c0_93 = arith.constant 0 : index
    %68 = vector.load %arg11[%c0_92, %c0_93] : memref<80x128xf32, #tpu.memory_space<vmem>>, vector<80x128xf32>
    %c0_94 = arith.constant 0 : index
    %c0_95 = arith.constant 0 : index
    %c11 = arith.constant 11 : index
    %c0_96 = arith.constant 0 : index
    %69 = vector.load %arg1[%c0_94, %c0_95, %c11, %c0_96] : memref<1x4x100x4xbf16, #tpu.memory_space<vmem>>, vector<1x1x80x4xbf16>
    %70 = vector.shape_cast %69 : vector<1x1x80x4xbf16> to vector<80x4xbf16>
    %c8 = arith.constant 8 : index
    %c0_97 = arith.constant 0 : index
    %c0_98 = arith.constant 0 : index
    %71 = vector.load %arg2[%c8, %c0_97, %c0_98] : memref<9x4x128xbf16, #tpu.memory_space<vmem>>, vector<1x4x128xbf16>
    %72 = vector.shape_cast %71 : vector<1x4x128xbf16> to vector<4x128xbf16>
    %cst_99 = arith.constant dense<0.000000e+00> : vector<80x128xf32>
    %73 = tpu.matmul %70, %72, %cst_99 {dimension_numbers = #tpu.dot_dimension_numbers<[1], [0], [0], [1], [0, 0, 1, 1], [], []>} : vector<80x4xbf16>, vector<4x128xbf16>, vector<80x128xf32> -> vector<80x128xf32>
    %74 = arith.addf %68, %73 : vector<80x128xf32>
    %c0_100 = arith.constant 0 : index
    %c0_101 = arith.constant 0 : index
    %75 = vector.load %arg11[%c0_100, %c0_101] : memref<80x128xf32, #tpu.memory_space<vmem>>, vector<80x128xf32>
    tpu.vector_store %arg11[%c0_100, %c0_101], %74 {strides = array<i32>} : memref<80x128xf32, #tpu.memory_space<vmem>>, vector<80x128xf32>,
    %c0_102 = arith.constant 0 : index
    %c0_103 = arith.constant 0 : index
    %76 = vector.load %arg11[%c0_102, %c0_103] : memref<80x128xf32, #tpu.memory_space<vmem>>, vector<80x128xf32>
    %c0_104 = arith.constant 0 : index
    %c0_105 = arith.constant 0 : index
    %77 = vector.load %arg3[%c0_104, %c0_105] : memref<1x128xf32, #tpu.memory_space<vmem>>, vector<1x128xf32>
    %78 = vector.broadcast %77 : vector<1x128xf32> to vector<80x128xf32>
    %79 = arith.addf %76, %78 : vector<80x128xf32>
    %cst_106 = arith.constant 0.000000e+00 : f32
    %80 = vector.broadcast %cst_106 : f32 to vector<80x128xf32>
    %81 = arith.maximumf %79, %80 : vector<80x128xf32>
    %c0_107 = arith.constant 0 : index
    %c0_108 = arith.constant 0 : index
    %82 = vector.load %arg6[%c0_107, %c0_108] : memref<80x1xf32, #tpu.memory_space<vmem>>, vector<80x1xf32>
    %83 = vector.broadcast %82 : vector<80x1xf32> to vector<80x128xf32>
    %84 = arith.mulf %81, %83 : vector<80x128xf32>
    %85 = arith.truncf %84 : vector<80x128xf32> to vector<80x128xbf16>
    %c16 = arith.constant 16 : index
    %c0_109 = arith.constant 0 : index
    %86 = vector.load %arg10[%c16, %c0_109] : memref<112x128xbf16, #tpu.memory_space<vmem>>, vector<80x128xbf16>
    tpu.vector_store %arg10[%c16, %c0_109], %85 {strides = array<i32>} : memref<112x128xbf16, #tpu.memory_space<vmem>>, vector<80x128xbf16>,
    %cst_110 = arith.constant 0.000000e+00 : f32
    %87 = vector.broadcast %cst_110 : f32 to vector<80x128xf32>
    %c0_111 = arith.constant 0 : index
    %c0_112 = arith.constant 0 : index
    %88 = vector.load %arg11[%c0_111, %c0_112] : memref<80x128xf32, #tpu.memory_space<vmem>>, vector<80x128xf32>
    tpu.vector_store %arg11[%c0_111, %c0_112], %87 {strides = array<i32>} : memref<80x128xf32, #tpu.memory_space<vmem>>, vector<80x128xf32>,
    %c0_113 = arith.constant 0 : index
    %c0_114 = arith.constant 0 : index
    %89 = vector.load %arg11[%c0_113, %c0_114] : memref<80x128xf32, #tpu.memory_space<vmem>>, vector<80x128xf32>
    %c5_115 = arith.constant 5 : index
    %c0_116 = arith.constant 0 : index
    %90 = vector.load %arg10[%c5_115, %c0_116] : memref<112x128xbf16, #tpu.memory_space<vmem>>, vector<80x128xbf16>
    %c0_117 = arith.constant 0 : index
    %c0_118 = arith.constant 0 : index
    %c0_119 = arith.constant 0 : index
    %91 = vector.load %arg4[%c0_117, %c0_118, %c0_119] : memref<9x128x128xbf16, #tpu.memory_space<vmem>>, vector<1x128x128xbf16>
    %92 = vector.shape_cast %91 : vector<1x128x128xbf16> to vector<128x128xbf16>
    %cst_120 = arith.constant dense<0.000000e+00> : vector<80x128xf32>
    %93 = tpu.matmul %90, %92, %cst_120 {dimension_numbers = #tpu.dot_dimension_numbers<[1], [0], [0], [1], [0, 0, 1, 1], [], []>} : vector<80x128xbf16>, vector<128x128xbf16>, vector<80x128xf32> -> vector<80x128xf32>
    %94 = arith.addf %89, %93 : vector<80x128xf32>
    %c0_121 = arith.constant 0 : index
    %c0_122 = arith.constant 0 : index
    %95 = vector.load %arg11[%c0_121, %c0_122] : memref<80x128xf32, #tpu.memory_space<vmem>>, vector<80x128xf32>
    tpu.vector_store %arg11[%c0_121, %c0_122], %94 {strides = array<i32>} : memref<80x128xf32, #tpu.memory_space<vmem>>, vector<80x128xf32>,
    %c0_123 = arith.constant 0 : index
    %c0_124 = arith.constant 0 : index
    %96 = vector.load %arg11[%c0_123, %c0_124] : memref<80x128xf32, #tpu.memory_space<vmem>>, vector<80x128xf32>
    %c6_125 = arith.constant 6 : index
    %c0_126 = arith.constant 0 : index
    %97 = vector.load %arg10[%c6_125, %c0_126] : memref<112x128xbf16, #tpu.memory_space<vmem>>, vector<80x128xbf16>
    %c1_127 = arith.constant 1 : index
    %c0_128 = arith.constant 0 : index
    %c0_129 = arith.constant 0 : index
    %98 = vector.load %arg4[%c1_127, %c0_128, %c0_129] : memref<9x128x128xbf16, #tpu.memory_space<vmem>>, vector<1x128x128xbf16>
    %99 = vector.shape_cast %98 : vector<1x128x128xbf16> to vector<128x128xbf16>
    %cst_130 = arith.constant dense<0.000000e+00> : vector<80x128xf32>
    %100 = tpu.matmul %97, %99, %cst_130 {dimension_numbers = #tpu.dot_dimension_numbers<[1], [0], [0], [1], [0, 0, 1, 1], [], []>} : vector<80x128xbf16>, vector<128x128xbf16>, vector<80x128xf32> -> vector<80x128xf32>
    %101 = arith.addf %96, %100 : vector<80x128xf32>
    %c0_131 = arith.constant 0 : index
    %c0_132 = arith.constant 0 : index
    %102 = vector.load %arg11[%c0_131, %c0_132] : memref<80x128xf32, #tpu.memory_space<vmem>>, vector<80x128xf32>
    tpu.vector_store %arg11[%c0_131, %c0_132], %101 {strides = array<i32>} : memref<80x128xf32, #tpu.memory_space<vmem>>, vector<80x128xf32>,
    %c0_133 = arith.constant 0 : index
    %c0_134 = arith.constant 0 : index
    %103 = vector.load %arg11[%c0_133, %c0_134] : memref<80x128xf32, #tpu.memory_space<vmem>>, vector<80x128xf32>
    %c7_135 = arith.constant 7 : index
    %c0_136 = arith.constant 0 : index
    %104 = vector.load %arg10[%c7_135, %c0_136] : memref<112x128xbf16, #tpu.memory_space<vmem>>, vector<80x128xbf16>
    %c2_137 = arith.constant 2 : index
    %c0_138 = arith.constant 0 : index
    %c0_139 = arith.constant 0 : index
    %105 = vector.load %arg4[%c2_137, %c0_138, %c0_139] : memref<9x128x128xbf16, #tpu.memory_space<vmem>>, vector<1x128x128xbf16>
    %106 = vector.shape_cast %105 : vector<1x128x128xbf16> to vector<128x128xbf16>
    %cst_140 = arith.constant dense<0.000000e+00> : vector<80x128xf32>
    %107 = tpu.matmul %104, %106, %cst_140 {dimension_numbers = #tpu.dot_dimension_numbers<[1], [0], [0], [1], [0, 0, 1, 1], [], []>} : vector<80x128xbf16>, vector<128x128xbf16>, vector<80x128xf32> -> vector<80x128xf32>
    %108 = arith.addf %103, %107 : vector<80x128xf32>
    %c0_141 = arith.constant 0 : index
    %c0_142 = arith.constant 0 : index
    %109 = vector.load %arg11[%c0_141, %c0_142] : memref<80x128xf32, #tpu.memory_space<vmem>>, vector<80x128xf32>
    tpu.vector_store %arg11[%c0_141, %c0_142], %108 {strides = array<i32>} : memref<80x128xf32, #tpu.memory_space<vmem>>, vector<80x128xf32>,
    %c0_143 = arith.constant 0 : index
    %c0_144 = arith.constant 0 : index
    %110 = vector.load %arg11[%c0_143, %c0_144] : memref<80x128xf32, #tpu.memory_space<vmem>>, vector<80x128xf32>
    %c15 = arith.constant 15 : index
    %c0_145 = arith.constant 0 : index
    %111 = vector.load %arg10[%c15, %c0_145] : memref<112x128xbf16, #tpu.memory_space<vmem>>, vector<80x128xbf16>
    %c3_146 = arith.constant 3 : index
    %c0_147 = arith.constant 0 : index
    %c0_148 = arith.constant 0 : index
    %112 = vector.load %arg4[%c3_146, %c0_147, %c0_148] : memref<9x128x128xbf16, #tpu.memory_space<vmem>>, vector<1x128x128xbf16>
    %113 = vector.shape_cast %112 : vector<1x128x128xbf16> to vector<128x128xbf16>
    %cst_149 = arith.constant dense<0.000000e+00> : vector<80x128xf32>
    %114 = tpu.matmul %111, %113, %cst_149 {dimension_numbers = #tpu.dot_dimension_numbers<[1], [0], [0], [1], [0, 0, 1, 1], [], []>} : vector<80x128xbf16>, vector<128x128xbf16>, vector<80x128xf32> -> vector<80x128xf32>
    %115 = arith.addf %110, %114 : vector<80x128xf32>
    %c0_150 = arith.constant 0 : index
    %c0_151 = arith.constant 0 : index
    %116 = vector.load %arg11[%c0_150, %c0_151] : memref<80x128xf32, #tpu.memory_space<vmem>>, vector<80x128xf32>
    tpu.vector_store %arg11[%c0_150, %c0_151], %115 {strides = array<i32>} : memref<80x128xf32, #tpu.memory_space<vmem>>, vector<80x128xf32>,
    %c0_152 = arith.constant 0 : index
    %c0_153 = arith.constant 0 : index
    %117 = vector.load %arg11[%c0_152, %c0_153] : memref<80x128xf32, #tpu.memory_space<vmem>>, vector<80x128xf32>
    %c16_154 = arith.constant 16 : index
    %c0_155 = arith.constant 0 : index
    %118 = vector.load %arg10[%c16_154, %c0_155] : memref<112x128xbf16, #tpu.memory_space<vmem>>, vector<80x128xbf16>
    %c4_156 = arith.constant 4 : index
    %c0_157 = arith.constant 0 : index
    %c0_158 = arith.constant 0 : index
    %119 = vector.load %arg4[%c4_156, %c0_157, %c0_158] : memref<9x128x128xbf16, #tpu.memory_space<vmem>>, vector<1x128x128xbf16>
    %120 = vector.shape_cast %119 : vector<1x128x128xbf16> to vector<128x128xbf16>
    %cst_159 = arith.constant dense<0.000000e+00> : vector<80x128xf32>
    %121 = tpu.matmul %118, %120, %cst_159 {dimension_numbers = #tpu.dot_dimension_numbers<[1], [0], [0], [1], [0, 0, 1, 1], [], []>} : vector<80x128xbf16>, vector<128x128xbf16>, vector<80x128xf32> -> vector<80x128xf32>
    %122 = arith.addf %117, %121 : vector<80x128xf32>
    %c0_160 = arith.constant 0 : index
    %c0_161 = arith.constant 0 : index
    %123 = vector.load %arg11[%c0_160, %c0_161] : memref<80x128xf32, #tpu.memory_space<vmem>>, vector<80x128xf32>
    tpu.vector_store %arg11[%c0_160, %c0_161], %122 {strides = array<i32>} : memref<80x128xf32, #tpu.memory_space<vmem>>, vector<80x128xf32>,
    %c0_162 = arith.constant 0 : index
    %c0_163 = arith.constant 0 : index
    %124 = vector.load %arg11[%c0_162, %c0_163] : memref<80x128xf32, #tpu.memory_space<vmem>>, vector<80x128xf32>
    %c17 = arith.constant 17 : index
    %c0_164 = arith.constant 0 : index
    %125 = vector.load %arg10[%c17, %c0_164] : memref<112x128xbf16, #tpu.memory_space<vmem>>, vector<80x128xbf16>
    %c5_165 = arith.constant 5 : index
    %c0_166 = arith.constant 0 : index
    %c0_167 = arith.constant 0 : index
    %126 = vector.load %arg4[%c5_165, %c0_166, %c0_167] : memref<9x128x128xbf16, #tpu.memory_space<vmem>>, vector<1x128x128xbf16>
    %127 = vector.shape_cast %126 : vector<1x128x128xbf16> to vector<128x128xbf16>
    %cst_168 = arith.constant dense<0.000000e+00> : vector<80x128xf32>
    %128 = tpu.matmul %125, %127, %cst_168 {dimension_numbers = #tpu.dot_dimension_numbers<[1], [0], [0], [1], [0, 0, 1, 1], [], []>} : vector<80x128xbf16>, vector<128x128xbf16>, vector<80x128xf32> -> vector<80x128xf32>
    %129 = arith.addf %124, %128 : vector<80x128xf32>
    %c0_169 = arith.constant 0 : index
    %c0_170 = arith.constant 0 : index
    %130 = vector.load %arg11[%c0_169, %c0_170] : memref<80x128xf32, #tpu.memory_space<vmem>>, vector<80x128xf32>
    tpu.vector_store %arg11[%c0_169, %c0_170], %129 {strides = array<i32>} : memref<80x128xf32, #tpu.memory_space<vmem>>, vector<80x128xf32>,
    %c0_171 = arith.constant 0 : index
    %c0_172 = arith.constant 0 : index
    %131 = vector.load %arg11[%c0_171, %c0_172] : memref<80x128xf32, #tpu.memory_space<vmem>>, vector<80x128xf32>
    %c25 = arith.constant 25 : index
    %c0_173 = arith.constant 0 : index
    %132 = vector.load %arg10[%c25, %c0_173] : memref<112x128xbf16, #tpu.memory_space<vmem>>, vector<80x128xbf16>
    %c6_174 = arith.constant 6 : index
    %c0_175 = arith.constant 0 : index
    %c0_176 = arith.constant 0 : index
    %133 = vector.load %arg4[%c6_174, %c0_175, %c0_176] : memref<9x128x128xbf16, #tpu.memory_space<vmem>>, vector<1x128x128xbf16>
    %134 = vector.shape_cast %133 : vector<1x128x128xbf16> to vector<128x128xbf16>
    %cst_177 = arith.constant dense<0.000000e+00> : vector<80x128xf32>
    %135 = tpu.matmul %132, %134, %cst_177 {dimension_numbers = #tpu.dot_dimension_numbers<[1], [0], [0], [1], [0, 0, 1, 1], [], []>} : vector<80x128xbf16>, vector<128x128xbf16>, vector<80x128xf32> -> vector<80x128xf32>
    %136 = arith.addf %131, %135 : vector<80x128xf32>
    %c0_178 = arith.constant 0 : index
    %c0_179 = arith.constant 0 : index
    %137 = vector.load %arg11[%c0_178, %c0_179] : memref<80x128xf32, #tpu.memory_space<vmem>>, vector<80x128xf32>
    tpu.vector_store %arg11[%c0_178, %c0_179], %136 {strides = array<i32>} : memref<80x128xf32, #tpu.memory_space<vmem>>, vector<80x128xf32>,
    %c0_180 = arith.constant 0 : index
    %c0_181 = arith.constant 0 : index
    %138 = vector.load %arg11[%c0_180, %c0_181] : memref<80x128xf32, #tpu.memory_space<vmem>>, vector<80x128xf32>
    %c26 = arith.constant 26 : index
    %c0_182 = arith.constant 0 : index
    %139 = vector.load %arg10[%c26, %c0_182] : memref<112x128xbf16, #tpu.memory_space<vmem>>, vector<80x128xbf16>
    %c7_183 = arith.constant 7 : index
    %c0_184 = arith.constant 0 : index
    %c0_185 = arith.constant 0 : index
    %140 = vector.load %arg4[%c7_183, %c0_184, %c0_185] : memref<9x128x128xbf16, #tpu.memory_space<vmem>>, vector<1x128x128xbf16>
    %141 = vector.shape_cast %140 : vector<1x128x128xbf16> to vector<128x128xbf16>
    %cst_186 = arith.constant dense<0.000000e+00> : vector<80x128xf32>
    %142 = tpu.matmul %139, %141, %cst_186 {dimension_numbers = #tpu.dot_dimension_numbers<[1], [0], [0], [1], [0, 0, 1, 1], [], []>} : vector<80x128xbf16>, vector<128x128xbf16>, vector<80x128xf32> -> vector<80x128xf32>
    %143 = arith.addf %138, %142 : vector<80x128xf32>
    %c0_187 = arith.constant 0 : index
    %c0_188 = arith.constant 0 : index
    %144 = vector.load %arg11[%c0_187, %c0_188] : memref<80x128xf32, #tpu.memory_space<vmem>>, vector<80x128xf32>
    tpu.vector_store %arg11[%c0_187, %c0_188], %143 {strides = array<i32>} : memref<80x128xf32, #tpu.memory_space<vmem>>, vector<80x128xf32>,
    %c0_189 = arith.constant 0 : index
    %c0_190 = arith.constant 0 : index
    %145 = vector.load %arg11[%c0_189, %c0_190] : memref<80x128xf32, #tpu.memory_space<vmem>>, vector<80x128xf32>
    %c27 = arith.constant 27 : index
    %c0_191 = arith.constant 0 : index
    %146 = vector.load %arg10[%c27, %c0_191] : memref<112x128xbf16, #tpu.memory_space<vmem>>, vector<80x128xbf16>
    %c8_192 = arith.constant 8 : index
    %c0_193 = arith.constant 0 : index
    %c0_194 = arith.constant 0 : index
    %147 = vector.load %arg4[%c8_192, %c0_193, %c0_194] : memref<9x128x128xbf16, #tpu.memory_space<vmem>>, vector<1x128x128xbf16>
    %148 = vector.shape_cast %147 : vector<1x128x128xbf16> to vector<128x128xbf16>
    %cst_195 = arith.constant dense<0.000000e+00> : vector<80x128xf32>
    %149 = tpu.matmul %146, %148, %cst_195 {dimension_numbers = #tpu.dot_dimension_numbers<[1], [0], [0], [1], [0, 0, 1, 1], [], []>} : vector<80x128xbf16>, vector<128x128xbf16>, vector<80x128xf32> -> vector<80x128xf32>
    %150 = arith.addf %145, %149 : vector<80x128xf32>
    %c0_196 = arith.constant 0 : index
    %c0_197 = arith.constant 0 : index
    %151 = vector.load %arg11[%c0_196, %c0_197] : memref<80x128xf32, #tpu.memory_space<vmem>>, vector<80x128xf32>
    tpu.vector_store %arg11[%c0_196, %c0_197], %150 {strides = array<i32>} : memref<80x128xf32, #tpu.memory_space<vmem>>, vector<80x128xf32>,
    %c0_198 = arith.constant 0 : index
    %c0_199 = arith.constant 0 : index
    %152 = vector.load %arg11[%c0_198, %c0_199] : memref<80x128xf32, #tpu.memory_space<vmem>>, vector<80x128xf32>
    %c0_200 = arith.constant 0 : index
    %c3_201 = arith.constant 3 : index
    %c0_202 = arith.constant 0 : index
    %c0_203 = arith.constant 0 : index
    %153 = vector.load %arg1[%c0_200, %c3_201, %c0_202, %c0_203] : memref<1x4x100x4xbf16, #tpu.memory_space<vmem>>, vector<1x1x80x4xbf16>
    %154 = vector.shape_cast %153 : vector<1x1x80x4xbf16> to vector<80x4xbf16>
    %c0_204 = arith.constant 0 : index
    %c0_205 = arith.constant 0 : index
    %155 = vector.load %arg7[%c0_204, %c0_205] : memref<4x128xbf16, #tpu.memory_space<vmem>>, vector<4x128xbf16>
    %cst_206 = arith.constant dense<0.000000e+00> : vector<80x128xf32>
    %156 = tpu.matmul %154, %155, %cst_206 {dimension_numbers = #tpu.dot_dimension_numbers<[1], [0], [0], [1], [0, 0, 1, 1], [], []>} : vector<80x4xbf16>, vector<4x128xbf16>, vector<80x128xf32> -> vector<80x128xf32>
    %157 = arith.addf %152, %156 : vector<80x128xf32>
    %c0_207 = arith.constant 0 : index
    %c0_208 = arith.constant 0 : index
    %158 = vector.load %arg11[%c0_207, %c0_208] : memref<80x128xf32, #tpu.memory_space<vmem>>, vector<80x128xf32>
    tpu.vector_store %arg11[%c0_207, %c0_208], %157 {strides = array<i32>} : memref<80x128xf32, #tpu.memory_space<vmem>>, vector<80x128xf32>,
    %c0_209 = arith.constant 0 : index
    %c0_210 = arith.constant 0 : index
    %159 = vector.load %arg11[%c0_209, %c0_210] : memref<80x128xf32, #tpu.memory_space<vmem>>, vector<80x128xf32>
    %c0_211 = arith.constant 0 : index
    %c0_212 = arith.constant 0 : index
    %160 = vector.load %arg5[%c0_211, %c0_212] : memref<1x128xf32, #tpu.memory_space<vmem>>, vector<1x128xf32>
    %161 = vector.broadcast %160 : vector<1x128xf32> to vector<80x128xf32>
    %162 = arith.addf %159, %161 : vector<80x128xf32>
    %c0_213 = arith.constant 0 : index
    %c0_214 = arith.constant 0 : index
    %163 = vector.load %arg8[%c0_213, %c0_214] : memref<1x128xf32, #tpu.memory_space<vmem>>, vector<1x128xf32>
    %164 = vector.broadcast %163 : vector<1x128xf32> to vector<80x128xf32>
    %165 = arith.addf %162, %164 : vector<80x128xf32>
    %cst_215 = arith.constant 0.000000e+00 : f32
    %166 = vector.broadcast %cst_215 : f32 to vector<80x128xf32>
    %167 = arith.maximumf %165, %166 : vector<80x128xf32>
    %168 = arith.truncf %167 : vector<80x128xf32> to vector<80x128xbf16>
    %c0_216 = arith.constant 0 : index
    %c0_217 = arith.constant 0 : index
    %c0_218 = arith.constant 0 : index
    %169 = vector.load %arg9[%c0_216, %c0_217, %c0_218] : memref<1x80x128xbf16, #tpu.memory_space<vmem>>, vector<1x80x128xbf16>
    %170 = vector.shape_cast %169 : vector<1x80x128xbf16> to vector<80x128xbf16>
    %171 = vector.shape_cast %168 : vector<80x128xbf16> to vector<1x80x128xbf16>
    tpu.vector_store %arg9[%c0_216, %c0_217, %c0_218], %171 {strides = array<i32>} : memref<1x80x128xbf16, #tpu.memory_space<vmem>>, vector<1x80x128xbf16>,
    return
  }
  func.func @transform_0(%arg0: i32) -> (i32, i32, i32, i32) {
    %c0_i32 = arith.constant 0 : i32
    %c0_i32_0 = arith.constant 0 : i32
    %c0_i32_1 = arith.constant 0 : i32
    %c0_i32_2 = arith.constant 0 : i32
    return %arg0, %c0_i32, %c0_i32_0, %c0_i32_1 : i32, i32, i32, i32
  }
  func.func @transform_1(%arg0: i32) -> (i32, i32, i32) {
    %c0_i32 = arith.constant 0 : i32
    %c0_i32_0 = arith.constant 0 : i32
    %c0_i32_1 = arith.constant 0 : i32
    %c0_i32_2 = arith.constant 0 : i32
    return %c0_i32, %c0_i32_0, %c0_i32_1 : i32, i32, i32
  }
  func.func @transform_2(%arg0: i32) -> (i32, i32) {
    %c0_i32 = arith.constant 0 : i32
    %c0_i32_0 = arith.constant 0 : i32
    %c0_i32_1 = arith.constant 0 : i32
    return %c0_i32, %c0_i32_0 : i32, i32
  }
  func.func @transform_3(%arg0: i32) -> (i32, i32, i32) {
    %c0_i32 = arith.constant 0 : i32
    %c0_i32_0 = arith.constant 0 : i32
    %c0_i32_1 = arith.constant 0 : i32
    %c0_i32_2 = arith.constant 0 : i32
    return %c0_i32, %c0_i32_0, %c0_i32_1 : i32, i32, i32
  }
  func.func @transform_4(%arg0: i32) -> (i32, i32) {
    %c0_i32 = arith.constant 0 : i32
    %c0_i32_0 = arith.constant 0 : i32
    %c0_i32_1 = arith.constant 0 : i32
    return %c0_i32, %c0_i32_0 : i32, i32
  }
  func.func @transform_5(%arg0: i32) -> (i32, i32) {
    %c0_i32 = arith.constant 0 : i32
    %c0_i32_0 = arith.constant 0 : i32
    %c0_i32_1 = arith.constant 0 : i32
    return %c0_i32, %c0_i32_0 : i32, i32
  }
  func.func @transform_6(%arg0: i32) -> (i32, i32) {
    %c0_i32 = arith.constant 0 : i32
    %c0_i32_0 = arith.constant 0 : i32
    %c0_i32_1 = arith.constant 0 : i32
    return %c0_i32, %c0_i32_0 : i32, i32
  }
  func.func @transform_7(%arg0: i32) -> (i32, i32) {
    %c0_i32 = arith.constant 0 : i32
    %c0_i32_0 = arith.constant 0 : i32
    %c0_i32_1 = arith.constant 0 : i32
    return %c0_i32, %c0_i32_0 : i32, i32
  }
  func.func @transform_8(%arg0: i32) -> (i32, i32, i32) {
    %c0_i32 = arith.constant 0 : i32
    %c0_i32_0 = arith.constant 0 : i32
    %c0_i32_1 = arith.constant 0 : i32
    return %arg0, %c0_i32, %c0_i32_0 : i32, i32, i32
  }
}

</mosaic_0001>

<llo_original>
// kernel: basic_block_forward.1
$region0: #{basic_block_forward.1}
  #allocation0 [shape = 'u32[]', space=smem, size = 0x4, offset = 0x4, fixed_abs, tag = 'smem constant byte address 0x4 - core index']
  #allocation1 [shape = 'u32[72,128]{1,0:T(1,128)}', space=vmem, size = 0x9000, scoped, tag = 'internal scratch']
  #allocation2 [shape = 'bf16[112,128]{1,0:T(8,128)(2,1)}', space=vmem, size = 0x7000, scoped, tag = 'scratch operand']
  #allocation3 [shape = 'f32[80,128]{1,0:T(8,128)}', space=vmem, size = 0xa000, scoped, tag = 'scratch operand']
  %s0 = inlined_call_operand.vmem [shape: bf16[2,4,100,4], index: 0, kind: input, shape index: {}]
  %s1 = inlined_call_operand.vmem [shape: bf16[9,4,128], index: 1, kind: input, shape index: {}]
  %s2 = inlined_call_operand.vmem [shape: f32[1,128], index: 2, kind: input, shape index: {}]
  %s3 = inlined_call_operand.vmem [shape: bf16[9,128,128], index: 3, kind: input, shape index: {}]
  %s4 = inlined_call_operand.vmem [shape: f32[1,128], index: 4, kind: input, shape index: {}]
  %s5 = inlined_call_operand.vmem [shape: f32[80,1], index: 5, kind: input, shape index: {}]
  %s6 = inlined_call_operand.vmem [shape: bf16[4,128], index: 6, kind: input, shape index: {}]
  %s7 = inlined_call_operand.vmem [shape: f32[1,128], index: 7, kind: input, shape index: {}]
  %s8 = inlined_call_operand.vmem [shape: bf16[2,80,128], index: 8, kind: output, shape index: {}]
  %s9 = sld [smem:[#allocation0]]
  $region65: #{basic_block_forward.1} parent=0
    _
  %s11 = ssub.s32 1, %s9
  %s12 = scalar_select 0, %s11, %s9
  loop: start=0, step=1, limit=4
  $region2: #{basic_block_forward.1} parent=0 // loop_pre_header
    _
  $region3: #{basic_block_forward.1} parent=0 // loop_header
    %s14 = sphi 0, %s18
    %p15 = scmp.ge.s32.totalorder %s14, 4
    %s24 = sphi 0, %s26
    %s27 = sphi 0, %s24
    %s28 = sphi 0, %s27
    %s44 = sphi 0, %s28
    %s48 = sphi 0, %s48
    %s50 = sphi 0, %s48
    %s51 = sphi 0, %s50
    %s65 = sphi 0, %s51
    %s69 = sphi 0, %s69
    %s71 = sphi 0, %s69
    %s72 = sphi 0, %s71
    %s86 = sphi 0, %s72
    %s90 = sphi 0, %s90
    %s92 = sphi 0, %s90
    %s93 = sphi 0, %s92
    %s107 = sphi 0, %s93
    %s111 = sphi 0, %s111
    %s113 = sphi 0, %s111
    %s114 = sphi 0, %s113
    %s128 = sphi 0, %s114
    %s132 = sphi 0, %s132
    %s134 = sphi 0, %s132
    %s135 = sphi 0, %s134
    %s149 = sphi 0, %s135
    %s153 = sphi 0, %s153
    %s155 = sphi 0, %s153
    %s156 = sphi 0, %s155
    %s170 = sphi 0, %s156
    %s174 = sphi 0, %s174
    %s176 = sphi 0, %s174
    %s177 = sphi 0, %s176
    %s191 = sphi 0, %s177
    %s197 = sphi 0, %s199
    %s200 = sphi 0, %s197
    %s201 = sphi 0, %s200
    %s217 = sphi 0, %s201
  $region4: #{basic_block_forward.1} parent=0 // loop_header_branch
    %17 = sbr.rel (%p15) target = $region8
  $region5: #{basic_block_forward.1} parent=0 // loop_body
    %s19 = ssub.s32 %s14, 1
    %s20 = ssub.s32 %s14, 2
    %s21 = sadd.s32 %s14, 1
    %s22 = ssub.s32 %s14, %s21
    %p23 = scmp.eq.s32.totalorder %s22, 0
    %s25 = sadd.s32 %s24, 1
    %s26 = scalar_select %p23, %s24, %s25
    %p29 = pneg %p23
    %p30 = scmp.eq.s32.totalorder %s14, 1
    %p31 = por %p29, %p30
    %p32 = scmp.ne.s32.totalorder %s24, %s27
    %p33 = scmp.eq.s32.totalorder %s14, 0
    %p34 = por %p32, %p33
    %p35 = scmp.ne.s32.totalorder %s24, %s27
    %p36 = scmp.eq.s32.totalorder %s19, 1
    %p37 = por %p35, %p36
    %p38 = scmp.ne.s32.totalorder %s27, %s28
    %p39 = scmp.eq.s32.totalorder %s19, 0
    %p40 = por %p38, %p39
    %p41 = scmp.ne.s32.totalorder %s27, %s28
    %p42 = scmp.eq.s32.totalorder %s20, 1
    %p43 = por %p41, %p42
    %p45 = scmp.ne.s32.totalorder %s28, %s44
    %p46 = scmp.eq.s32.totalorder %s20, 0
    %p47 = por %p45, %p46
    %s49 = sadd.s32 %s48, 1
    %p52 = scmp.eq.s32.totalorder %s14, 1
    %p53 = scmp.ne.s32.totalorder %s48, %s50
    %p54 = scmp.eq.s32.totalorder %s14, 0
    %p55 = por %p53, %p54
    %p56 = scmp.ne.s32.totalorder %s48, %s50
    %p57 = scmp.eq.s32.totalorder %s19, 1
    %p58 = por %p56, %p57
    %p59 = scmp.ne.s32.totalorder %s50, %s51
    %p60 = scmp.eq.s32.totalorder %s19, 0
    %p61 = por %p59, %p60
    %p62 = scmp.ne.s32.totalorder %s50, %s51
    %p63 = scmp.eq.s32.totalorder %s20, 1
    %p64 = por %p62, %p63
    %p66 = scmp.ne.s32.totalorder %s51, %s65
    %p67 = scmp.eq.s32.totalorder %s20, 0
    %p68 = por %p66, %p67
    %s70 = sadd.s32 %s69, 1
    %p73 = scmp.eq.s32.totalorder %s14, 1
    %p74 = scmp.ne.s32.totalorder %s69, %s71
    %p75 = scmp.eq.s32.totalorder %s14, 0
    %p76 = por %p74, %p75
    %p77 = scmp.ne.s32.totalorder %s69, %s71
    %p78 = scmp.eq.s32.totalorder %s19, 1
    %p79 = por %p77, %p78
    %p80 = scmp.ne.s32.totalorder %s71, %s72
    %p81 = scmp.eq.s32.totalorder %s19, 0
    %p82 = por %p80, %p81
    %p83 = scmp.ne.s32.totalorder %s71, %s72
    %p84 = scmp.eq.s32.totalorder %s20, 1
    %p85 = por %p83, %p84
    %p87 = scmp.ne.s32.totalorder %s72, %s86
    %p88 = scmp.eq.s32.totalorder %s20, 0
    %p89 = por %p87, %p88
    %s91 = sadd.s32 %s90, 1
    %p94 = scmp.eq.s32.totalorder %s14, 1
    %p95 = scmp.ne.s32.totalorder %s90, %s92
    %p96 = scmp.eq.s32.totalorder %s14, 0
    %p97 = por %p95, %p96
    %p98 = scmp.ne.s32.totalorder %s90, %s92
    %p99 = scmp.eq.s32.totalorder %s19, 1
    %p100 = por %p98, %p99
    %p101 = scmp.ne.s32.totalorder %s92, %s93
    %p102 = scmp.eq.s32.totalorder %s19, 0
    %p103 = por %p101, %p102
    %p104 = scmp.ne.s32.totalorder %s92, %s93
    %p105 = scmp.eq.s32.totalorder %s20, 1
    %p106 = por %p104, %p105
    %p108 = scmp.ne.s32.totalorder %s93, %s107
    %p109 = scmp.eq.s32.totalorder %s20, 0
    %p110 = por %p108, %p109
    %s112 = sadd.s32 %s111, 1
    %p115 = scmp.eq.s32.totalorder %s14, 1
    %p116 = scmp.ne.s32.totalorder %s111, %s113
    %p117 = scmp.eq.s32.totalorder %s14, 0
    %p118 = por %p116, %p117
    %p119 = scmp.ne.s32.totalorder %s111, %s113
    %p120 = scmp.eq.s32.totalorder %s19, 1
    %p121 = por %p119, %p120
    %p122 = scmp.ne.s32.totalorder %s113, %s114
    %p123 = scmp.eq.s32.totalorder %s19, 0
    %p124 = por %p122, %p123
    %p125 = scmp.ne.s32.totalorder %s113, %s114
    %p126 = scmp.eq.s32.totalorder %s20, 1
    %p127 = por %p125, %p126
    %p129 = scmp.ne.s32.totalorder %s114, %s128
    %p130 = scmp.eq.s32.totalorder %s20, 0
    %p131 = por %p129, %p130
    %s133 = sadd.s32 %s132, 1
    %p136 = scmp.eq.s32.totalorder %s14, 1
    %p137 = scmp.ne.s32.totalorder %s132, %s134
    %p138 = scmp.eq.s32.totalorder %s14, 0
    %p139 = por %p137, %p138
    %p140 = scmp.ne.s32.totalorder %s132, %s134
    %p141 = scmp.eq.s32.totalorder %s19, 1
    %p142 = por %p140, %p141
    %p143 = scmp.ne.s32.totalorder %s134, %s135
    %p144 = scmp.eq.s32.totalorder %s19, 0
    %p145 = por %p143, %p144
    %p146 = scmp.ne.s32.totalorder %s134, %s135
    %p147 = scmp.eq.s32.totalorder %s20, 1
    %p148 = por %p146, %p147
    %p150 = scmp.ne.s32.totalorder %s135, %s149
    %p151 = scmp.eq.s32.totalorder %s20, 0
    %p152 = por %p150, %p151
    %s154 = sadd.s32 %s153, 1
    %p157 = scmp.eq.s32.totalorder %s14, 1
    %p158 = scmp.ne.s32.totalorder %s153, %s155
    %p159 = scmp.eq.s32.totalorder %s14, 0
    %p160 = por %p158, %p159
    %p161 = scmp.ne.s32.totalorder %s153, %s155
    %p162 = scmp.eq.s32.totalorder %s19, 1
    %p163 = por %p161, %p162
    %p164 = scmp.ne.s32.totalorder %s155, %s156
    %p165 = scmp.eq.s32.totalorder %s19, 0
    %p166 = por %p164, %p165
    %p167 = scmp.ne.s32.totalorder %s155, %s156
    %p168 = scmp.eq.s32.totalorder %s20, 1
    %p169 = por %p167, %p168
    %p171 = scmp.ne.s32.totalorder %s156, %s170
    %p172 = scmp.eq.s32.totalorder %s20, 0
    %p173 = por %p171, %p172
    %s175 = sadd.s32 %s174, 1
    %p178 = scmp.eq.s32.totalorder %s14, 1
    %p179 = scmp.ne.s32.totalorder %s174, %s176
    %p180 = scmp.eq.s32.totalorder %s14, 0
    %p181 = por %p179, %p180
    %p182 = scmp.ne.s32.totalorder %s174, %s176
    %p183 = scmp.eq.s32.totalorder %s19, 1
    %p184 = por %p182, %p183
    %p185 = scmp.ne.s32.totalorder %s176, %s177
    %p186 = scmp.eq.s32.totalorder %s19, 0
    %p187 = por %p185, %p186
    %p188 = scmp.ne.s32.totalorder %s176, %s177
    %p189 = scmp.eq.s32.totalorder %s20, 1
    %p190 = por %p188, %p189
    %p192 = scmp.ne.s32.totalorder %s177, %s191
    %p193 = scmp.eq.s32.totalorder %s20, 0
    %p194 = por %p192, %p193
    %s195 = ssub.s32 %s14, %s21
    %p196 = scmp.eq.s32.totalorder %s195, 0
    %s198 = sadd.s32 %s197, 1
    %s199 = scalar_select %p196, %s197, %s198
    %p202 = pneg %p196
    %p203 = scmp.eq.s32.totalorder %s14, 1
    %p204 = por %p202, %p203
    %p205 = scmp.ne.s32.totalorder %s197, %s200
    %p206 = scmp.eq.s32.totalorder %s14, 0
    %p207 = por %p205, %p206
    %p208 = scmp.ne.s32.totalorder %s197, %s200
    %p209 = scmp.eq.s32.totalorder %s19, 1
    %p210 = por %p208, %p209
    %p211 = scmp.ne.s32.totalorder %s200, %s201
    %p212 = scmp.eq.s32.totalorder %s19, 0
    %p213 = por %p211, %p212
    %p214 = scmp.ne.s32.totalorder %s200, %s201
    %p215 = scmp.eq.s32.totalorder %s20, 1
    %p216 = por %p214, %p215
    %p218 = scmp.ne.s32.totalorder %s201, %s217
    %p219 = scmp.eq.s32.totalorder %s20, 0
    %p220 = por %p218, %p219
    %p221 = scmp.le.s32.totalorder 1, %s14
    %p222 = scmp.lt.s32.totalorder %s14, 3
    %p223 = pnand %p221, %p222
    %p224 = pneg %p223
    // Predicated region
    $region9: #{basic_block_forward.1} parent=5 // pred_check
      _
    $region10: #{basic_block_forward.1} parent=5 // pred_check_branch
      %226 = sbr.rel (%p223) target = $region12
    $region11: #{basic_block_forward.1} parent=5 // pred_region
      %s227 = ssub.s32 %s14, 1
      // Predicated region
      $region13: #{basic_block_forward.1} parent=11 // pred_check
        %p228 = pneg %p61
      $region14: #{basic_block_forward.1} parent=11 // pred_check_branch
        %230 = sbr.rel (%p228) target = $region16
      $region15: #{basic_block_forward.1} parent=11 // pred_region
        _
      $region16: #{basic_block_forward.1} parent=11 // pred_fallthru
        _
      // Predicated region
      $region17: #{basic_block_forward.1} parent=11 // pred_check
        %p231 = pneg %p82
      $region18: #{basic_block_forward.1} parent=11 // pred_check_branch
        %233 = sbr.rel (%p231) target = $region20
      $region19: #{basic_block_forward.1} parent=11 // pred_region
        _
      $region20: #{basic_block_forward.1} parent=11 // pred_fallthru
        _
      // Predicated region
      $region21: #{basic_block_forward.1} parent=11 // pred_check
        %p234 = pneg %p103
      $region22: #{basic_block_forward.1} parent=11 // pred_check_branch
        %236 = sbr.rel (%p234) target = $region24
      $region23: #{basic_block_forward.1} parent=11 // pred_region
        _
      $region24: #{basic_block_forward.1} parent=11 // pred_fallthru
        _
      // Predicated region
      $region25: #{basic_block_forward.1} parent=11 // pred_check
        %p237 = pneg %p124
      $region26: #{basic_block_forward.1} parent=11 // pred_check_branch
        %239 = sbr.rel (%p237) target = $region28
      $region27: #{basic_block_forward.1} parent=11 // pred_region
        _
      $region28: #{basic_block_forward.1} parent=11 // pred_fallthru
        _
      // Predicated region
      $region29: #{basic_block_forward.1} parent=11 // pred_check
        %p240 = pneg %p145
      $region30: #{basic_block_forward.1} parent=11 // pred_check_branch
        %242 = sbr.rel (%p240) target = $region32
      $region31: #{basic_block_forward.1} parent=11 // pred_region
        _
      $region32: #{basic_block_forward.1} parent=11 // pred_fallthru
        _
      // Predicated region
      $region33: #{basic_block_forward.1} parent=11 // pred_check
        %p243 = pneg %p166
      $region34: #{basic_block_forward.1} parent=11 // pred_check_branch
        %245 = sbr.rel (%p243) target = $region36
      $region35: #{basic_block_forward.1} parent=11 // pred_region
        _
      $region36: #{basic_block_forward.1} parent=11 // pred_fallthru
        _
      // Predicated region
      $region37: #{basic_block_forward.1} parent=11 // pred_check
        %p246 = pneg %p187
      $region38: #{basic_block_forward.1} parent=11 // pred_check_branch
        %248 = sbr.rel (%p246) target = $region40
      $region39: #{basic_block_forward.1} parent=11 // pred_region
        _
      $region40: #{basic_block_forward.1} parent=11 // pred_fallthru
        _
    $region12: #{basic_block_forward.1} parent=5 // pred_fallthru
      _
    %p249 = scmp.lt.s32.totalorder %s14, 2
    // Predicated region
    $region41: #{basic_block_forward.1} parent=5 // pred_check
      %p250 = pneg %p249
    $region42: #{basic_block_forward.1} parent=5 // pred_check_branch
      %252 = sbr.rel (%p250) target = $region44
    $region43: #{basic_block_forward.1} parent=5 // pred_region
      // Predicated region
      $region45: #{basic_block_forward.1} parent=43 // pred_check
        %p253 = pneg %p34
      $region46: #{basic_block_forward.1} parent=43 // pred_check_branch
        %255 = sbr.rel (%p253) target = $region48
      $region47: #{basic_block_forward.1} parent=43 // pred_region
        %p256 = scmp.lt.s32.totalorder %s14, 1
        %s257 = scalar_select %p256, %s14, 1
        %s258 = smul.addr %s257, 52
        %s259 = smul.addr %s258, 4
        %s260 = scalar_lea.vmem %s0, %s259
      $region48: #{basic_block_forward.1} parent=43 // pred_fallthru
        _
    $region44: #{basic_block_forward.1} parent=5 // pred_fallthru
      _
    %p261 = scmp.le.s32.totalorder 1, %s14
    %p262 = scmp.lt.s32.totalorder %s14, 3
    %p263 = pnand %p261, %p262
    %p264 = pneg %p263
    // Predicated region
    $region49: #{basic_block_forward.1} parent=5 // pred_check
      _
    $region50: #{basic_block_forward.1} parent=5 // pred_check_branch
      %266 = sbr.rel (%p263) target = $region52
    $region51: #{basic_block_forward.1} parent=5 // pred_region
      %s267 = ssub.s32 %s14, 1
      %p268 = scmp.lt.s32.totalorder %s19, 1
      %s269 = scalar_select %p268, %s19, 1
      %s270 = smul.addr %s269, 52
      %s271 = smul.addr %s270, 4
      %s272 = scalar_lea.vmem %s0, %s271
      %p273 = pneg %p40
      %p274 = pneg %p37
      %p275 = pneg %p61
      %p276 = pneg %p58
      %p277 = pneg %p82
      %p278 = pneg %p79
      %p279 = pneg %p103
      %p280 = pneg %p100
      %p281 = pneg %p124
      %p282 = pneg %p121
      %p283 = pneg %p145
      %p284 = pneg %p142
      %p285 = pneg %p166
      %p286 = pneg %p163
      %p287 = pneg %p187
      %p288 = pneg %p184
      %p289 = pneg %p213
      %p290 = pneg %p210
      %p291 = scmp.lt.s32.totalorder %s19, 1
      %s292 = scalar_select %p291, %s19, 1
      %s293 = smul.addr %s292, 10
      %s294 = smul.addr %s293, 4
      %s295 = scalar_lea.vmem %s8, %s294
      %p296 = scmp.lt.s32.totalorder %s19, 1
      %s297 = scalar_select %p296, %s19, 1
      %s298 = smul.addr %s297, 52
      %s299 = smul.addr %s298, 4
      %s300 = scalar_lea.vmem %s0, %s299
      %p301 = scmp.lt.s32.totalorder %s19, 1
      %s302 = scalar_select %p301, %s19, 1
      %s303 = smul.addr %s302, 10
      %s304 = smul.addr %s303, 4
      %s305 = scalar_lea.vmem %s8, %s304
      %307 = vst [vmem:[#allocation2] sm:$0xf] 0
      %308 = vst [vmem:[#allocation2 + $0x4] sm:$0xf] 0
      %309 = vst [vmem:[#allocation2 + $0x8] sm:$0xf] 0
      %310 = vst [vmem:[#allocation2 + $0xc] sm:$0xf] 0
      %311 = vst [vmem:[#allocation2 + $0x10] sm:$0xf] 0
      %312 = vst [vmem:[#allocation2 + $0x14] sm:$0xf] 0
      %313 = vst [vmem:[#allocation2 + $0x18] sm:$0xf] 0
      %314 = vst [vmem:[#allocation2 + $0x1c] sm:$0xf] 0
      %315 = vst [vmem:[#allocation2 + $0x20] sm:$0xf] 0
      %316 = vst [vmem:[#allocation2 + $0x24] sm:$0xf] 0
      %317 = vst [vmem:[#allocation2 + $0x28] sm:$0xf] 0
      %318 = vst [vmem:[#allocation2 + $0x2c] sm:$0xf] 0
      %319 = vst [vmem:[#allocation2 + $0x30] sm:$0xf] 0
      %320 = vst [vmem:[#allocation2 + $0x34] sm:$0xf] 0
      %321 = vst [vmem:[#allocation3] sm:$0xff] 0.0
      %322 = vst [vmem:[#allocation3 + $0x8] sm:$0xff] 0.0
      %323 = vst [vmem:[#allocation3 + $0x10] sm:$0xff] 0.0
      %324 = vst [vmem:[#allocation3 + $0x18] sm:$0xff] 0.0
      %325 = vst [vmem:[#allocation3 + $0x20] sm:$0xff] 0.0
      %326 = vst [vmem:[#allocation3 + $0x28] sm:$0xff] 0.0
      %327 = vst [vmem:[#allocation3 + $0x30] sm:$0xff] 0.0
      %328 = vst [vmem:[#allocation3 + $0x38] sm:$0xff] 0.0
      %329 = vst [vmem:[#allocation3 + $0x40] sm:$0xff] 0.0
      %330 = vst [vmem:[#allocation3 + $0x48] sm:$0xff] 0.0
      %v331 = vld [vmem:[#allocation3] sm:$0xff]
      %v332 = vld [vmem:[#allocation3 + $0x8] sm:$0xff]
      %v333 = vld [vmem:[#allocation3 + $0x10] sm:$0xff]
      %v334 = vld [vmem:[#allocation3 + $0x18] sm:$0xff]
      %v335 = vld [vmem:[#allocation3 + $0x20] sm:$0xff]
      %v336 = vld [vmem:[#allocation3 + $0x28] sm:$0xff]
      %v337 = vld [vmem:[#allocation3 + $0x30] sm:$0xff]
      %v338 = vld [vmem:[#allocation3 + $0x38] sm:$0xff]
      %v339 = vld [vmem:[#allocation3 + $0x40] sm:$0xff]
      %v340 = vld [vmem:[#allocation3 + $0x48] sm:$0xff]
      %v341 = vld [vmem:[%s300] sm:$0xf]
      %v342 = vld [vmem:[%s300 + $0x4] sm:$0xf]
      %v343 = vld [vmem:[%s300 + $0x8] sm:$0xf]
      %v344 = vld [vmem:[%s300 + $0xc] sm:$0xf]
      %v345 = vld [vmem:[%s300 + $0x10] sm:$0xf]
      %v346 = vld [vmem:[%s300 + $0x14] sm:$0xf]
      %v347 = vld [vmem:[%s300 + $0x18] sm:$0xf]
      %v348 = vld [vmem:[%s300 + $0x1c] sm:$0xf]
      %v349 = vld [vmem:[%s300 + $0x20] sm:$0xf]
      %v350 = vld [vmem:[%s300 + $0x24] sm:$0xf]
      %v351 = vld [vmem:[%s1] sm:$0x3]
      %v362 = vunpack.c.l.b16 %v341
      %v363 = vunpack.c.l.b16 %v342
      %v364 = vunpack.c.l.b16 %v343
      %v365 = vunpack.c.l.b16 %v344
      %v366 = vunpack.c.l.b16 %v345
      %v367 = vunpack.c.l.b16 %v346
      %v368 = vunpack.c.l.b16 %v347
      %v369 = vunpack.c.l.b16 %v348
      %v370 = vunpack.c.l.b16 %v349
      %v371 = vunpack.c.l.b16 %v350
      %v372 = vpack.c.b16 %v363, %v362
      %v373 = vpack.c.b16 %v365, %v364
      %v374 = vpack.c.b16 %v367, %v366
      %v375 = vpack.c.b16 %v369, %v368
      %v376 = vpack.c.b16 %v371, %v370
      %vm377 = vcmask 31744
      %v379 = vsel %vm377, %v372, 0
      %v382 = vsel %vm377, %v373, 0
      %v385 = vsel %vm377, %v374, 0
      %v388 = vsel %vm377, %v375, 0
      %v391 = vsel %vm377, %v376, 0
      %vm393 = vcmask 1041408
      %v395 = vsel %vm393, %v351, 0
      %397 = vmatpush.bf16.msra.mxu0 0
      %398 = vmatpush.bf16.msra.mxu0 0
      %399 = vmatpush.bf16.msra.mxu0 0
      %400 = vmatpush.bf16.msra.mxu0 0
      %401 = vmatpush.bf16.msra.mxu0 0
      %402 = vmatpush.bf16.msra.mxu0 0
      %403 = vmatpush.bf16.msra.mxu0 0
      %404 = vmatpush.bf16.msra.mxu0 %v395
      %405 = vmatmul.bf16.gmra.mxu0 %v379
      %v406 = vpop.f32.mrf.mxu0
      %v407 = vadd.f32 0.0, %v406
      %v408 = vpop.f32.mrf.mxu0
      %v409 = vadd.f32 0.0, %v408
      %410 = vmatmul.bf16.gmra.mxu0 %v382
      %v411 = vpop.f32.mrf.mxu0
      %v412 = vadd.f32 0.0, %v411
      %v413 = vpop.f32.mrf.mxu0
      %v414 = vadd.f32 0.0, %v413
      %415 = vmatmul.bf16.gmra.mxu0 %v385
      %v416 = vpop.f32.mrf.mxu0
      %v417 = vadd.f32 0.0, %v416
      %v418 = vpop.f32.mrf.mxu0
      %v419 = vadd.f32 0.0, %v418
      %420 = vmatmul.bf16.gmra.mxu0 %v388
      %v421 = vpop.f32.mrf.mxu0
      %v422 = vadd.f32 0.0, %v421
      %v423 = vpop.f32.mrf.mxu0
      %v424 = vadd.f32 0.0, %v423
      %425 = vmatmul.bf16.gmra.mxu0 %v391
      %v426 = vpop.f32.mrf.mxu0
      %v427 = vadd.f32 0.0, %v426
      %v428 = vpop.f32.mrf.mxu0
      %v429 = vadd.f32 0.0, %v428
      %430 = vdwg.mxu0
      %v431 = vadd.f32 %v331, %v407
      %v432 = vadd.f32 %v332, %v409
      %v433 = vadd.f32 %v333, %v412
      %v434 = vadd.f32 %v334, %v414
      %v435 = vadd.f32 %v335, %v417
      %v436 = vadd.f32 %v336, %v419
      %v437 = vadd.f32 %v337, %v422
      %v438 = vadd.f32 %v338, %v424
      %v439 = vadd.f32 %v339, %v427
      %v440 = vadd.f32 %v340, %v429
      %441 = vst [vmem:[#allocation3] sm:$0xff] %v431
      %442 = vst [vmem:[#allocation3 + $0x8] sm:$0xff] %v432
      %443 = vst [vmem:[#allocation3 + $0x10] sm:$0xff] %v433
      %444 = vst [vmem:[#allocation3 + $0x18] sm:$0xff] %v434
      %445 = vst [vmem:[#allocation3 + $0x20] sm:$0xff] %v435
      %446 = vst [vmem:[#allocation3 + $0x28] sm:$0xff] %v436
      %447 = vst [vmem:[#allocation3 + $0x30] sm:$0xff] %v437
      %448 = vst [vmem:[#allocation3 + $0x38] sm:$0xff] %v438
      %449 = vst [vmem:[#allocation3 + $0x40] sm:$0xff] %v439
      %450 = vst [vmem:[#allocation3 + $0x48] sm:$0xff] %v440
      %v451 = vld [vmem:[#allocation3] sm:$0xff]
      %v452 = vld [vmem:[#allocation3 + $0x8] sm:$0xff]
      %v453 = vld [vmem:[#allocation3 + $0x10] sm:$0xff]
      %v454 = vld [vmem:[#allocation3 + $0x18] sm:$0xff]
      %v455 = vld [vmem:[#allocation3 + $0x20] sm:$0xff]
      %v456 = vld [vmem:[#allocation3 + $0x28] sm:$0xff]
      %v457 = vld [vmem:[#allocation3 + $0x30] sm:$0xff]
      %v458 = vld [vmem:[#allocation3 + $0x38] sm:$0xff]
      %v459 = vld [vmem:[#allocation3 + $0x40] sm:$0xff]
      %v460 = vld [vmem:[#allocation3 + $0x48] sm:$0xff]
      %s461 = scalar_lea.vmem %s300, 52
      %v462 = vld [vmem:[%s461] sm:$0xf]
      %v463 = vld [vmem:[%s461 + $0x4] sm:$0xf]
      %v464 = vld [vmem:[%s461 + $0x8] sm:$0xf]
      %v465 = vld [vmem:[%s461 + $0xc] sm:$0xf]
      %v466 = vld [vmem:[%s461 + $0x10] sm:$0xf]
      %v467 = vld [vmem:[%s461 + $0x14] sm:$0xf]
      %v468 = vld [vmem:[%s461 + $0x18] sm:$0xf]
      %v469 = vld [vmem:[%s461 + $0x1c] sm:$0xf]
      %v470 = vld [vmem:[%s461 + $0x20] sm:$0xf]
      %v471 = vld [vmem:[%s461 + $0x24] sm:$0xf]
      %s472 = scalar_lea.vmem %s1, 2
      %v473 = vld [vmem:[%s472] sm:$0x3]
      %v484 = vunpack.c.l.b16 %v462
      %v485 = vunpack.c.l.b16 %v463
      %v486 = vunpack.c.l.b16 %v464
      %v487 = vunpack.c.l.b16 %v465
      %v488 = vunpack.c.l.b16 %v466
      %v489 = vunpack.c.l.b16 %v467
      %v490 = vunpack.c.l.b16 %v468
      %v491 = vunpack.c.l.b16 %v469
      %v492 = vunpack.c.l.b16 %v470
      %v493 = vunpack.c.l.b16 %v471
      %v494 = vpack.c.b16 %v485, %v484
      %v495 = vpack.c.b16 %v487, %v486
      %v496 = vpack.c.b16 %v489, %v488
      %v497 = vpack.c.b16 %v491, %v490
      %v498 = vpack.c.b16 %v493, %v492
      %v500 = vsel %vm377, %v494, 0
      %v503 = vsel %vm377, %v495, 0
      %v506 = vsel %vm377, %v496, 0
      %v509 = vsel %vm377, %v497, 0
      %v512 = vsel %vm377, %v498, 0
      %v515 = vsel %vm393, %v473, 0
      %517 = vmatpush.bf16.msra.mxu0 0
      %518 = vmatpush.bf16.msra.mxu0 0
      %519 = vmatpush.bf16.msra.mxu0 0
      %520 = vmatpush.bf16.msra.mxu0 0
      %521 = vmatpush.bf16.msra.mxu0 0
      %522 = vmatpush.bf16.msra.mxu0 0
      %523 = vmatpush.bf16.msra.mxu0 0
      %524 = vmatpush.bf16.msra.mxu0 %v515
      %525 = vmatmul.bf16.gmra.mxu0 %v500
      %v526 = vpop.f32.mrf.mxu0
      %v527 = vadd.f32 0.0, %v526
      %v528 = vpop.f32.mrf.mxu0
      %v529 = vadd.f32 0.0, %v528
      %530 = vmatmul.bf16.gmra.mxu0 %v503
      %v531 = vpop.f32.mrf.mxu0
      %v532 = vadd.f32 0.0, %v531
      %v533 = vpop.f32.mrf.mxu0
      %v534 = vadd.f32 0.0, %v533
      %535 = vmatmul.bf16.gmra.mxu0 %v506
      %v536 = vpop.f32.mrf.mxu0
      %v537 = vadd.f32 0.0, %v536
      %v538 = vpop.f32.mrf.mxu0
      %v539 = vadd.f32 0.0, %v538
      %540 = vmatmul.bf16.gmra.mxu0 %v509
      %v541 = vpop.f32.mrf.mxu0
      %v542 = vadd.f32 0.0, %v541
      %v543 = vpop.f32.mrf.mxu0
      %v544 = vadd.f32 0.0, %v543
      %545 = vmatmul.bf16.gmra.mxu0 %v512
      %v546 = vpop.f32.mrf.mxu0
      %v547 = vadd.f32 0.0, %v546
      %v548 = vpop.f32.mrf.mxu0
      %v549 = vadd.f32 0.0, %v548
      %550 = vdwg.mxu0
      %v551 = vadd.f32 %v451, %v527
      %v552 = vadd.f32 %v452, %v529
      %v553 = vadd.f32 %v453, %v532
      %v554 = vadd.f32 %v454, %v534
      %v555 = vadd.f32 %v455, %v537
      %v556 = vadd.f32 %v456, %v539
      %v557 = vadd.f32 %v457, %v542
      %v558 = vadd.f32 %v458, %v544
      %v559 = vadd.f32 %v459, %v547
      %v560 = vadd.f32 %v460, %v549
      %561 = vst [vmem:[#allocation3] sm:$0xff] %v551
      %562 = vst [vmem:[#allocation3 + $0x8] sm:$0xff] %v552
      %563 = vst [vmem:[#allocation3 + $0x10] sm:$0xff] %v553
      %564 = vst [vmem:[#allocation3 + $0x18] sm:$0xff] %v554
      %565 = vst [vmem:[#allocation3 + $0x20] sm:$0xff] %v555
      %566 = vst [vmem:[#allocation3 + $0x28] sm:$0xff] %v556
      %567 = vst [vmem:[#allocation3 + $0x30] sm:$0xff] %v557
      %568 = vst [vmem:[#allocation3 + $0x38] sm:$0xff] %v558
      %569 = vst [vmem:[#allocation3 + $0x40] sm:$0xff] %v559
      %570 = vst [vmem:[#allocation3 + $0x48] sm:$0xff] %v560
      %v571 = vld [vmem:[#allocation3] sm:$0xff]
      %v572 = vld [vmem:[#allocation3 + $0x8] sm:$0xff]
      %v573 = vld [vmem:[#allocation3 + $0x10] sm:$0xff]
      %v574 = vld [vmem:[#allocation3 + $0x18] sm:$0xff]
      %v575 = vld [vmem:[#allocation3 + $0x20] sm:$0xff]
      %v576 = vld [vmem:[#allocation3 + $0x28] sm:$0xff]
      %v577 = vld [vmem:[#allocation3 + $0x30] sm:$0xff]
      %v578 = vld [vmem:[#allocation3 + $0x38] sm:$0xff]
      %v579 = vld [vmem:[#allocation3 + $0x40] sm:$0xff]
      %v580 = vld [vmem:[#allocation3 + $0x48] sm:$0xff]
      %v581 = vld [vmem:[%s300] sm:$0xf]
      %v582 = vld [vmem:[%s300 + $0x4] sm:$0xf]
      %v583 = vld [vmem:[%s300 + $0x8] sm:$0xf]
      %v584 = vld [vmem:[%s300 + $0xc] sm:$0xf]
      %v585 = vld [vmem:[%s300 + $0x10] sm:$0xf]
      %v586 = vld [vmem:[%s300 + $0x14] sm:$0xf]
      %v587 = vld [vmem:[%s300 + $0x18] sm:$0xf]
      %v588 = vld [vmem:[%s300 + $0x1c] sm:$0xf]
      %v589 = vld [vmem:[%s300 + $0x20] sm:$0xf]
      %v590 = vld [vmem:[%s300 + $0x24] sm:$0xf]
      %v591 = vld [vmem:[%s300 + $0x28] sm:$0x1]
      %s592 = scalar_lea.vmem %s1, 4
      %v593 = vld [vmem:[%s592] sm:$0x3]
      %v605 = vunpack.c.l.b16 %v581
      %v606 = vunpack.c.l.b16 %v582
      %v607 = vunpack.c.l.b16 %v583
      %v608 = vunpack.c.l.b16 %v584
      %v609 = vunpack.c.l.b16 %v585
      %v610 = vunpack.c.l.b16 %v586
      %v611 = vunpack.c.l.b16 %v587
      %v612 = vunpack.c.l.b16 %v588
      %v613 = vunpack.c.l.b16 %v589
      %v614 = vunpack.c.l.b16 %v590
      %v615 = vunpack.c.l.b16 %v591
      %v616 = vpack.c.b16 %v606, %v605
      %v617 = vpack.c.b16 %v608, %v607
      %v618 = vpack.c.b16 %v610, %v609
      %v619 = vpack.c.b16 %v612, %v611
      %v620 = vpack.c.b16 %v614, %v613
      %v621 = vpack.c.b16 %v615, %v615
      %vm622 = vsmask.f32 7424
      %v624 = vshrl.u32 %v616, 16
      %v626 = vshll.u32 %v616, 16
      %v628 = vrot.slane %v626, 1
      %v629 = vor.u32 %v624, %v628
      %v631 = vshll.u32 %v617, 16
      %v633 = vrot.slane %v631, 1
      %v634 = vsel %vm622, %v629, %v633
      %v635 = vshrl.u32 %v617, 16
      %v637 = vor.u32 %v635, %v633
      %v639 = vshll.u32 %v618, 16
      %v641 = vrot.slane %v639, 1
      %v642 = vsel %vm622, %v637, %v641
      %v643 = vshrl.u32 %v618, 16
      %v645 = vor.u32 %v643, %v641
      %v647 = vshll.u32 %v619, 16
      %v649 = vrot.slane %v647, 1
      %v650 = vsel %vm622, %v645, %v649
      %v651 = vshrl.u32 %v619, 16
      %v653 = vor.u32 %v651, %v649
      %v655 = vshll.u32 %v620, 16
      %v657 = vrot.slane %v655, 1
      %v658 = vsel %vm622, %v653, %v657
      %v659 = vshrl.u32 %v620, 16
      %v661 = vor.u32 %v659, %v657
      %v663 = vshll.u32 %v621, 16
      %v665 = vrot.slane %v663, 1
      %v666 = vsel %vm622, %v661, %v665
      %v668 = vsel %vm377, %v634, 0
      %v671 = vsel %vm377, %v642, 0
      %v674 = vsel %vm377, %v650, 0
      %v677 = vsel %vm377, %v658, 0
      %v680 = vsel %vm377, %v666, 0
      %v683 = vsel %vm393, %v593, 0
      %685 = vmatpush.bf16.msra.mxu0 0
      %686 = vmatpush.bf16.msra.mxu0 0
      %687 = vmatpush.bf16.msra.mxu0 0
      %688 = vmatpush.bf16.msra.mxu0 0
      %689 = vmatpush.bf16.msra.mxu0 0
      %690 = vmatpush.bf16.msra.mxu0 0
      %691 = vmatpush.bf16.msra.mxu0 0
      %692 = vmatpush.bf16.msra.mxu0 %v683
      %693 = vmatmul.bf16.gmra.mxu0 %v668
      %v694 = vpop.f32.mrf.mxu0
      %v695 = vadd.f32 0.0, %v694
      %v696 = vpop.f32.mrf.mxu0
      %v697 = vadd.f32 0.0, %v696
      %698 = vmatmul.bf16.gmra.mxu0 %v671
      %v699 = vpop.f32.mrf.mxu0
      %v700 = vadd.f32 0.0, %v699
      %v701 = vpop.f32.mrf.mxu0
      %v702 = vadd.f32 0.0, %v701
      %703 = vmatmul.bf16.gmra.mxu0 %v674
      %v704 = vpop.f32.mrf.mxu0
      %v705 = vadd.f32 0.0, %v704
      %v706 = vpop.f32.mrf.mxu0
      %v707 = vadd.f32 0.0, %v706
      %708 = vmatmul.bf16.gmra.mxu0 %v677
      %v709 = vpop.f32.mrf.mxu0
      %v710 = vadd.f32 0.0, %v709
      %v711 = vpop.f32.mrf.mxu0
      %v712 = vadd.f32 0.0, %v711
      %713 = vmatmul.bf16.gmra.mxu0 %v680
      %v714 = vpop.f32.mrf.mxu0
      %v715 = vadd.f32 0.0, %v714
      %v716 = vpop.f32.mrf.mxu0
      %v717 = vadd.f32 0.0, %v716
      %718 = vdwg.mxu0
      %v719 = vadd.f32 %v571, %v695
      %v720 = vadd.f32 %v572, %v697
      %v721 = vadd.f32 %v573, %v700
      %v722 = vadd.f32 %v574, %v702
      %v723 = vadd.f32 %v575, %v705
      %v724 = vadd.f32 %v576, %v707
      %v725 = vadd.f32 %v577, %v710
      %v726 = vadd.f32 %v578, %v712
      %v727 = vadd.f32 %v579, %v715
      %v728 = vadd.f32 %v580, %v717
      %729 = vst [vmem:[#allocation3] sm:$0xff] %v719
      %730 = vst [vmem:[#allocation3 + $0x8] sm:$0xff] %v720
      %731 = vst [vmem:[#allocation3 + $0x10] sm:$0xff] %v721
      %732 = vst [vmem:[#allocation3 + $0x18] sm:$0xff] %v722
      %733 = vst [vmem:[#allocation3 + $0x20] sm:$0xff] %v723
      %734 = vst [vmem:[#allocation3 + $0x28] sm:$0xff] %v724
      %735 = vst [vmem:[#allocation3 + $0x30] sm:$0xff] %v725
      %736 = vst [vmem:[#allocation3 + $0x38] sm:$0xff] %v726
      %737 = vst [vmem:[#allocation3 + $0x40] sm:$0xff] %v727
      %738 = vst [vmem:[#allocation3 + $0x48] sm:$0xff] %v728
      %v739 = vld [vmem:[#allocation3] sm:$0xff]
      %v740 = vld [vmem:[#allocation3 + $0x8] sm:$0xff]
      %v741 = vld [vmem:[#allocation3 + $0x10] sm:$0xff]
      %v742 = vld [vmem:[#allocation3 + $0x18] sm:$0xff]
      %v743 = vld [vmem:[#allocation3 + $0x20] sm:$0xff]
      %v744 = vld [vmem:[#allocation3 + $0x28] sm:$0xff]
      %v745 = vld [vmem:[#allocation3 + $0x30] sm:$0xff]
      %v746 = vld [vmem:[#allocation3 + $0x38] sm:$0xff]
      %v747 = vld [vmem:[#allocation3 + $0x40] sm:$0xff]
      %v748 = vld [vmem:[#allocation3 + $0x48] sm:$0xff]
      %s749 = scalar_lea.vmem %s300, 104
      %v750 = vld [vmem:[%s749] sm:$0xf]
      %v751 = vld [vmem:[%s749 + $0x4] sm:$0xf]
      %v752 = vld [vmem:[%s749 + $0x8] sm:$0xf]
      %v753 = vld [vmem:[%s749 + $0xc] sm:$0xf]
      %v754 = vld [vmem:[%s749 + $0x10] sm:$0xf]
      %v755 = vld [vmem:[%s749 + $0x14] sm:$0xf]
      %v756 = vld [vmem:[%s749 + $0x18] sm:$0xf]
      %v757 = vld [vmem:[%s749 + $0x1c] sm:$0xf]
      %v758 = vld [vmem:[%s749 + $0x20] sm:$0xf]
      %v759 = vld [vmem:[%s749 + $0x24] sm:$0xf]
      %s760 = scalar_lea.vmem %s1, 6
      %v761 = vld [vmem:[%s760] sm:$0x3]
      %v772 = vunpack.c.l.b16 %v750
      %v773 = vunpack.c.l.b16 %v751
      %v774 = vunpack.c.l.b16 %v752
      %v775 = vunpack.c.l.b16 %v753
      %v776 = vunpack.c.l.b16 %v754
      %v777 = vunpack.c.l.b16 %v755
      %v778 = vunpack.c.l.b16 %v756
      %v779 = vunpack.c.l.b16 %v757
      %v780 = vunpack.c.l.b16 %v758
      %v781 = vunpack.c.l.b16 %v759
      %v782 = vpack.c.b16 %v773, %v772
      %v783 = vpack.c.b16 %v775, %v774
      %v784 = vpack.c.b16 %v777, %v776
      %v785 = vpack.c.b16 %v779, %v778
      %v786 = vpack.c.b16 %v781, %v780
      %v788 = vsel %vm377, %v782, 0
      %v791 = vsel %vm377, %v783, 0
      %v794 = vsel %vm377, %v784, 0
      %v797 = vsel %vm377, %v785, 0
      %v800 = vsel %vm377, %v786, 0
      %v803 = vsel %vm393, %v761, 0
      %805 = vmatpush.bf16.msra.mxu0 0
      %806 = vmatpush.bf16.msra.mxu0 0
      %807 = vmatpush.bf16.msra.mxu0 0
      %808 = vmatpush.bf16.msra.mxu0 0
      %809 = vmatpush.bf16.msra.mxu0 0
      %810 = vmatpush.bf16.msra.mxu0 0
      %811 = vmatpush.bf16.msra.mxu0 0
      %812 = vmatpush.bf16.msra.mxu0 %v803
      %813 = vmatmul.bf16.gmra.mxu0 %v788
      %v814 = vpop.f32.mrf.mxu0
      %v815 = vadd.f32 0.0, %v814
      %v816 = vpop.f32.mrf.mxu0
      %v817 = vadd.f32 0.0, %v816
      %818 = vmatmul.bf16.gmra.mxu0 %v791
      %v819 = vpop.f32.mrf.mxu0
      %v820 = vadd.f32 0.0, %v819
      %v821 = vpop.f32.mrf.mxu0
      %v822 = vadd.f32 0.0, %v821
      %823 = vmatmul.bf16.gmra.mxu0 %v794
      %v824 = vpop.f32.mrf.mxu0
      %v825 = vadd.f32 0.0, %v824
      %v826 = vpop.f32.mrf.mxu0
      %v827 = vadd.f32 0.0, %v826
      %828 = vmatmul.bf16.gmra.mxu0 %v797
      %v829 = vpop.f32.mrf.mxu0
      %v830 = vadd.f32 0.0, %v829
      %v831 = vpop.f32.mrf.mxu0
      %v832 = vadd.f32 0.0, %v831
      %833 = vmatmul.bf16.gmra.mxu0 %v800
      %v834 = vpop.f32.mrf.mxu0
      %v835 = vadd.f32 0.0, %v834
      %v836 = vpop.f32.mrf.mxu0
      %v837 = vadd.f32 0.0, %v836
      %838 = vdwg.mxu0
      %v839 = vadd.f32 %v739, %v815
      %v840 = vadd.f32 %v740, %v817
      %v841 = vadd.f32 %v741, %v820
      %v842 = vadd.f32 %v742, %v822
      %v843 = vadd.f32 %v743, %v825
      %v844 = vadd.f32 %v744, %v827
      %v845 = vadd.f32 %v745, %v830
      %v846 = vadd.f32 %v746, %v832
      %v847 = vadd.f32 %v747, %v835
      %v848 = vadd.f32 %v748, %v837
      %849 = vst [vmem:[#allocation3] sm:$0xff] %v839
      %850 = vst [vmem:[#allocation3 + $0x8] sm:$0xff] %v840
      %851 = vst [vmem:[#allocation3 + $0x10] sm:$0xff] %v841
      %852 = vst [vmem:[#allocation3 + $0x18] sm:$0xff] %v842
      %853 = vst [vmem:[#allocation3 + $0x20] sm:$0xff] %v843
      %854 = vst [vmem:[#allocation3 + $0x28] sm:$0xff] %v844
      %855 = vst [vmem:[#allocation3 + $0x30] sm:$0xff] %v845
      %856 = vst [vmem:[#allocation3 + $0x38] sm:$0xff] %v846
      %857 = vst [vmem:[#allocation3 + $0x40] sm:$0xff] %v847
      %858 = vst [vmem:[#allocation3 + $0x48] sm:$0xff] %v848
      %v859 = vld [vmem:[#allocation3] sm:$0xff]
      %v860 = vld [vmem:[#allocation3 + $0x8] sm:$0xff]
      %v861 = vld [vmem:[#allocation3 + $0x10] sm:$0xff]
      %v862 = vld [vmem:[#allocation3 + $0x18] sm:$0xff]
      %v863 = vld [vmem:[#allocation3 + $0x20] sm:$0xff]
      %v864 = vld [vmem:[#allocation3 + $0x28] sm:$0xff]
      %v865 = vld [vmem:[#allocation3 + $0x30] sm:$0xff]
      %v866 = vld [vmem:[#allocation3 + $0x38] sm:$0xff]
      %v867 = vld [vmem:[#allocation3 + $0x40] sm:$0xff]
      %v868 = vld [vmem:[#allocation3 + $0x48] sm:$0xff]
      %s869 = scalar_lea.vmem %s300, 156
      %v870 = vld [vmem:[%s869] sm:$0xf]
      %v871 = vld [vmem:[%s869 + $0x4] sm:$0xf]
      %v872 = vld [vmem:[%s869 + $0x8] sm:$0xf]
      %v873 = vld [vmem:[%s869 + $0xc] sm:$0xf]
      %v874 = vld [vmem:[%s869 + $0x10] sm:$0xf]
      %v875 = vld [vmem:[%s869 + $0x14] sm:$0xf]
      %v876 = vld [vmem:[%s869 + $0x18] sm:$0xf]
      %v877 = vld [vmem:[%s869 + $0x1c] sm:$0xf]
      %v878 = vld [vmem:[%s869 + $0x20] sm:$0xf]
      %v879 = vld [vmem:[%s869 + $0x24] sm:$0xf]
      %s880 = scalar_lea.vmem %s1, 8
      %v881 = vld [vmem:[%s880] sm:$0x3]
      %v892 = vunpack.c.l.b16 %v870
      %v893 = vunpack.c.l.b16 %v871
      %v894 = vunpack.c.l.b16 %v872
      %v895 = vunpack.c.l.b16 %v873
      %v896 = vunpack.c.l.b16 %v874
      %v897 = vunpack.c.l.b16 %v875
      %v898 = vunpack.c.l.b16 %v876
      %v899 = vunpack.c.l.b16 %v877
      %v900 = vunpack.c.l.b16 %v878
      %v901 = vunpack.c.l.b16 %v879
      %v902 = vpack.c.b16 %v893, %v892
      %v903 = vpack.c.b16 %v895, %v894
      %v904 = vpack.c.b16 %v897, %v896
      %v905 = vpack.c.b16 %v899, %v898
      %v906 = vpack.c.b16 %v901, %v900
      %v908 = vsel %vm377, %v902, 0
      %v911 = vsel %vm377, %v903, 0
      %v914 = vsel %vm377, %v904, 0
      %v917 = vsel %vm377, %v905, 0
      %v920 = vsel %vm377, %v906, 0
      %v923 = vsel %vm393, %v881, 0
      %925 = vmatpush.bf16.msra.mxu0 0
      %926 = vmatpush.bf16.msra.mxu0 0
      %927 = vmatpush.bf16.msra.mxu0 0
      %928 = vmatpush.bf16.msra.mxu0 0
      %929 = vmatpush.bf16.msra.mxu0 0
      %930 = vmatpush.bf16.msra.mxu0 0
      %931 = vmatpush.bf16.msra.mxu0 0
      %932 = vmatpush.bf16.msra.mxu0 %v923
      %933 = vmatmul.bf16.gmra.mxu0 %v908
      %v934 = vpop.f32.mrf.mxu0
      %v935 = vadd.f32 0.0, %v934
      %v936 = vpop.f32.mrf.mxu0
      %v937 = vadd.f32 0.0, %v936
      %938 = vmatmul.bf16.gmra.mxu0 %v911
      %v939 = vpop.f32.mrf.mxu0
      %v940 = vadd.f32 0.0, %v939
      %v941 = vpop.f32.mrf.mxu0
      %v942 = vadd.f32 0.0, %v941
      %943 = vmatmul.bf16.gmra.mxu0 %v914
      %v944 = vpop.f32.mrf.mxu0
      %v945 = vadd.f32 0.0, %v944
      %v946 = vpop.f32.mrf.mxu0
      %v947 = vadd.f32 0.0, %v946
      %948 = vmatmul.bf16.gmra.mxu0 %v917
      %v949 = vpop.f32.mrf.mxu0
      %v950 = vadd.f32 0.0, %v949
      %v951 = vpop.f32.mrf.mxu0
      %v952 = vadd.f32 0.0, %v951
      %953 = vmatmul.bf16.gmra.mxu0 %v920
      %v954 = vpop.f32.mrf.mxu0
      %v955 = vadd.f32 0.0, %v954
      %v956 = vpop.f32.mrf.mxu0
      %v957 = vadd.f32 0.0, %v956
      %958 = vdwg.mxu0
      %v959 = vadd.f32 %v859, %v935
      %v960 = vadd.f32 %v860, %v937
      %v961 = vadd.f32 %v861, %v940
      %v962 = vadd.f32 %v862, %v942
      %v963 = vadd.f32 %v863, %v945
      %v964 = vadd.f32 %v864, %v947
      %v965 = vadd.f32 %v865, %v950
      %v966 = vadd.f32 %v866, %v952
      %v967 = vadd.f32 %v867, %v955
      %v968 = vadd.f32 %v868, %v957
      %969 = vst [vmem:[#allocation3] sm:$0xff] %v959
      %970 = vst [vmem:[#allocation3 + $0x8] sm:$0xff] %v960
      %971 = vst [vmem:[#allocation3 + $0x10] sm:$0xff] %v961
      %972 = vst [vmem:[#allocation3 + $0x18] sm:$0xff] %v962
      %973 = vst [vmem:[#allocation3 + $0x20] sm:$0xff] %v963
      %974 = vst [vmem:[#allocation3 + $0x28] sm:$0xff] %v964
      %975 = vst [vmem:[#allocation3 + $0x30] sm:$0xff] %v965
      %976 = vst [vmem:[#allocation3 + $0x38] sm:$0xff] %v966
      %977 = vst [vmem:[#allocation3 + $0x40] sm:$0xff] %v967
      %978 = vst [vmem:[#allocation3 + $0x48] sm:$0xff] %v968
      %v979 = vld [vmem:[#allocation3] sm:$0xff]
      %v980 = vld [vmem:[#allocation3 + $0x8] sm:$0xff]
      %v981 = vld [vmem:[#allocation3 + $0x10] sm:$0xff]
      %v982 = vld [vmem:[#allocation3 + $0x18] sm:$0xff]
      %v983 = vld [vmem:[#allocation3 + $0x20] sm:$0xff]
      %v984 = vld [vmem:[#allocation3 + $0x28] sm:$0xff]
      %v985 = vld [vmem:[#allocation3 + $0x30] sm:$0xff]
      %v986 = vld [vmem:[#allocation3 + $0x38] sm:$0xff]
      %v987 = vld [vmem:[#allocation3 + $0x40] sm:$0xff]
      %v988 = vld [vmem:[#allocation3 + $0x48] sm:$0xff]
      %v989 = vld [vmem:[%s749] sm:$0xf]
      %v990 = vld [vmem:[%s749 + $0x4] sm:$0xf]
      %v991 = vld [vmem:[%s749 + $0x8] sm:$0xf]
      %v992 = vld [vmem:[%s749 + $0xc] sm:$0xf]
      %v993 = vld [vmem:[%s749 + $0x10] sm:$0xf]
      %v994 = vld [vmem:[%s749 + $0x14] sm:$0xf]
      %v995 = vld [vmem:[%s749 + $0x18] sm:$0xf]
      %v996 = vld [vmem:[%s749 + $0x1c] sm:$0xf]
      %v997 = vld [vmem:[%s749 + $0x20] sm:$0xf]
      %v998 = vld [vmem:[%s749 + $0x24] sm:$0xf]
      %v999 = vld [vmem:[%s749 + $0x28] sm:$0x1]
      %s1000 = scalar_lea.vmem %s1, 10
      %v1001 = vld [vmem:[%s1000] sm:$0x3]
      %v1013 = vunpack.c.l.b16 %v989
      %v1014 = vunpack.c.l.b16 %v990
      %v1015 = vunpack.c.l.b16 %v991
      %v1016 = vunpack.c.l.b16 %v992
      %v1017 = vunpack.c.l.b16 %v993
      %v1018 = vunpack.c.l.b16 %v994
      %v1019 = vunpack.c.l.b16 %v995
      %v1020 = vunpack.c.l.b16 %v996
      %v1021 = vunpack.c.l.b16 %v997
      %v1022 = vunpack.c.l.b16 %v998
      %v1023 = vunpack.c.l.b16 %v999
      %v1024 = vpack.c.b16 %v1014, %v1013
      %v1025 = vpack.c.b16 %v1016, %v1015
      %v1026 = vpack.c.b16 %v1018, %v1017
      %v1027 = vpack.c.b16 %v1020, %v1019
      %v1028 = vpack.c.b16 %v1022, %v1021
      %v1029 = vpack.c.b16 %v1023, %v1023
      %v1031 = vshrl.u32 %v1024, 16
      %v1033 = vshll.u32 %v1024, 16
      %v1035 = vrot.slane %v1033, 1
      %v1036 = vor.u32 %v1031, %v1035
      %v1038 = vshll.u32 %v1025, 16
      %v1040 = vrot.slane %v1038, 1
      %v1041 = vsel %vm622, %v1036, %v1040
      %v1042 = vshrl.u32 %v1025, 16
      %v1044 = vor.u32 %v1042, %v1040
      %v1046 = vshll.u32 %v1026, 16
      %v1048 = vrot.slane %v1046, 1
      %v1049 = vsel %vm622, %v1044, %v1048
      %v1050 = vshrl.u32 %v1026, 16
      %v1052 = vor.u32 %v1050, %v1048
      %v1054 = vshll.u32 %v1027, 16
      %v1056 = vrot.slane %v1054, 1
      %v1057 = vsel %vm622, %v1052, %v1056
      %v1058 = vshrl.u32 %v1027, 16
      %v1060 = vor.u32 %v1058, %v1056
      %v1062 = vshll.u32 %v1028, 16
      %v1064 = vrot.slane %v1062, 1
      %v1065 = vsel %vm622, %v1060, %v1064
      %v1066 = vshrl.u32 %v1028, 16
      %v1068 = vor.u32 %v1066, %v1064
      %v1070 = vshll.u32 %v1029, 16
      %v1072 = vrot.slane %v1070, 1
      %v1073 = vsel %vm622, %v1068, %v1072
      %v1075 = vsel %vm377, %v1041, 0
      %v1078 = vsel %vm377, %v1049, 0
      %v1081 = vsel %vm377, %v1057, 0
      %v1084 = vsel %vm377, %v1065, 0
      %v1087 = vsel %vm377, %v1073, 0
      %v1090 = vsel %vm393, %v1001, 0
      %1092 = vmatpush.bf16.msra.mxu0 0
      %1093 = vmatpush.bf16.msra.mxu0 0
      %1094 = vmatpush.bf16.msra.mxu0 0
      %1095 = vmatpush.bf16.msra.mxu0 0
      %1096 = vmatpush.bf16.msra.mxu0 0
      %1097 = vmatpush.bf16.msra.mxu0 0
      %1098 = vmatpush.bf16.msra.mxu0 0
      %1099 = vmatpush.bf16.msra.mxu0 %v1090
      %1100 = vmatmul.bf16.gmra.mxu0 %v1075
      %v1101 = vpop.f32.mrf.mxu0
      %v1102 = vadd.f32 0.0, %v1101
      %v1103 = vpop.f32.mrf.mxu0
      %v1104 = vadd.f32 0.0, %v1103
      %1105 = vmatmul.bf16.gmra.mxu0 %v1078
      %v1106 = vpop.f32.mrf.mxu0
      %v1107 = vadd.f32 0.0, %v1106
      %v1108 = vpop.f32.mrf.mxu0
      %v1109 = vadd.f32 0.0, %v1108
      %1110 = vmatmul.bf16.gmra.mxu0 %v1081
      %v1111 = vpop.f32.mrf.mxu0
      %v1112 = vadd.f32 0.0, %v1111
      %v1113 = vpop.f32.mrf.mxu0
      %v1114 = vadd.f32 0.0, %v1113
      %1115 = vmatmul.bf16.gmra.mxu0 %v1084
      %v1116 = vpop.f32.mrf.mxu0
      %v1117 = vadd.f32 0.0, %v1116
      %v1118 = vpop.f32.mrf.mxu0
      %v1119 = vadd.f32 0.0, %v1118
      %1120 = vmatmul.bf16.gmra.mxu0 %v1087
      %v1121 = vpop.f32.mrf.mxu0
      %v1122 = vadd.f32 0.0, %v1121
      %v1123 = vpop.f32.mrf.mxu0
      %v1124 = vadd.f32 0.0, %v1123
      %1125 = vdwg.mxu0
      %v1126 = vadd.f32 %v979, %v1102
      %v1127 = vadd.f32 %v980, %v1104
      %v1128 = vadd.f32 %v981, %v1107
      %v1129 = vadd.f32 %v982, %v1109
      %v1130 = vadd.f32 %v983, %v1112
      %v1131 = vadd.f32 %v984, %v1114
      %v1132 = vadd.f32 %v985, %v1117
      %v1133 = vadd.f32 %v986, %v1119
      %v1134 = vadd.f32 %v987, %v1122
      %v1135 = vadd.f32 %v988, %v1124
      %1136 = vst [vmem:[#allocation3] sm:$0xff] %v1126
      %1137 = vst [vmem:[#allocation3 + $0x8] sm:$0xff] %v1127
      %1138 = vst [vmem:[#allocation3 + $0x10] sm:$0xff] %v1128
      %1139 = vst [vmem:[#allocation3 + $0x18] sm:$0xff] %v1129
      %1140 = vst [vmem:[#allocation3 + $0x20] sm:$0xff] %v1130
      %1141 = vst [vmem:[#allocation3 + $0x28] sm:$0xff] %v1131
      %1142 = vst [vmem:[#allocation3 + $0x30] sm:$0xff] %v1132
      %1143 = vst [vmem:[#allocation3 + $0x38] sm:$0xff] %v1133
      %1144 = vst [vmem:[#allocation3 + $0x40] sm:$0xff] %v1134
      %1145 = vst [vmem:[#allocation3 + $0x48] sm:$0xff] %v1135
      %v1146 = vld [vmem:[#allocation3] sm:$0xff]
      %v1147 = vld [vmem:[#allocation3 + $0x8] sm:$0xff]
      %v1148 = vld [vmem:[#allocation3 + $0x10] sm:$0xff]
      %v1149 = vld [vmem:[#allocation3 + $0x18] sm:$0xff]
      %v1150 = vld [vmem:[#allocation3 + $0x20] sm:$0xff]
      %v1151 = vld [vmem:[#allocation3 + $0x28] sm:$0xff]
      %v1152 = vld [vmem:[#allocation3 + $0x30] sm:$0xff]
      %v1153 = vld [vmem:[#allocation3 + $0x38] sm:$0xff]
      %v1154 = vld [vmem:[#allocation3 + $0x40] sm:$0xff]
      %v1155 = vld [vmem:[#allocation3 + $0x48] sm:$0xff]
      %v1156 = vld [vmem:[%s300 + $0x4] sm:$0xe]
      %v1157 = vld [vmem:[%s300 + $0x8] sm:$0xf]
      %v1158 = vld [vmem:[%s300 + $0xc] sm:$0xf]
      %v1159 = vld [vmem:[%s300 + $0x10] sm:$0xf]
      %v1160 = vld [vmem:[%s300 + $0x14] sm:$0xf]
      %v1161 = vld [vmem:[%s300 + $0x18] sm:$0xf]
      %v1162 = vld [vmem:[%s300 + $0x1c] sm:$0xf]
      %v1163 = vld [vmem:[%s300 + $0x20] sm:$0xf]
      %v1164 = vld [vmem:[%s300 + $0x24] sm:$0xf]
      %v1165 = vld [vmem:[%s300 + $0x28] sm:$0xf]
      %v1166 = vld [vmem:[%s300 + $0x2c] sm:$0x1]
      %s1167 = scalar_lea.vmem %s1, 12
      %v1168 = vld [vmem:[%s1167] sm:$0x3]
      %v1180 = vunpack.c.l.b16 %v1156
      %v1181 = vunpack.c.l.b16 %v1157
      %v1182 = vunpack.c.l.b16 %v1158
      %v1183 = vunpack.c.l.b16 %v1159
      %v1184 = vunpack.c.l.b16 %v1160
      %v1185 = vunpack.c.l.b16 %v1161
      %v1186 = vunpack.c.l.b16 %v1162
      %v1187 = vunpack.c.l.b16 %v1163
      %v1188 = vunpack.c.l.b16 %v1164
      %v1189 = vunpack.c.l.b16 %v1165
      %v1190 = vunpack.c.l.b16 %v1166
      %v1191 = vpack.c.b16 %v1181, %v1180
      %v1192 = vpack.c.b16 %v1183, %v1182
      %v1193 = vpack.c.b16 %v1185, %v1184
      %v1194 = vpack.c.b16 %v1187, %v1186
      %v1195 = vpack.c.b16 %v1189, %v1188
      %v1196 = vpack.c.b16 %v1190, %v1190
      %vm1197 = vcmask 1046528
      %v1198 = vrot.slane %v1191, 1
      %v1199 = vrot.slane %v1192, 1
      %v1200 = vsel %vm1197, %v1198, %v1199
      %v1201 = vrot.slane %v1193, 1
      %v1202 = vsel %vm1197, %v1199, %v1201
      %v1203 = vrot.slane %v1194, 1
      %v1204 = vsel %vm1197, %v1201, %v1203
      %v1205 = vrot.slane %v1195, 1
      %v1206 = vsel %vm1197, %v1203, %v1205
      %v1207 = vrot.slane %v1196, 1
      %v1208 = vsel %vm1197, %v1205, %v1207
      %v1210 = vsel %vm377, %v1200, 0
      %v1213 = vsel %vm377, %v1202, 0
      %v1216 = vsel %vm377, %v1204, 0
      %v1219 = vsel %vm377, %v1206, 0
      %v1222 = vsel %vm377, %v1208, 0
      %v1225 = vsel %vm393, %v1168, 0
      %1227 = vmatpush.bf16.msra.mxu0 0
      %1228 = vmatpush.bf16.msra.mxu0 0
      %1229 = vmatpush.bf16.msra.mxu0 0
      %1230 = vmatpush.bf16.msra.mxu0 0
      %1231 = vmatpush.bf16.msra.mxu0 0
      %1232 = vmatpush.bf16.msra.mxu0 0
      %1233 = vmatpush.bf16.msra.mxu0 0
      %1234 = vmatpush.bf16.msra.mxu0 %v1225
      %1235 = vmatmul.bf16.gmra.mxu0 %v1210
      %v1236 = vpop.f32.mrf.mxu0
      %v1237 = vadd.f32 0.0, %v1236
      %v1238 = vpop.f32.mrf.mxu0
      %v1239 = vadd.f32 0.0, %v1238
      %1240 = vmatmul.bf16.gmra.mxu0 %v1213
      %v1241 = vpop.f32.mrf.mxu0
      %v1242 = vadd.f32 0.0, %v1241
      %v1243 = vpop.f32.mrf.mxu0
      %v1244 = vadd.f32 0.0, %v1243
      %1245 = vmatmul.bf16.gmra.mxu0 %v1216
      %v1246 = vpop.f32.mrf.mxu0
      %v1247 = vadd.f32 0.0, %v1246
      %v1248 = vpop.f32.mrf.mxu0
      %v1249 = vadd.f32 0.0, %v1248
      %1250 = vmatmul.bf16.gmra.mxu0 %v1219
      %v1251 = vpop.f32.mrf.mxu0
      %v1252 = vadd.f32 0.0, %v1251
      %v1253 = vpop.f32.mrf.mxu0
      %v1254 = vadd.f32 0.0, %v1253
      %1255 = vmatmul.bf16.gmra.mxu0 %v1222
      %v1256 = vpop.f32.mrf.mxu0
      %v1257 = vadd.f32 0.0, %v1256
      %v1258 = vpop.f32.mrf.mxu0
      %v1259 = vadd.f32 0.0, %v1258
      %1260 = vdwg.mxu0
      %v1261 = vadd.f32 %v1146, %v1237
      %v1262 = vadd.f32 %v1147, %v1239
      %v1263 = vadd.f32 %v1148, %v1242
      %v1264 = vadd.f32 %v1149, %v1244
      %v1265 = vadd.f32 %v1150, %v1247
      %v1266 = vadd.f32 %v1151, %v1249
      %v1267 = vadd.f32 %v1152, %v1252
      %v1268 = vadd.f32 %v1153, %v1254
      %v1269 = vadd.f32 %v1154, %v1257
      %v1270 = vadd.f32 %v1155, %v1259
      %1271 = vst [vmem:[#allocation3] sm:$0xff] %v1261
      %1272 = vst [vmem:[#allocation3 + $0x8] sm:$0xff] %v1262
      %1273 = vst [vmem:[#allocation3 + $0x10] sm:$0xff] %v1263
      %1274 = vst [vmem:[#allocation3 + $0x18] sm:$0xff] %v1264
      %1275 = vst [vmem:[#allocation3 + $0x20] sm:$0xff] %v1265
      %1276 = vst [vmem:[#allocation3 + $0x28] sm:$0xff] %v1266
      %1277 = vst [vmem:[#allocation3 + $0x30] sm:$0xff] %v1267
      %1278 = vst [vmem:[#allocation3 + $0x38] sm:$0xff] %v1268
      %1279 = vst [vmem:[#allocation3 + $0x40] sm:$0xff] %v1269
      %1280 = vst [vmem:[#allocation3 + $0x48] sm:$0xff] %v1270
      %v1281 = vld [vmem:[#allocation3] sm:$0xff]
      %v1282 = vld [vmem:[#allocation3 + $0x8] sm:$0xff]
      %v1283 = vld [vmem:[#allocation3 + $0x10] sm:$0xff]
      %v1284 = vld [vmem:[#allocation3 + $0x18] sm:$0xff]
      %v1285 = vld [vmem:[#allocation3 + $0x20] sm:$0xff]
      %v1286 = vld [vmem:[#allocation3 + $0x28] sm:$0xff]
      %v1287 = vld [vmem:[#allocation3 + $0x30] sm:$0xff]
      %v1288 = vld [vmem:[#allocation3 + $0x38] sm:$0xff]
      %v1289 = vld [vmem:[#allocation3 + $0x40] sm:$0xff]
      %v1290 = vld [vmem:[#allocation3 + $0x48] sm:$0xff]
      %v1291 = vld [vmem:[%s461 + $0x4] sm:$0xe]
      %v1292 = vld [vmem:[%s461 + $0x8] sm:$0xf]
      %v1293 = vld [vmem:[%s461 + $0xc] sm:$0xf]
      %v1294 = vld [vmem:[%s461 + $0x10] sm:$0xf]
      %v1295 = vld [vmem:[%s461 + $0x14] sm:$0xf]
      %v1296 = vld [vmem:[%s461 + $0x18] sm:$0xf]
      %v1297 = vld [vmem:[%s461 + $0x1c] sm:$0xf]
      %v1298 = vld [vmem:[%s461 + $0x20] sm:$0xf]
      %v1299 = vld [vmem:[%s461 + $0x24] sm:$0xf]
      %v1300 = vld [vmem:[%s461 + $0x28] sm:$0xf]
      %v1301 = vld [vmem:[%s461 + $0x2c] sm:$0x1]
      %s1302 = scalar_lea.vmem %s1, 14
      %v1303 = vld [vmem:[%s1302] sm:$0x3]
      %v1315 = vunpack.c.l.b16 %v1291
      %v1316 = vunpack.c.l.b16 %v1292
      %v1317 = vunpack.c.l.b16 %v1293
      %v1318 = vunpack.c.l.b16 %v1294
      %v1319 = vunpack.c.l.b16 %v1295
      %v1320 = vunpack.c.l.b16 %v1296
      %v1321 = vunpack.c.l.b16 %v1297
      %v1322 = vunpack.c.l.b16 %v1298
      %v1323 = vunpack.c.l.b16 %v1299
      %v1324 = vunpack.c.l.b16 %v1300
      %v1325 = vunpack.c.l.b16 %v1301
      %v1326 = vpack.c.b16 %v1316, %v1315
      %v1327 = vpack.c.b16 %v1318, %v1317
      %v1328 = vpack.c.b16 %v1320, %v1319
      %v1329 = vpack.c.b16 %v1322, %v1321
      %v1330 = vpack.c.b16 %v1324, %v1323
      %v1331 = vpack.c.b16 %v1325, %v1325
      %v1332 = vrot.slane %v1326, 1
      %v1333 = vrot.slane %v1327, 1
      %v1334 = vsel %vm1197, %v1332, %v1333
      %v1335 = vrot.slane %v1328, 1
      %v1336 = vsel %vm1197, %v1333, %v1335
      %v1337 = vrot.slane %v1329, 1
      %v1338 = vsel %vm1197, %v1335, %v1337
      %v1339 = vrot.slane %v1330, 1
      %v1340 = vsel %vm1197, %v1337, %v1339
      %v1341 = vrot.slane %v1331, 1
      %v1342 = vsel %vm1197, %v1339, %v1341
      %v1344 = vsel %vm377, %v1334, 0
      %v1347 = vsel %vm377, %v1336, 0
      %v1350 = vsel %vm377, %v1338, 0
      %v1353 = vsel %vm377, %v1340, 0
      %v1356 = vsel %vm377, %v1342, 0
      %v1359 = vsel %vm393, %v1303, 0
      %1361 = vmatpush.bf16.msra.mxu0 0
      %1362 = vmatpush.bf16.msra.mxu0 0
      %1363 = vmatpush.bf16.msra.mxu0 0
      %1364 = vmatpush.bf16.msra.mxu0 0
      %1365 = vmatpush.bf16.msra.mxu0 0
      %1366 = vmatpush.bf16.msra.mxu0 0
      %1367 = vmatpush.bf16.msra.mxu0 0
      %1368 = vmatpush.bf16.msra.mxu0 %v1359
      %1369 = vmatmul.bf16.gmra.mxu0 %v1344
      %v1370 = vpop.f32.mrf.mxu0
      %v1371 = vadd.f32 0.0, %v1370
      %v1372 = vpop.f32.mrf.mxu0
      %v1373 = vadd.f32 0.0, %v1372
      %1374 = vmatmul.bf16.gmra.mxu0 %v1347
      %v1375 = vpop.f32.mrf.mxu0
      %v1376 = vadd.f32 0.0, %v1375
      %v1377 = vpop.f32.mrf.mxu0
      %v1378 = vadd.f32 0.0, %v1377
      %1379 = vmatmul.bf16.gmra.mxu0 %v1350
      %v1380 = vpop.f32.mrf.mxu0
      %v1381 = vadd.f32 0.0, %v1380
      %v1382 = vpop.f32.mrf.mxu0
      %v1383 = vadd.f32 0.0, %v1382
      %1384 = vmatmul.bf16.gmra.mxu0 %v1353
      %v1385 = vpop.f32.mrf.mxu0
      %v1386 = vadd.f32 0.0, %v1385
      %v1387 = vpop.f32.mrf.mxu0
      %v1388 = vadd.f32 0.0, %v1387
      %1389 = vmatmul.bf16.gmra.mxu0 %v1356
      %v1390 = vpop.f32.mrf.mxu0
      %v1391 = vadd.f32 0.0, %v1390
      %v1392 = vpop.f32.mrf.mxu0
      %v1393 = vadd.f32 0.0, %v1392
      %1394 = vdwg.mxu0
      %v1395 = vadd.f32 %v1281, %v1371
      %v1396 = vadd.f32 %v1282, %v1373
      %v1397 = vadd.f32 %v1283, %v1376
      %v1398 = vadd.f32 %v1284, %v1378
      %v1399 = vadd.f32 %v1285, %v1381
      %v1400 = vadd.f32 %v1286, %v1383
      %v1401 = vadd.f32 %v1287, %v1386
      %v1402 = vadd.f32 %v1288, %v1388
      %v1403 = vadd.f32 %v1289, %v1391
      %v1404 = vadd.f32 %v1290, %v1393
      %1405 = vst [vmem:[#allocation3] sm:$0xff] %v1395
      %1406 = vst [vmem:[#allocation3 + $0x8] sm:$0xff] %v1396
      %1407 = vst [vmem:[#allocation3 + $0x10] sm:$0xff] %v1397
      %1408 = vst [vmem:[#allocation3 + $0x18] sm:$0xff] %v1398
      %1409 = vst [vmem:[#allocation3 + $0x20] sm:$0xff] %v1399
      %1410 = vst [vmem:[#allocation3 + $0x28] sm:$0xff] %v1400
      %1411 = vst [vmem:[#allocation3 + $0x30] sm:$0xff] %v1401
      %1412 = vst [vmem:[#allocation3 + $0x38] sm:$0xff] %v1402
      %1413 = vst [vmem:[#allocation3 + $0x40] sm:$0xff] %v1403
      %1414 = vst [vmem:[#allocation3 + $0x48] sm:$0xff] %v1404
      %v1415 = vld [vmem:[#allocation3] sm:$0xff]
      %v1416 = vld [vmem:[#allocation3 + $0x8] sm:$0xff]
      %v1417 = vld [vmem:[#allocation3 + $0x10] sm:$0xff]
      %v1418 = vld [vmem:[#allocation3 + $0x18] sm:$0xff]
      %v1419 = vld [vmem:[#allocation3 + $0x20] sm:$0xff]
      %v1420 = vld [vmem:[#allocation3 + $0x28] sm:$0xff]
      %v1421 = vld [vmem:[#allocation3 + $0x30] sm:$0xff]
      %v1422 = vld [vmem:[#allocation3 + $0x38] sm:$0xff]
      %v1423 = vld [vmem:[#allocation3 + $0x40] sm:$0xff]
      %v1424 = vld [vmem:[#allocation3 + $0x48] sm:$0xff]
      %v1425 = vld [vmem:[%s300 + $0x4] sm:$0xe]
      %v1426 = vld [vmem:[%s300 + $0x8] sm:$0xf]
      %v1427 = vld [vmem:[%s300 + $0xc] sm:$0xf]
      %v1428 = vld [vmem:[%s300 + $0x10] sm:$0xf]
      %v1429 = vld [vmem:[%s300 + $0x14] sm:$0xf]
      %v1430 = vld [vmem:[%s300 + $0x18] sm:$0xf]
      %v1431 = vld [vmem:[%s300 + $0x1c] sm:$0xf]
      %v1432 = vld [vmem:[%s300 + $0x20] sm:$0xf]
      %v1433 = vld [vmem:[%s300 + $0x24] sm:$0xf]
      %v1434 = vld [vmem:[%s300 + $0x28] sm:$0xf]
      %v1435 = vld [vmem:[%s300 + $0x2c] sm:$0x3]
      %s1436 = scalar_lea.vmem %s1, 16
      %v1437 = vld [vmem:[%s1436] sm:$0x3]
      %v1449 = vunpack.c.l.b16 %v1425
      %v1450 = vunpack.c.l.b16 %v1426
      %v1451 = vunpack.c.l.b16 %v1427
      %v1452 = vunpack.c.l.b16 %v1428
      %v1453 = vunpack.c.l.b16 %v1429
      %v1454 = vunpack.c.l.b16 %v1430
      %v1455 = vunpack.c.l.b16 %v1431
      %v1456 = vunpack.c.l.b16 %v1432
      %v1457 = vunpack.c.l.b16 %v1433
      %v1458 = vunpack.c.l.b16 %v1434
      %v1459 = vunpack.c.l.b16 %v1435
      %v1460 = vpack.c.b16 %v1450, %v1449
      %v1461 = vpack.c.b16 %v1452, %v1451
      %v1462 = vpack.c.b16 %v1454, %v1453
      %v1463 = vpack.c.b16 %v1456, %v1455
      %v1464 = vpack.c.b16 %v1458, %v1457
      %v1465 = vpack.c.b16 %v1459, %v1459
      %vm1466 = vsmask.f32 6400
      %v1468 = vshrl.u32 %v1460, 16
      %v1470 = vrot.slane %v1468, 1
      %v1471 = vshll.u32 %v1460, 16
      %v1473 = vrot.slane %v1471, 2
      %v1474 = vor.u32 %v1470, %v1473
      %v1476 = vshrl.u32 %v1461, 16
      %v1478 = vrot.slane %v1476, 1
      %v1479 = vshll.u32 %v1461, 16
      %v1481 = vrot.slane %v1479, 2
      %v1482 = vor.u32 %v1478, %v1481
      %v1483 = vsel %vm1466, %v1474, %v1482
      %v1485 = vshrl.u32 %v1462, 16
      %v1487 = vrot.slane %v1485, 1
      %v1488 = vshll.u32 %v1462, 16
      %v1490 = vrot.slane %v1488, 2
      %v1491 = vor.u32 %v1487, %v1490
      %v1492 = vsel %vm1466, %v1482, %v1491
      %v1494 = vshrl.u32 %v1463, 16
      %v1496 = vrot.slane %v1494, 1
      %v1497 = vshll.u32 %v1463, 16
      %v1499 = vrot.slane %v1497, 2
      %v1500 = vor.u32 %v1496, %v1499
      %v1501 = vsel %vm1466, %v1491, %v1500
      %v1503 = vshrl.u32 %v1464, 16
      %v1505 = vrot.slane %v1503, 1
      %v1506 = vshll.u32 %v1464, 16
      %v1508 = vrot.slane %v1506, 2
      %v1509 = vor.u32 %v1505, %v1508
      %v1510 = vsel %vm1466, %v1500, %v1509
      %v1512 = vshrl.u32 %v1465, 16
      %v1514 = vrot.slane %v1512, 1
      %v1515 = vshll.u32 %v1465, 16
      %v1517 = vrot.slane %v1515, 2
      %v1518 = vor.u32 %v1514, %v1517
      %v1519 = vsel %vm1466, %v1509, %v1518
      %v1521 = vsel %vm377, %v1483, 0
      %v1524 = vsel %vm377, %v1492, 0
      %v1527 = vsel %vm377, %v1501, 0
      %v1530 = vsel %vm377, %v1510, 0
      %v1533 = vsel %vm377, %v1519, 0
      %v1536 = vsel %vm393, %v1437, 0
      %1538 = vmatpush.bf16.msra.mxu0 0
      %1539 = vmatpush.bf16.msra.mxu0 0
      %1540 = vmatpush.bf16.msra.mxu0 0
      %1541 = vmatpush.bf16.msra.mxu0 0
      %1542 = vmatpush.bf16.msra.mxu0 0
      %1543 = vmatpush.bf16.msra.mxu0 0
      %1544 = vmatpush.bf16.msra.mxu0 0
      %1545 = vmatpush.bf16.msra.mxu0 %v1536
      %1546 = vmatmul.bf16.gmra.mxu0 %v1521
      %v1547 = vpop.f32.mrf.mxu0
      %v1548 = vadd.f32 0.0, %v1547
      %v1549 = vpop.f32.mrf.mxu0
      %v1550 = vadd.f32 0.0, %v1549
      %1551 = vmatmul.bf16.gmra.mxu0 %v1524
      %v1552 = vpop.f32.mrf.mxu0
      %v1553 = vadd.f32 0.0, %v1552
      %v1554 = vpop.f32.mrf.mxu0
      %v1555 = vadd.f32 0.0, %v1554
      %1556 = vmatmul.bf16.gmra.mxu0 %v1527
      %v1557 = vpop.f32.mrf.mxu0
      %v1558 = vadd.f32 0.0, %v1557
      %v1559 = vpop.f32.mrf.mxu0
      %v1560 = vadd.f32 0.0, %v1559
      %1561 = vmatmul.bf16.gmra.mxu0 %v1530
      %v1562 = vpop.f32.mrf.mxu0
      %v1563 = vadd.f32 0.0, %v1562
      %v1564 = vpop.f32.mrf.mxu0
      %v1565 = vadd.f32 0.0, %v1564
      %1566 = vmatmul.bf16.gmra.mxu0 %v1533
      %v1567 = vpop.f32.mrf.mxu0
      %v1568 = vadd.f32 0.0, %v1567
      %v1569 = vpop.f32.mrf.mxu0
      %v1570 = vadd.f32 0.0, %v1569
      %1571 = vdwg.mxu0
      %v1572 = vadd.f32 %v1415, %v1548
      %v1573 = vadd.f32 %v1416, %v1550
      %v1574 = vadd.f32 %v1417, %v1553
      %v1575 = vadd.f32 %v1418, %v1555
      %v1576 = vadd.f32 %v1419, %v1558
      %v1577 = vadd.f32 %v1420, %v1560
      %v1578 = vadd.f32 %v1421, %v1563
      %v1579 = vadd.f32 %v1422, %v1565
      %v1580 = vadd.f32 %v1423, %v1568
      %v1581 = vadd.f32 %v1424, %v1570
      %1582 = vst [vmem:[#allocation3] sm:$0xff] %v1572
      %1583 = vst [vmem:[#allocation3 + $0x8] sm:$0xff] %v1573
      %1584 = vst [vmem:[#allocation3 + $0x10] sm:$0xff] %v1574
      %1585 = vst [vmem:[#allocation3 + $0x18] sm:$0xff] %v1575
      %1586 = vst [vmem:[#allocation3 + $0x20] sm:$0xff] %v1576
      %1587 = vst [vmem:[#allocation3 + $0x28] sm:$0xff] %v1577
      %1588 = vst [vmem:[#allocation3 + $0x30] sm:$0xff] %v1578
      %1589 = vst [vmem:[#allocation3 + $0x38] sm:$0xff] %v1579
      %1590 = vst [vmem:[#allocation3 + $0x40] sm:$0xff] %v1580
      %1591 = vst [vmem:[#allocation3 + $0x48] sm:$0xff] %v1581
      %v1592 = vld [vmem:[#allocation3] sm:$0xff]
      %v1593 = vld [vmem:[#allocation3 + $0x8] sm:$0xff]
      %v1594 = vld [vmem:[#allocation3 + $0x10] sm:$0xff]
      %v1595 = vld [vmem:[#allocation3 + $0x18] sm:$0xff]
      %v1596 = vld [vmem:[#allocation3 + $0x20] sm:$0xff]
      %v1597 = vld [vmem:[#allocation3 + $0x28] sm:$0xff]
      %v1598 = vld [vmem:[#allocation3 + $0x30] sm:$0xff]
      %v1599 = vld [vmem:[#allocation3 + $0x38] sm:$0xff]
      %v1600 = vld [vmem:[#allocation3 + $0x40] sm:$0xff]
      %v1601 = vld [vmem:[#allocation3 + $0x48] sm:$0xff]
      %v1602 = vld [vmem:[%s2] sm:$0x1]
      %v1604 = vperm.slane %v1602, 0
      %v1606 = vadd.f32 %v1592, %v1604
      %v1607 = vadd.f32 %v1593, %v1604
      %v1608 = vadd.f32 %v1594, %v1604
      %v1609 = vadd.f32 %v1595, %v1604
      %v1610 = vadd.f32 %v1596, %v1604
      %v1611 = vadd.f32 %v1597, %v1604
      %v1612 = vadd.f32 %v1598, %v1604
      %v1613 = vadd.f32 %v1599, %v1604
      %v1614 = vadd.f32 %v1600, %v1604
      %v1615 = vadd.f32 %v1601, %v1604
      %v1616 = vmax.f32 %v1606, 0.0
      %v1617 = vmax.f32 %v1607, 0.0
      %v1618 = vmax.f32 %v1608, 0.0
      %v1619 = vmax.f32 %v1609, 0.0
      %v1620 = vmax.f32 %v1610, 0.0
      %v1621 = vmax.f32 %v1611, 0.0
      %v1622 = vmax.f32 %v1612, 0.0
      %v1623 = vmax.f32 %v1613, 0.0
      %v1624 = vmax.f32 %v1614, 0.0
      %v1625 = vmax.f32 %v1615, 0.0
      %v1626 = vld [vmem:[%s5] sm:$0xff]
      %v1627 = vld [vmem:[%s5 + $0x8] sm:$0xff]
      %v1628 = vld [vmem:[%s5 + $0x10] sm:$0xff]
      %v1629 = vld [vmem:[%s5 + $0x18] sm:$0xff]
      %v1630 = vld [vmem:[%s5 + $0x20] sm:$0xff]
      %v1631 = vld [vmem:[%s5 + $0x28] sm:$0xff]
      %v1632 = vld [vmem:[%s5 + $0x30] sm:$0xff]
      %v1633 = vld [vmem:[%s5 + $0x38] sm:$0xff]
      %v1634 = vld [vmem:[%s5 + $0x40] sm:$0xff]
      %v1635 = vld [vmem:[%s5 + $0x48] sm:$0xff]
      %1637 = vset.pattern.permute.xlu0 0
      %1638 = vperm.xlu0 %1637, %v1626
      %v1639 = vpop.permute.xlu0 %1638
      %1642 = vset.pattern.permute.xlu0 0
      %1643 = vperm.xlu0 %1642, %v1627
      %v1644 = vpop.permute.xlu0 %1643
      %1647 = vset.pattern.permute.xlu0 0
      %1648 = vperm.xlu0 %1647, %v1628
      %v1649 = vpop.permute.xlu0 %1648
      %1652 = vset.pattern.permute.xlu0 0
      %1653 = vperm.xlu0 %1652, %v1629
      %v1654 = vpop.permute.xlu0 %1653
      %1657 = vset.pattern.permute.xlu0 0
      %1658 = vperm.xlu0 %1657, %v1630
      %v1659 = vpop.permute.xlu0 %1658
      %1662 = vset.pattern.permute.xlu0 0
      %1663 = vperm.xlu0 %1662, %v1631
      %v1664 = vpop.permute.xlu0 %1663
      %1667 = vset.pattern.permute.xlu0 0
      %1668 = vperm.xlu0 %1667, %v1632
      %v1669 = vpop.permute.xlu0 %1668
      %1672 = vset.pattern.permute.xlu0 0
      %1673 = vperm.xlu0 %1672, %v1633
      %v1674 = vpop.permute.xlu0 %1673
      %1677 = vset.pattern.permute.xlu0 0
      %1678 = vperm.xlu0 %1677, %v1634
      %v1679 = vpop.permute.xlu0 %1678
      %1682 = vset.pattern.permute.xlu0 0
      %1683 = vperm.xlu0 %1682, %v1635
      %v1684 = vpop.permute.xlu0 %1683
      %v1686 = vmul.f32 %v1616, %v1639
      %v1687 = vmul.f32 %v1617, %v1644
      %v1688 = vmul.f32 %v1618, %v1649
      %v1689 = vmul.f32 %v1619, %v1654
      %v1690 = vmul.f32 %v1620, %v1659
      %v1691 = vmul.f32 %v1621, %v1664
      %v1692 = vmul.f32 %v1622, %v1669
      %v1693 = vmul.f32 %v1623, %v1674
      %v1694 = vmul.f32 %v1624, %v1679
      %v1695 = vmul.f32 %v1625, %v1684
      %v1696 = vpack.c.bf16 %v1686, %v1686
      %v1697 = vpack.c.bf16 %v1687, %v1687
      %v1698 = vpack.c.bf16 %v1688, %v1688
      %v1699 = vpack.c.bf16 %v1689, %v1689
      %v1700 = vpack.c.bf16 %v1690, %v1690
      %v1701 = vpack.c.bf16 %v1691, %v1691
      %v1702 = vpack.c.bf16 %v1692, %v1692
      %v1703 = vpack.c.bf16 %v1693, %v1693
      %v1704 = vpack.c.bf16 %v1694, %v1694
      %v1705 = vpack.c.bf16 %v1695, %v1695
      %1706 = vst [vmem:[#allocation2 + $0x8] sm:$0xf] %v1696
      %1707 = vst [vmem:[#allocation2 + $0xc] sm:$0xf] %v1697
      %1708 = vst [vmem:[#allocation2 + $0x10] sm:$0xf] %v1698
      %1709 = vst [vmem:[#allocation2 + $0x14] sm:$0xf] %v1699
      %1710 = vst [vmem:[#allocation2 + $0x18] sm:$0xf] %v1700
      %1711 = vst [vmem:[#allocation2 + $0x1c] sm:$0xf] %v1701
      %1712 = vst [vmem:[#allocation2 + $0x20] sm:$0xf] %v1702
      %1713 = vst [vmem:[#allocation2 + $0x24] sm:$0xf] %v1703
      %1714 = vst [vmem:[#allocation2 + $0x28] sm:$0xf] %v1704
      %1715 = vst [vmem:[#allocation2 + $0x2c] sm:$0xf] %v1705
      %1716 = vst [vmem:[#allocation3] sm:$0xff] 0.0
      %1717 = vst [vmem:[#allocation3 + $0x8] sm:$0xff] 0.0
      %1718 = vst [vmem:[#allocation3 + $0x10] sm:$0xff] 0.0
      %1719 = vst [vmem:[#allocation3 + $0x18] sm:$0xff] 0.0
      %1720 = vst [vmem:[#allocation3 + $0x20] sm:$0xff] 0.0
      %1721 = vst [vmem:[#allocation3 + $0x28] sm:$0xff] 0.0
      %1722 = vst [vmem:[#allocation3 + $0x30] sm:$0xff] 0.0
      %1723 = vst [vmem:[#allocation3 + $0x38] sm:$0xff] 0.0
      %1724 = vst [vmem:[#allocation3 + $0x40] sm:$0xff] 0.0
      %1725 = vst [vmem:[#allocation3 + $0x48] sm:$0xff] 0.0
      %v1726 = vld [vmem:[#allocation3] sm:$0xff]
      %v1727 = vld [vmem:[#allocation3 + $0x8] sm:$0xff]
      %v1728 = vld [vmem:[#allocation3 + $0x10] sm:$0xff]
      %v1729 = vld [vmem:[#allocation3 + $0x18] sm:$0xff]
      %v1730 = vld [vmem:[#allocation3 + $0x20] sm:$0xff]
      %v1731 = vld [vmem:[#allocation3 + $0x28] sm:$0xff]
      %v1732 = vld [vmem:[#allocation3 + $0x30] sm:$0xff]
      %v1733 = vld [vmem:[#allocation3 + $0x38] sm:$0xff]
      %v1734 = vld [vmem:[#allocation3 + $0x40] sm:$0xff]
      %v1735 = vld [vmem:[#allocation3 + $0x48] sm:$0xff]
      %v1736 = vld [vmem:[#allocation2] sm:$0xc]
      %v1737 = vld [vmem:[#allocation2 + $0x4] sm:$0xf]
      %v1738 = vld [vmem:[#allocation2 + $0x8] sm:$0xf]
      %v1739 = vld [vmem:[#allocation2 + $0xc] sm:$0xf]
      %v1740 = vld [vmem:[#allocation2 + $0x10] sm:$0xf]
      %v1741 = vld [vmem:[#allocation2 + $0x14] sm:$0xf]
      %v1742 = vld [vmem:[#allocation2 + $0x18] sm:$0xf]
      %v1743 = vld [vmem:[#allocation2 + $0x1c] sm:$0xf]
      %v1744 = vld [vmem:[#allocation2 + $0x20] sm:$0xf]
      %v1745 = vld [vmem:[#allocation2 + $0x24] sm:$0xf]
      %v1746 = vld [vmem:[#allocation2 + $0x28] sm:$0x7]
      %v1747 = vld [vmem:[%s3] sm:$0xf]
      %v1748 = vld [vmem:[%s3 + $0x4] sm:$0xf]
      %v1749 = vld [vmem:[%s3 + $0x8] sm:$0xf]
      %v1750 = vld [vmem:[%s3 + $0xc] sm:$0xf]
      %v1751 = vld [vmem:[%s3 + $0x10] sm:$0xf]
      %v1752 = vld [vmem:[%s3 + $0x14] sm:$0xf]
      %v1753 = vld [vmem:[%s3 + $0x18] sm:$0xf]
      %v1754 = vld [vmem:[%s3 + $0x1c] sm:$0xf]
      %v1755 = vld [vmem:[%s3 + $0x20] sm:$0xf]
      %v1756 = vld [vmem:[%s3 + $0x24] sm:$0xf]
      %v1757 = vld [vmem:[%s3 + $0x28] sm:$0xf]
      %v1758 = vld [vmem:[%s3 + $0x2c] sm:$0xf]
      %v1759 = vld [vmem:[%s3 + $0x30] sm:$0xf]
      %v1760 = vld [vmem:[%s3 + $0x34] sm:$0xf]
      %v1761 = vld [vmem:[%s3 + $0x38] sm:$0xf]
      %v1762 = vld [vmem:[%s3 + $0x3c] sm:$0xf]
      %v1774 = vunpack.c.l.b16 %v1736
      %v1775 = vunpack.c.l.b16 %v1737
      %v1776 = vunpack.c.l.b16 %v1738
      %v1777 = vunpack.c.l.b16 %v1739
      %v1778 = vunpack.c.l.b16 %v1740
      %v1779 = vunpack.c.l.b16 %v1741
      %v1780 = vunpack.c.l.b16 %v1742
      %v1781 = vunpack.c.l.b16 %v1743
      %v1782 = vunpack.c.l.b16 %v1744
      %v1783 = vunpack.c.l.b16 %v1745
      %v1784 = vunpack.c.l.b16 %v1746
      %v1785 = vpack.c.b16 %v1775, %v1774
      %v1786 = vpack.c.b16 %v1777, %v1776
      %v1787 = vpack.c.b16 %v1779, %v1778
      %v1788 = vpack.c.b16 %v1781, %v1780
      %v1789 = vpack.c.b16 %v1783, %v1782
      %v1790 = vpack.c.b16 %v1784, %v1784
      %vm1791 = vsmask.f32 5376
      %v1793 = vshrl.u32 %v1785, 16
      %v1795 = vrot.slane %v1793, 2
      %v1796 = vshll.u32 %v1785, 16
      %v1798 = vrot.slane %v1796, 3
      %v1799 = vor.u32 %v1795, %v1798
      %v1801 = vshrl.u32 %v1786, 16
      %v1803 = vrot.slane %v1801, 2
      %v1804 = vshll.u32 %v1786, 16
      %v1806 = vrot.slane %v1804, 3
      %v1807 = vor.u32 %v1803, %v1806
      %v1808 = vsel %vm1791, %v1799, %v1807
      %v1810 = vshrl.u32 %v1787, 16
      %v1812 = vrot.slane %v1810, 2
      %v1813 = vshll.u32 %v1787, 16
      %v1815 = vrot.slane %v1813, 3
      %v1816 = vor.u32 %v1812, %v1815
      %v1817 = vsel %vm1791, %v1807, %v1816
      %v1819 = vshrl.u32 %v1788, 16
      %v1821 = vrot.slane %v1819, 2
      %v1822 = vshll.u32 %v1788, 16
      %v1824 = vrot.slane %v1822, 3
      %v1825 = vor.u32 %v1821, %v1824
      %v1826 = vsel %vm1791, %v1816, %v1825
      %v1828 = vshrl.u32 %v1789, 16
      %v1830 = vrot.slane %v1828, 2
      %v1831 = vshll.u32 %v1789, 16
      %v1833 = vrot.slane %v1831, 3
      %v1834 = vor.u32 %v1830, %v1833
      %v1835 = vsel %vm1791, %v1825, %v1834
      %v1837 = vshrl.u32 %v1790, 16
      %v1839 = vrot.slane %v1837, 2
      %v1840 = vshll.u32 %v1790, 16
      %v1842 = vrot.slane %v1840, 3
      %v1843 = vor.u32 %v1839, %v1842
      %v1844 = vsel %vm1791, %v1834, %v1843
      %v1866 = vunpack.c.l.b16 %v1747
      %v1867 = vunpack.c.l.b16 %v1748
      %v1868 = vunpack.c.l.b16 %v1749
      %v1869 = vunpack.c.l.b16 %v1750
      %v1870 = vunpack.c.l.b16 %v1751
      %v1871 = vunpack.c.l.b16 %v1752
      %v1872 = vunpack.c.l.b16 %v1753
      %v1873 = vunpack.c.l.b16 %v1754
      %v1874 = vunpack.c.l.b16 %v1755
      %v1875 = vunpack.c.l.b16 %v1756
      %v1876 = vunpack.c.l.b16 %v1757
      %v1877 = vunpack.c.l.b16 %v1758
      %v1878 = vunpack.c.l.b16 %v1759
      %v1879 = vunpack.c.l.b16 %v1760
      %v1880 = vunpack.c.l.b16 %v1761
      %v1881 = vunpack.c.l.b16 %v1762
      %v1882 = vpack.c.b16 %v1867, %v1866
      %v1883 = vpack.c.b16 %v1869, %v1868
      %v1884 = vpack.c.b16 %v1871, %v1870
      %v1885 = vpack.c.b16 %v1873, %v1872
      %v1886 = vpack.c.b16 %v1875, %v1874
      %v1887 = vpack.c.b16 %v1877, %v1876
      %v1888 = vpack.c.b16 %v1879, %v1878
      %v1889 = vpack.c.b16 %v1881, %v1880
      %1898 = vmatpush.bf16.msra.mxu0 %v1889
      %1899 = vmatpush.bf16.msra.mxu0 %v1888
      %1900 = vmatpush.bf16.msra.mxu0 %v1887
      %1901 = vmatpush.bf16.msra.mxu0 %v1886
      %1902 = vmatpush.bf16.msra.mxu0 %v1885
      %1903 = vmatpush.bf16.msra.mxu0 %v1884
      %1904 = vmatpush.bf16.msra.mxu0 %v1883
      %1905 = vmatpush.bf16.msra.mxu0 %v1882
      %1906 = vmatmul.bf16.gmra.mxu0 %v1808
      %v1907 = vpop.f32.mrf.mxu0
      %v1908 = vadd.f32 0.0, %v1907
      %v1909 = vpop.f32.mrf.mxu0
      %v1910 = vadd.f32 0.0, %v1909
      %1911 = vmatmul.bf16.gmra.mxu0 %v1817
      %v1912 = vpop.f32.mrf.mxu0
      %v1913 = vadd.f32 0.0, %v1912
      %v1914 = vpop.f32.mrf.mxu0
      %v1915 = vadd.f32 0.0, %v1914
      %1916 = vmatmul.bf16.gmra.mxu0 %v1826
      %v1917 = vpop.f32.mrf.mxu0
      %v1918 = vadd.f32 0.0, %v1917
      %v1919 = vpop.f32.mrf.mxu0
      %v1920 = vadd.f32 0.0, %v1919
      %1921 = vmatmul.bf16.gmra.mxu0 %v1835
      %v1922 = vpop.f32.mrf.mxu0
      %v1923 = vadd.f32 0.0, %v1922
      %v1924 = vpop.f32.mrf.mxu0
      %v1925 = vadd.f32 0.0, %v1924
      %1926 = vmatmul.bf16.gmra.mxu0 %v1844
      %v1927 = vpop.f32.mrf.mxu0
      %v1928 = vadd.f32 0.0, %v1927
      %v1929 = vpop.f32.mrf.mxu0
      %v1930 = vadd.f32 0.0, %v1929
      %1931 = vdwg.mxu0
      %v1932 = vadd.f32 %v1726, %v1908
      %v1933 = vadd.f32 %v1727, %v1910
      %v1934 = vadd.f32 %v1728, %v1913
      %v1935 = vadd.f32 %v1729, %v1915
      %v1936 = vadd.f32 %v1730, %v1918
      %v1937 = vadd.f32 %v1731, %v1920
      %v1938 = vadd.f32 %v1732, %v1923
      %v1939 = vadd.f32 %v1733, %v1925
      %v1940 = vadd.f32 %v1734, %v1928
      %v1941 = vadd.f32 %v1735, %v1930
      %1942 = vst [vmem:[#allocation3] sm:$0xff] %v1932
      %1943 = vst [vmem:[#allocation3 + $0x8] sm:$0xff] %v1933
      %1944 = vst [vmem:[#allocation3 + $0x10] sm:$0xff] %v1934
      %1945 = vst [vmem:[#allocation3 + $0x18] sm:$0xff] %v1935
      %1946 = vst [vmem:[#allocation3 + $0x20] sm:$0xff] %v1936
      %1947 = vst [vmem:[#allocation3 + $0x28] sm:$0xff] %v1937
      %1948 = vst [vmem:[#allocation3 + $0x30] sm:$0xff] %v1938
      %1949 = vst [vmem:[#allocation3 + $0x38] sm:$0xff] %v1939
      %1950 = vst [vmem:[#allocation3 + $0x40] sm:$0xff] %v1940
      %1951 = vst [vmem:[#allocation3 + $0x48] sm:$0xff] %v1941
      %v1952 = vld [vmem:[#allocation3] sm:$0xff]
      %v1953 = vld [vmem:[#allocation3 + $0x8] sm:$0xff]
      %v1954 = vld [vmem:[#allocation3 + $0x10] sm:$0xff]
      %v1955 = vld [vmem:[#allocation3 + $0x18] sm:$0xff]
      %v1956 = vld [vmem:[#allocation3 + $0x20] sm:$0xff]
      %v1957 = vld [vmem:[#allocation3 + $0x28] sm:$0xff]
      %v1958 = vld [vmem:[#allocation3 + $0x30] sm:$0xff]
      %v1959 = vld [vmem:[#allocation3 + $0x38] sm:$0xff]
      %v1960 = vld [vmem:[#allocation3 + $0x40] sm:$0xff]
      %v1961 = vld [vmem:[#allocation3 + $0x48] sm:$0xff]
      %v1962 = vld [vmem:[#allocation2] sm:$0x8]
      %v1963 = vld [vmem:[#allocation2 + $0x4] sm:$0xf]
      %v1964 = vld [vmem:[#allocation2 + $0x8] sm:$0xf]
      %v1965 = vld [vmem:[#allocation2 + $0xc] sm:$0xf]
      %v1966 = vld [vmem:[#allocation2 + $0x10] sm:$0xf]
      %v1967 = vld [vmem:[#allocation2 + $0x14] sm:$0xf]
      %v1968 = vld [vmem:[#allocation2 + $0x18] sm:$0xf]
      %v1969 = vld [vmem:[#allocation2 + $0x1c] sm:$0xf]
      %v1970 = vld [vmem:[#allocation2 + $0x20] sm:$0xf]
      %v1971 = vld [vmem:[#allocation2 + $0x24] sm:$0xf]
      %v1972 = vld [vmem:[#allocation2 + $0x28] sm:$0x7]
      %s1973 = scalar_lea.vmem %s3, 64
      %v1974 = vld [vmem:[%s1973] sm:$0xf]
      %v1975 = vld [vmem:[%s1973 + $0x4] sm:$0xf]
      %v1976 = vld [vmem:[%s1973 + $0x8] sm:$0xf]
      %v1977 = vld [vmem:[%s1973 + $0xc] sm:$0xf]
      %v1978 = vld [vmem:[%s1973 + $0x10] sm:$0xf]
      %v1979 = vld [vmem:[%s1973 + $0x14] sm:$0xf]
      %v1980 = vld [vmem:[%s1973 + $0x18] sm:$0xf]
      %v1981 = vld [vmem:[%s1973 + $0x1c] sm:$0xf]
      %v1982 = vld [vmem:[%s1973 + $0x20] sm:$0xf]
      %v1983 = vld [vmem:[%s1973 + $0x24] sm:$0xf]
      %v1984 = vld [vmem:[%s1973 + $0x28] sm:$0xf]
      %v1985 = vld [vmem:[%s1973 + $0x2c] sm:$0xf]
      %v1986 = vld [vmem:[%s1973 + $0x30] sm:$0xf]
      %v1987 = vld [vmem:[%s1973 + $0x34] sm:$0xf]
      %v1988 = vld [vmem:[%s1973 + $0x38] sm:$0xf]
      %v1989 = vld [vmem:[%s1973 + $0x3c] sm:$0xf]
      %v2001 = vunpack.c.l.b16 %v1962
      %v2002 = vunpack.c.l.b16 %v1963
      %v2003 = vunpack.c.l.b16 %v1964
      %v2004 = vunpack.c.l.b16 %v1965
      %v2005 = vunpack.c.l.b16 %v1966
      %v2006 = vunpack.c.l.b16 %v1967
      %v2007 = vunpack.c.l.b16 %v1968
      %v2008 = vunpack.c.l.b16 %v1969
      %v2009 = vunpack.c.l.b16 %v1970
      %v2010 = vunpack.c.l.b16 %v1971
      %v2011 = vunpack.c.l.b16 %v1972
      %v2012 = vpack.c.b16 %v2002, %v2001
      %v2013 = vpack.c.b16 %v2004, %v2003
      %v2014 = vpack.c.b16 %v2006, %v2005
      %v2015 = vpack.c.b16 %v2008, %v2007
      %v2016 = vpack.c.b16 %v2010, %v2009
      %v2017 = vpack.c.b16 %v2011, %v2011
      %vm2018 = vcmask 1044480
      %v2019 = vrot.slane %v2012, 3
      %v2020 = vrot.slane %v2013, 3
      %v2021 = vsel %vm2018, %v2019, %v2020
      %v2022 = vrot.slane %v2014, 3
      %v2023 = vsel %vm2018, %v2020, %v2022
      %v2024 = vrot.slane %v2015, 3
      %v2025 = vsel %vm2018, %v2022, %v2024
      %v2026 = vrot.slane %v2016, 3
      %v2027 = vsel %vm2018, %v2024, %v2026
      %v2028 = vrot.slane %v2017, 3
      %v2029 = vsel %vm2018, %v2026, %v2028
      %v2051 = vunpack.c.l.b16 %v1974
      %v2052 = vunpack.c.l.b16 %v1975
      %v2053 = vunpack.c.l.b16 %v1976
      %v2054 = vunpack.c.l.b16 %v1977
      %v2055 = vunpack.c.l.b16 %v1978
      %v2056 = vunpack.c.l.b16 %v1979
      %v2057 = vunpack.c.l.b16 %v1980
      %v2058 = vunpack.c.l.b16 %v1981
      %v2059 = vunpack.c.l.b16 %v1982
      %v2060 = vunpack.c.l.b16 %v1983
      %v2061 = vunpack.c.l.b16 %v1984
      %v2062 = vunpack.c.l.b16 %v1985
      %v2063 = vunpack.c.l.b16 %v1986
      %v2064 = vunpack.c.l.b16 %v1987
      %v2065 = vunpack.c.l.b16 %v1988
      %v2066 = vunpack.c.l.b16 %v1989
      %v2067 = vpack.c.b16 %v2052, %v2051
      %v2068 = vpack.c.b16 %v2054, %v2053
      %v2069 = vpack.c.b16 %v2056, %v2055
      %v2070 = vpack.c.b16 %v2058, %v2057
      %v2071 = vpack.c.b16 %v2060, %v2059
      %v2072 = vpack.c.b16 %v2062, %v2061
      %v2073 = vpack.c.b16 %v2064, %v2063
      %v2074 = vpack.c.b16 %v2066, %v2065
      %2083 = vmatpush.bf16.msra.mxu0 %v2074
      %2084 = vmatpush.bf16.msra.mxu0 %v2073
      %2085 = vmatpush.bf16.msra.mxu0 %v2072
      %2086 = vmatpush.bf16.msra.mxu0 %v2071
      %2087 = vmatpush.bf16.msra.mxu0 %v2070
      %2088 = vmatpush.bf16.msra.mxu0 %v2069
      %2089 = vmatpush.bf16.msra.mxu0 %v2068
      %2090 = vmatpush.bf16.msra.mxu0 %v2067
      %2091 = vmatmul.bf16.gmra.mxu0 %v2021
      %v2092 = vpop.f32.mrf.mxu0
      %v2093 = vadd.f32 0.0, %v2092
      %v2094 = vpop.f32.mrf.mxu0
      %v2095 = vadd.f32 0.0, %v2094
      %2096 = vmatmul.bf16.gmra.mxu0 %v2023
      %v2097 = vpop.f32.mrf.mxu0
      %v2098 = vadd.f32 0.0, %v2097
      %v2099 = vpop.f32.mrf.mxu0
      %v2100 = vadd.f32 0.0, %v2099
      %2101 = vmatmul.bf16.gmra.mxu0 %v2025
      %v2102 = vpop.f32.mrf.mxu0
      %v2103 = vadd.f32 0.0, %v2102
      %v2104 = vpop.f32.mrf.mxu0
      %v2105 = vadd.f32 0.0, %v2104
      %2106 = vmatmul.bf16.gmra.mxu0 %v2027
      %v2107 = vpop.f32.mrf.mxu0
      %v2108 = vadd.f32 0.0, %v2107
      %v2109 = vpop.f32.mrf.mxu0
      %v2110 = vadd.f32 0.0, %v2109
      %2111 = vmatmul.bf16.gmra.mxu0 %v2029
      %v2112 = vpop.f32.mrf.mxu0
      %v2113 = vadd.f32 0.0, %v2112
      %v2114 = vpop.f32.mrf.mxu0
      %v2115 = vadd.f32 0.0, %v2114
      %2116 = vdwg.mxu0
      %v2117 = vadd.f32 %v1952, %v2093
      %v2118 = vadd.f32 %v1953, %v2095
      %v2119 = vadd.f32 %v1954, %v2098
      %v2120 = vadd.f32 %v1955, %v2100
      %v2121 = vadd.f32 %v1956, %v2103
      %v2122 = vadd.f32 %v1957, %v2105
      %v2123 = vadd.f32 %v1958, %v2108
      %v2124 = vadd.f32 %v1959, %v2110
      %v2125 = vadd.f32 %v1960, %v2113
      %v2126 = vadd.f32 %v1961, %v2115
      %2127 = vst [vmem:[#allocation3] sm:$0xff] %v2117
      %2128 = vst [vmem:[#allocation3 + $0x8] sm:$0xff] %v2118
      %2129 = vst [vmem:[#allocation3 + $0x10] sm:$0xff] %v2119
      %2130 = vst [vmem:[#allocation3 + $0x18] sm:$0xff] %v2120
      %2131 = vst [vmem:[#allocation3 + $0x20] sm:$0xff] %v2121
      %2132 = vst [vmem:[#allocation3 + $0x28] sm:$0xff] %v2122
      %2133 = vst [vmem:[#allocation3 + $0x30] sm:$0xff] %v2123
      %2134 = vst [vmem:[#allocation3 + $0x38] sm:$0xff] %v2124
      %2135 = vst [vmem:[#allocation3 + $0x40] sm:$0xff] %v2125
      %2136 = vst [vmem:[#allocation3 + $0x48] sm:$0xff] %v2126
      %v2137 = vld [vmem:[#allocation3] sm:$0xff]
      %v2138 = vld [vmem:[#allocation3 + $0x8] sm:$0xff]
      %v2139 = vld [vmem:[#allocation3 + $0x10] sm:$0xff]
      %v2140 = vld [vmem:[#allocation3 + $0x18] sm:$0xff]
      %v2141 = vld [vmem:[#allocation3 + $0x20] sm:$0xff]
      %v2142 = vld [vmem:[#allocation3 + $0x28] sm:$0xff]
      %v2143 = vld [vmem:[#allocation3 + $0x30] sm:$0xff]
      %v2144 = vld [vmem:[#allocation3 + $0x38] sm:$0xff]
      %v2145 = vld [vmem:[#allocation3 + $0x40] sm:$0xff]
      %v2146 = vld [vmem:[#allocation3 + $0x48] sm:$0xff]
      %v2147 = vld [vmem:[#allocation2] sm:$0x8]
      %v2148 = vld [vmem:[#allocation2 + $0x4] sm:$0xf]
      %v2149 = vld [vmem:[#allocation2 + $0x8] sm:$0xf]
      %v2150 = vld [vmem:[#allocation2 + $0xc] sm:$0xf]
      %v2151 = vld [vmem:[#allocation2 + $0x10] sm:$0xf]
      %v2152 = vld [vmem:[#allocation2 + $0x14] sm:$0xf]
      %v2153 = vld [vmem:[#allocation2 + $0x18] sm:$0xf]
      %v2154 = vld [vmem:[#allocation2 + $0x1c] sm:$0xf]
      %v2155 = vld [vmem:[#allocation2 + $0x20] sm:$0xf]
      %v2156 = vld [vmem:[#allocation2 + $0x24] sm:$0xf]
      %v2157 = vld [vmem:[#allocation2 + $0x28] sm:$0xf]
      %s2158 = scalar_lea.vmem %s3, 128
      %v2159 = vld [vmem:[%s2158] sm:$0xf]
      %v2160 = vld [vmem:[%s2158 + $0x4] sm:$0xf]
      %v2161 = vld [vmem:[%s2158 + $0x8] sm:$0xf]
      %v2162 = vld [vmem:[%s2158 + $0xc] sm:$0xf]
      %v2163 = vld [vmem:[%s2158 + $0x10] sm:$0xf]
      %v2164 = vld [vmem:[%s2158 + $0x14] sm:$0xf]
      %v2165 = vld [vmem:[%s2158 + $0x18] sm:$0xf]
      %v2166 = vld [vmem:[%s2158 + $0x1c] sm:$0xf]
      %v2167 = vld [vmem:[%s2158 + $0x20] sm:$0xf]
      %v2168 = vld [vmem:[%s2158 + $0x24] sm:$0xf]
      %v2169 = vld [vmem:[%s2158 + $0x28] sm:$0xf]
      %v2170 = vld [vmem:[%s2158 + $0x2c] sm:$0xf]
      %v2171 = vld [vmem:[%s2158 + $0x30] sm:$0xf]
      %v2172 = vld [vmem:[%s2158 + $0x34] sm:$0xf]
      %v2173 = vld [vmem:[%s2158 + $0x38] sm:$0xf]
      %v2174 = vld [vmem:[%s2158 + $0x3c] sm:$0xf]
      %v2186 = vunpack.c.l.b16 %v2147
      %v2187 = vunpack.c.l.b16 %v2148
      %v2188 = vunpack.c.l.b16 %v2149
      %v2189 = vunpack.c.l.b16 %v2150
      %v2190 = vunpack.c.l.b16 %v2151
      %v2191 = vunpack.c.l.b16 %v2152
      %v2192 = vunpack.c.l.b16 %v2153
      %v2193 = vunpack.c.l.b16 %v2154
      %v2194 = vunpack.c.l.b16 %v2155
      %v2195 = vunpack.c.l.b16 %v2156
      %v2196 = vunpack.c.l.b16 %v2157
      %v2197 = vpack.c.b16 %v2187, %v2186
      %v2198 = vpack.c.b16 %v2189, %v2188
      %v2199 = vpack.c.b16 %v2191, %v2190
      %v2200 = vpack.c.b16 %v2193, %v2192
      %v2201 = vpack.c.b16 %v2195, %v2194
      %v2202 = vpack.c.b16 %v2196, %v2196
      %vm2203 = vsmask.f32 4352
      %v2205 = vshrl.u32 %v2197, 16
      %v2207 = vrot.slane %v2205, 3
      %v2208 = vshll.u32 %v2197, 16
      %v2210 = vrot.slane %v2208, 4
      %v2211 = vor.u32 %v2207, %v2210
      %v2213 = vshrl.u32 %v2198, 16
      %v2215 = vrot.slane %v2213, 3
      %v2216 = vshll.u32 %v2198, 16
      %v2218 = vrot.slane %v2216, 4
      %v2219 = vor.u32 %v2215, %v2218
      %v2220 = vsel %vm2203, %v2211, %v2219
      %v2222 = vshrl.u32 %v2199, 16
      %v2224 = vrot.slane %v2222, 3
      %v2225 = vshll.u32 %v2199, 16
      %v2227 = vrot.slane %v2225, 4
      %v2228 = vor.u32 %v2224, %v2227
      %v2229 = vsel %vm2203, %v2219, %v2228
      %v2231 = vshrl.u32 %v2200, 16
      %v2233 = vrot.slane %v2231, 3
      %v2234 = vshll.u32 %v2200, 16
      %v2236 = vrot.slane %v2234, 4
      %v2237 = vor.u32 %v2233, %v2236
      %v2238 = vsel %vm2203, %v2228, %v2237
      %v2240 = vshrl.u32 %v2201, 16
      %v2242 = vrot.slane %v2240, 3
      %v2243 = vshll.u32 %v2201, 16
      %v2245 = vrot.slane %v2243, 4
      %v2246 = vor.u32 %v2242, %v2245
      %v2247 = vsel %vm2203, %v2237, %v2246
      %v2249 = vshrl.u32 %v2202, 16
      %v2251 = vrot.slane %v2249, 3
      %v2252 = vshll.u32 %v2202, 16
      %v2254 = vrot.slane %v2252, 4
      %v2255 = vor.u32 %v2251, %v2254
      %v2256 = vsel %vm2203, %v2246, %v2255
      %v2278 = vunpack.c.l.b16 %v2159
      %v2279 = vunpack.c.l.b16 %v2160
      %v2280 = vunpack.c.l.b16 %v2161
      %v2281 = vunpack.c.l.b16 %v2162
      %v2282 = vunpack.c.l.b16 %v2163
      %v2283 = vunpack.c.l.b16 %v2164
      %v2284 = vunpack.c.l.b16 %v2165
      %v2285 = vunpack.c.l.b16 %v2166
      %v2286 = vunpack.c.l.b16 %v2167
      %v2287 = vunpack.c.l.b16 %v2168
      %v2288 = vunpack.c.l.b16 %v2169
      %v2289 = vunpack.c.l.b16 %v2170
      %v2290 = vunpack.c.l.b16 %v2171
      %v2291 = vunpack.c.l.b16 %v2172
      %v2292 = vunpack.c.l.b16 %v2173
      %v2293 = vunpack.c.l.b16 %v2174
      %v2294 = vpack.c.b16 %v2279, %v2278
      %v2295 = vpack.c.b16 %v2281, %v2280
      %v2296 = vpack.c.b16 %v2283, %v2282
      %v2297 = vpack.c.b16 %v2285, %v2284
      %v2298 = vpack.c.b16 %v2287, %v2286
      %v2299 = vpack.c.b16 %v2289, %v2288
      %v2300 = vpack.c.b16 %v2291, %v2290
      %v2301 = vpack.c.b16 %v2293, %v2292
      %2310 = vmatpush.bf16.msra.mxu0 %v2301
      %2311 = vmatpush.bf16.msra.mxu0 %v2300
      %2312 = vmatpush.bf16.msra.mxu0 %v2299
      %2313 = vmatpush.bf16.msra.mxu0 %v2298
      %2314 = vmatpush.bf16.msra.mxu0 %v2297
      %2315 = vmatpush.bf16.msra.mxu0 %v2296
      %2316 = vmatpush.bf16.msra.mxu0 %v2295
      %2317 = vmatpush.bf16.msra.mxu0 %v2294
      %2318 = vmatmul.bf16.gmra.mxu0 %v2220
      %v2319 = vpop.f32.mrf.mxu0
      %v2320 = vadd.f32 0.0, %v2319
      %v2321 = vpop.f32.mrf.mxu0
      %v2322 = vadd.f32 0.0, %v2321
      %2323 = vmatmul.bf16.gmra.mxu0 %v2229
      %v2324 = vpop.f32.mrf.mxu0
      %v2325 = vadd.f32 0.0, %v2324
      %v2326 = vpop.f32.mrf.mxu0
      %v2327 = vadd.f32 0.0, %v2326
      %2328 = vmatmul.bf16.gmra.mxu0 %v2238
      %v2329 = vpop.f32.mrf.mxu0
      %v2330 = vadd.f32 0.0, %v2329
      %v2331 = vpop.f32.mrf.mxu0
      %v2332 = vadd.f32 0.0, %v2331
      %2333 = vmatmul.bf16.gmra.mxu0 %v2247
      %v2334 = vpop.f32.mrf.mxu0
      %v2335 = vadd.f32 0.0, %v2334
      %v2336 = vpop.f32.mrf.mxu0
      %v2337 = vadd.f32 0.0, %v2336
      %2338 = vmatmul.bf16.gmra.mxu0 %v2256
      %v2339 = vpop.f32.mrf.mxu0
      %v2340 = vadd.f32 0.0, %v2339
      %v2341 = vpop.f32.mrf.mxu0
      %v2342 = vadd.f32 0.0, %v2341
      %2343 = vdwg.mxu0
      %v2344 = vadd.f32 %v2137, %v2320
      %v2345 = vadd.f32 %v2138, %v2322
      %v2346 = vadd.f32 %v2139, %v2325
      %v2347 = vadd.f32 %v2140, %v2327
      %v2348 = vadd.f32 %v2141, %v2330
      %v2349 = vadd.f32 %v2142, %v2332
      %v2350 = vadd.f32 %v2143, %v2335
      %v2351 = vadd.f32 %v2144, %v2337
      %v2352 = vadd.f32 %v2145, %v2340
      %v2353 = vadd.f32 %v2146, %v2342
      %2354 = vst [vmem:[#allocation3] sm:$0xff] %v2344
      %2355 = vst [vmem:[#allocation3 + $0x8] sm:$0xff] %v2345
      %2356 = vst [vmem:[#allocation3 + $0x10] sm:$0xff] %v2346
      %2357 = vst [vmem:[#allocation3 + $0x18] sm:$0xff] %v2347
      %2358 = vst [vmem:[#allocation3 + $0x20] sm:$0xff] %v2348
      %2359 = vst [vmem:[#allocation3 + $0x28] sm:$0xff] %v2349
      %2360 = vst [vmem:[#allocation3 + $0x30] sm:$0xff] %v2350
      %2361 = vst [vmem:[#allocation3 + $0x38] sm:$0xff] %v2351
      %2362 = vst [vmem:[#allocation3 + $0x40] sm:$0xff] %v2352
      %2363 = vst [vmem:[#allocation3 + $0x48] sm:$0xff] %v2353
      %v2364 = vld [vmem:[#allocation3] sm:$0xff]
      %v2365 = vld [vmem:[#allocation3 + $0x8] sm:$0xff]
      %v2366 = vld [vmem:[#allocation3 + $0x10] sm:$0xff]
      %v2367 = vld [vmem:[#allocation3 + $0x18] sm:$0xff]
      %v2368 = vld [vmem:[#allocation3 + $0x20] sm:$0xff]
      %v2369 = vld [vmem:[#allocation3 + $0x28] sm:$0xff]
      %v2370 = vld [vmem:[#allocation3 + $0x30] sm:$0xff]
      %v2371 = vld [vmem:[#allocation3 + $0x38] sm:$0xff]
      %v2372 = vld [vmem:[#allocation3 + $0x40] sm:$0xff]
      %v2373 = vld [vmem:[#allocation3 + $0x48] sm:$0xff]
      %v2374 = vld [vmem:[#allocation2 + $0x4] sm:$0x8]
      %v2375 = vld [vmem:[#allocation2 + $0x8] sm:$0xf]
      %v2376 = vld [vmem:[#allocation2 + $0xc] sm:$0xf]
      %v2377 = vld [vmem:[#allocation2 + $0x10] sm:$0xf]
      %v2378 = vld [vmem:[#allocation2 + $0x14] sm:$0xf]
      %v2379 = vld [vmem:[#allocation2 + $0x18] sm:$0xf]
      %v2380 = vld [vmem:[#allocation2 + $0x1c] sm:$0xf]
      %v2381 = vld [vmem:[#allocation2 + $0x20] sm:$0xf]
      %v2382 = vld [vmem:[#allocation2 + $0x24] sm:$0xf]
      %v2383 = vld [vmem:[#allocation2 + $0x28] sm:$0xf]
      %v2384 = vld [vmem:[#allocation2 + $0x2c] sm:$0xf]
      %s2385 = scalar_lea.vmem %s3, 192
      %v2386 = vld [vmem:[%s2385] sm:$0xf]
      %v2387 = vld [vmem:[%s2385 + $0x4] sm:$0xf]
      %v2388 = vld [vmem:[%s2385 + $0x8] sm:$0xf]
      %v2389 = vld [vmem:[%s2385 + $0xc] sm:$0xf]
      %v2390 = vld [vmem:[%s2385 + $0x10] sm:$0xf]
      %v2391 = vld [vmem:[%s2385 + $0x14] sm:$0xf]
      %v2392 = vld [vmem:[%s2385 + $0x18] sm:$0xf]
      %v2393 = vld [vmem:[%s2385 + $0x1c] sm:$0xf]
      %v2394 = vld [vmem:[%s2385 + $0x20] sm:$0xf]
      %v2395 = vld [vmem:[%s2385 + $0x24] sm:$0xf]
      %v2396 = vld [vmem:[%s2385 + $0x28] sm:$0xf]
      %v2397 = vld [vmem:[%s2385 + $0x2c] sm:$0xf]
      %v2398 = vld [vmem:[%s2385 + $0x30] sm:$0xf]
      %v2399 = vld [vmem:[%s2385 + $0x34] sm:$0xf]
      %v2400 = vld [vmem:[%s2385 + $0x38] sm:$0xf]
      %v2401 = vld [vmem:[%s2385 + $0x3c] sm:$0xf]
      %v2413 = vunpack.c.l.b16 %v2374
      %v2414 = vunpack.c.l.b16 %v2375
      %v2415 = vunpack.c.l.b16 %v2376
      %v2416 = vunpack.c.l.b16 %v2377
      %v2417 = vunpack.c.l.b16 %v2378
      %v2418 = vunpack.c.l.b16 %v2379
      %v2419 = vunpack.c.l.b16 %v2380
      %v2420 = vunpack.c.l.b16 %v2381
      %v2421 = vunpack.c.l.b16 %v2382
      %v2422 = vunpack.c.l.b16 %v2383
      %v2423 = vunpack.c.l.b16 %v2384
      %v2424 = vpack.c.b16 %v2414, %v2413
      %v2425 = vpack.c.b16 %v2416, %v2415
      %v2426 = vpack.c.b16 %v2418, %v2417
      %v2427 = vpack.c.b16 %v2420, %v2419
      %v2428 = vpack.c.b16 %v2422, %v2421
      %v2429 = vpack.c.b16 %v2423, %v2423
      %v2431 = vshrl.u32 %v2424, 16
      %v2433 = vrot.slane %v2431, 3
      %v2434 = vshll.u32 %v2424, 16
      %v2436 = vrot.slane %v2434, 4
      %v2437 = vor.u32 %v2433, %v2436
      %v2439 = vshrl.u32 %v2425, 16
      %v2441 = vrot.slane %v2439, 3
      %v2442 = vshll.u32 %v2425, 16
      %v2444 = vrot.slane %v2442, 4
      %v2445 = vor.u32 %v2441, %v2444
      %v2446 = vsel %vm2203, %v2437, %v2445
      %v2448 = vshrl.u32 %v2426, 16
      %v2450 = vrot.slane %v2448, 3
      %v2451 = vshll.u32 %v2426, 16
      %v2453 = vrot.slane %v2451, 4
      %v2454 = vor.u32 %v2450, %v2453
      %v2455 = vsel %vm2203, %v2445, %v2454
      %v2457 = vshrl.u32 %v2427, 16
      %v2459 = vrot.slane %v2457, 3
      %v2460 = vshll.u32 %v2427, 16
      %v2462 = vrot.slane %v2460, 4
      %v2463 = vor.u32 %v2459, %v2462
      %v2464 = vsel %vm2203, %v2454, %v2463
      %v2466 = vshrl.u32 %v2428, 16
      %v2468 = vrot.slane %v2466, 3
      %v2469 = vshll.u32 %v2428, 16
      %v2471 = vrot.slane %v2469, 4
      %v2472 = vor.u32 %v2468, %v2471
      %v2473 = vsel %vm2203, %v2463, %v2472
      %v2475 = vshrl.u32 %v2429, 16
      %v2477 = vrot.slane %v2475, 3
      %v2478 = vshll.u32 %v2429, 16
      %v2480 = vrot.slane %v2478, 4
      %v2481 = vor.u32 %v2477, %v2480
      %v2482 = vsel %vm2203, %v2472, %v2481
      %v2504 = vunpack.c.l.b16 %v2386
      %v2505 = vunpack.c.l.b16 %v2387
      %v2506 = vunpack.c.l.b16 %v2388
      %v2507 = vunpack.c.l.b16 %v2389
      %v2508 = vunpack.c.l.b16 %v2390
      %v2509 = vunpack.c.l.b16 %v2391
      %v2510 = vunpack.c.l.b16 %v2392
      %v2511 = vunpack.c.l.b16 %v2393
      %v2512 = vunpack.c.l.b16 %v2394
      %v2513 = vunpack.c.l.b16 %v2395
      %v2514 = vunpack.c.l.b16 %v2396
      %v2515 = vunpack.c.l.b16 %v2397
      %v2516 = vunpack.c.l.b16 %v2398
      %v2517 = vunpack.c.l.b16 %v2399
      %v2518 = vunpack.c.l.b16 %v2400
      %v2519 = vunpack.c.l.b16 %v2401
      %v2520 = vpack.c.b16 %v2505, %v2504
      %v2521 = vpack.c.b16 %v2507, %v2506
      %v2522 = vpack.c.b16 %v2509, %v2508
      %v2523 = vpack.c.b16 %v2511, %v2510
      %v2524 = vpack.c.b16 %v2513, %v2512
      %v2525 = vpack.c.b16 %v2515, %v2514
      %v2526 = vpack.c.b16 %v2517, %v2516
      %v2527 = vpack.c.b16 %v2519, %v2518
      %2536 = vmatpush.bf16.msra.mxu0 %v2527
      %2537 = vmatpush.bf16.msra.mxu0 %v2526
      %2538 = vmatpush.bf16.msra.mxu0 %v2525
      %2539 = vmatpush.bf16.msra.mxu0 %v2524
      %2540 = vmatpush.bf16.msra.mxu0 %v2523
      %2541 = vmatpush.bf16.msra.mxu0 %v2522
      %2542 = vmatpush.bf16.msra.mxu0 %v2521
      %2543 = vmatpush.bf16.msra.mxu0 %v2520
      %2544 = vmatmul.bf16.gmra.mxu0 %v2446
      %v2545 = vpop.f32.mrf.mxu0
      %v2546 = vadd.f32 0.0, %v2545
      %v2547 = vpop.f32.mrf.mxu0
      %v2548 = vadd.f32 0.0, %v2547
      %2549 = vmatmul.bf16.gmra.mxu0 %v2455
      %v2550 = vpop.f32.mrf.mxu0
      %v2551 = vadd.f32 0.0, %v2550
      %v2552 = vpop.f32.mrf.mxu0
      %v2553 = vadd.f32 0.0, %v2552
      %2554 = vmatmul.bf16.gmra.mxu0 %v2464
      %v2555 = vpop.f32.mrf.mxu0
      %v2556 = vadd.f32 0.0, %v2555
      %v2557 = vpop.f32.mrf.mxu0
      %v2558 = vadd.f32 0.0, %v2557
      %2559 = vmatmul.bf16.gmra.mxu0 %v2473
      %v2560 = vpop.f32.mrf.mxu0
      %v2561 = vadd.f32 0.0, %v2560
      %v2562 = vpop.f32.mrf.mxu0
      %v2563 = vadd.f32 0.0, %v2562
      %2564 = vmatmul.bf16.gmra.mxu0 %v2482
      %v2565 = vpop.f32.mrf.mxu0
      %v2566 = vadd.f32 0.0, %v2565
      %v2567 = vpop.f32.mrf.mxu0
      %v2568 = vadd.f32 0.0, %v2567
      %2569 = vdwg.mxu0
      %v2570 = vadd.f32 %v2364, %v2546
      %v2571 = vadd.f32 %v2365, %v2548
      %v2572 = vadd.f32 %v2366, %v2551
      %v2573 = vadd.f32 %v2367, %v2553
      %v2574 = vadd.f32 %v2368, %v2556
      %v2575 = vadd.f32 %v2369, %v2558
      %v2576 = vadd.f32 %v2370, %v2561
      %v2577 = vadd.f32 %v2371, %v2563
      %v2578 = vadd.f32 %v2372, %v2566
      %v2579 = vadd.f32 %v2373, %v2568
      %2580 = vst [vmem:[#allocation3] sm:$0xff] %v2570
      %2581 = vst [vmem:[#allocation3 + $0x8] sm:$0xff] %v2571
      %2582 = vst [vmem:[#allocation3 + $0x10] sm:$0xff] %v2572
      %2583 = vst [vmem:[#allocation3 + $0x18] sm:$0xff] %v2573
      %2584 = vst [vmem:[#allocation3 + $0x20] sm:$0xff] %v2574
      %2585 = vst [vmem:[#allocation3 + $0x28] sm:$0xff] %v2575
      %2586 = vst [vmem:[#allocation3 + $0x30] sm:$0xff] %v2576
      %2587 = vst [vmem:[#allocation3 + $0x38] sm:$0xff] %v2577
      %2588 = vst [vmem:[#allocation3 + $0x40] sm:$0xff] %v2578
      %2589 = vst [vmem:[#allocation3 + $0x48] sm:$0xff] %v2579
      %v2590 = vld [vmem:[#allocation3] sm:$0xff]
      %v2591 = vld [vmem:[#allocation3 + $0x8] sm:$0xff]
      %v2592 = vld [vmem:[#allocation3 + $0x10] sm:$0xff]
      %v2593 = vld [vmem:[#allocation3 + $0x18] sm:$0xff]
      %v2594 = vld [vmem:[#allocation3 + $0x20] sm:$0xff]
      %v2595 = vld [vmem:[#allocation3 + $0x28] sm:$0xff]
      %v2596 = vld [vmem:[#allocation3 + $0x30] sm:$0xff]
      %v2597 = vld [vmem:[#allocation3 + $0x38] sm:$0xff]
      %v2598 = vld [vmem:[#allocation3 + $0x40] sm:$0xff]
      %v2599 = vld [vmem:[#allocation3 + $0x48] sm:$0xff]
      %v2600 = vld [vmem:[#allocation2 + $0x8] sm:$0xf]
      %v2601 = vld [vmem:[#allocation2 + $0xc] sm:$0xf]
      %v2602 = vld [vmem:[#allocation2 + $0x10] sm:$0xf]
      %v2603 = vld [vmem:[#allocation2 + $0x14] sm:$0xf]
      %v2604 = vld [vmem:[#allocation2 + $0x18] sm:$0xf]
      %v2605 = vld [vmem:[#allocation2 + $0x1c] sm:$0xf]
      %v2606 = vld [vmem:[#allocation2 + $0x20] sm:$0xf]
      %v2607 = vld [vmem:[#allocation2 + $0x24] sm:$0xf]
      %v2608 = vld [vmem:[#allocation2 + $0x28] sm:$0xf]
      %v2609 = vld [vmem:[#allocation2 + $0x2c] sm:$0xf]
      %s2610 = scalar_lea.vmem %s3, 256
      %v2611 = vld [vmem:[%s2610] sm:$0xf]
      %v2612 = vld [vmem:[%s2610 + $0x4] sm:$0xf]
      %v2613 = vld [vmem:[%s2610 + $0x8] sm:$0xf]
      %v2614 = vld [vmem:[%s2610 + $0xc] sm:$0xf]
      %v2615 = vld [vmem:[%s2610 + $0x10] sm:$0xf]
      %v2616 = vld [vmem:[%s2610 + $0x14] sm:$0xf]
      %v2617 = vld [vmem:[%s2610 + $0x18] sm:$0xf]
      %v2618 = vld [vmem:[%s2610 + $0x1c] sm:$0xf]
      %v2619 = vld [vmem:[%s2610 + $0x20] sm:$0xf]
      %v2620 = vld [vmem:[%s2610 + $0x24] sm:$0xf]
      %v2621 = vld [vmem:[%s2610 + $0x28] sm:$0xf]
      %v2622 = vld [vmem:[%s2610 + $0x2c] sm:$0xf]
      %v2623 = vld [vmem:[%s2610 + $0x30] sm:$0xf]
      %v2624 = vld [vmem:[%s2610 + $0x34] sm:$0xf]
      %v2625 = vld [vmem:[%s2610 + $0x38] sm:$0xf]
      %v2626 = vld [vmem:[%s2610 + $0x3c] sm:$0xf]
      %v2637 = vunpack.c.l.b16 %v2600
      %v2638 = vunpack.c.l.b16 %v2601
      %v2639 = vunpack.c.l.b16 %v2602
      %v2640 = vunpack.c.l.b16 %v2603
      %v2641 = vunpack.c.l.b16 %v2604
      %v2642 = vunpack.c.l.b16 %v2605
      %v2643 = vunpack.c.l.b16 %v2606
      %v2644 = vunpack.c.l.b16 %v2607
      %v2645 = vunpack.c.l.b16 %v2608
      %v2646 = vunpack.c.l.b16 %v2609
      %v2647 = vpack.c.b16 %v2638, %v2637
      %v2648 = vpack.c.b16 %v2640, %v2639
      %v2649 = vpack.c.b16 %v2642, %v2641
      %v2650 = vpack.c.b16 %v2644, %v2643
      %v2651 = vpack.c.b16 %v2646, %v2645
      %v2673 = vunpack.c.l.b16 %v2611
      %v2674 = vunpack.c.l.b16 %v2612
      %v2675 = vunpack.c.l.b16 %v2613
      %v2676 = vunpack.c.l.b16 %v2614
      %v2677 = vunpack.c.l.b16 %v2615
      %v2678 = vunpack.c.l.b16 %v2616
      %v2679 = vunpack.c.l.b16 %v2617
      %v2680 = vunpack.c.l.b16 %v2618
      %v2681 = vunpack.c.l.b16 %v2619
      %v2682 = vunpack.c.l.b16 %v2620
      %v2683 = vunpack.c.l.b16 %v2621
      %v2684 = vunpack.c.l.b16 %v2622
      %v2685 = vunpack.c.l.b16 %v2623
      %v2686 = vunpack.c.l.b16 %v2624
      %v2687 = vunpack.c.l.b16 %v2625
      %v2688 = vunpack.c.l.b16 %v2626
      %v2689 = vpack.c.b16 %v2674, %v2673
      %v2690 = vpack.c.b16 %v2676, %v2675
      %v2691 = vpack.c.b16 %v2678, %v2677
      %v2692 = vpack.c.b16 %v2680, %v2679
      %v2693 = vpack.c.b16 %v2682, %v2681
      %v2694 = vpack.c.b16 %v2684, %v2683
      %v2695 = vpack.c.b16 %v2686, %v2685
      %v2696 = vpack.c.b16 %v2688, %v2687
      %2705 = vmatpush.bf16.msra.mxu0 %v2696
      %2706 = vmatpush.bf16.msra.mxu0 %v2695
      %2707 = vmatpush.bf16.msra.mxu0 %v2694
      %2708 = vmatpush.bf16.msra.mxu0 %v2693
      %2709 = vmatpush.bf16.msra.mxu0 %v2692
      %2710 = vmatpush.bf16.msra.mxu0 %v2691
      %2711 = vmatpush.bf16.msra.mxu0 %v2690
      %2712 = vmatpush.bf16.msra.mxu0 %v2689
      %2713 = vmatmul.bf16.gmra.mxu0 %v2647
      %v2714 = vpop.f32.mrf.mxu0
      %v2715 = vadd.f32 0.0, %v2714
      %v2716 = vpop.f32.mrf.mxu0
      %v2717 = vadd.f32 0.0, %v2716
      %2718 = vmatmul.bf16.gmra.mxu0 %v2648
      %v2719 = vpop.f32.mrf.mxu0
      %v2720 = vadd.f32 0.0, %v2719
      %v2721 = vpop.f32.mrf.mxu0
      %v2722 = vadd.f32 0.0, %v2721
      %2723 = vmatmul.bf16.gmra.mxu0 %v2649
      %v2724 = vpop.f32.mrf.mxu0
      %v2725 = vadd.f32 0.0, %v2724
      %v2726 = vpop.f32.mrf.mxu0
      %v2727 = vadd.f32 0.0, %v2726
      %2728 = vmatmul.bf16.gmra.mxu0 %v2650
      %v2729 = vpop.f32.mrf.mxu0
      %v2730 = vadd.f32 0.0, %v2729
      %v2731 = vpop.f32.mrf.mxu0
      %v2732 = vadd.f32 0.0, %v2731
      %2733 = vmatmul.bf16.gmra.mxu0 %v2651
      %v2734 = vpop.f32.mrf.mxu0
      %v2735 = vadd.f32 0.0, %v2734
      %v2736 = vpop.f32.mrf.mxu0
      %v2737 = vadd.f32 0.0, %v2736
      %2738 = vdwg.mxu0
      %v2739 = vadd.f32 %v2590, %v2715
      %v2740 = vadd.f32 %v2591, %v2717
      %v2741 = vadd.f32 %v2592, %v2720
      %v2742 = vadd.f32 %v2593, %v2722
      %v2743 = vadd.f32 %v2594, %v2725
      %v2744 = vadd.f32 %v2595, %v2727
      %v2745 = vadd.f32 %v2596, %v2730
      %v2746 = vadd.f32 %v2597, %v2732
      %v2747 = vadd.f32 %v2598, %v2735
      %v2748 = vadd.f32 %v2599, %v2737
      %2749 = vst [vmem:[#allocation3] sm:$0xff] %v2739
      %2750 = vst [vmem:[#allocation3 + $0x8] sm:$0xff] %v2740
      %2751 = vst [vmem:[#allocation3 + $0x10] sm:$0xff] %v2741
      %2752 = vst [vmem:[#allocation3 + $0x18] sm:$0xff] %v2742
      %2753 = vst [vmem:[#allocation3 + $0x20] sm:$0xff] %v2743
      %2754 = vst [vmem:[#allocation3 + $0x28] sm:$0xff] %v2744
      %2755 = vst [vmem:[#allocation3 + $0x30] sm:$0xff] %v2745
      %2756 = vst [vmem:[#allocation3 + $0x38] sm:$0xff] %v2746
      %2757 = vst [vmem:[#allocation3 + $0x40] sm:$0xff] %v2747
      %2758 = vst [vmem:[#allocation3 + $0x48] sm:$0xff] %v2748
      %v2759 = vld [vmem:[#allocation3] sm:$0xff]
      %v2760 = vld [vmem:[#allocation3 + $0x8] sm:$0xff]
      %v2761 = vld [vmem:[#allocation3 + $0x10] sm:$0xff]
      %v2762 = vld [vmem:[#allocation3 + $0x18] sm:$0xff]
      %v2763 = vld [vmem:[#allocation3 + $0x20] sm:$0xff]
      %v2764 = vld [vmem:[#allocation3 + $0x28] sm:$0xff]
      %v2765 = vld [vmem:[#allocation3 + $0x30] sm:$0xff]
      %v2766 = vld [vmem:[#allocation3 + $0x38] sm:$0xff]
      %v2767 = vld [vmem:[#allocation3 + $0x40] sm:$0xff]
      %v2768 = vld [vmem:[#allocation3 + $0x48] sm:$0xff]
      %v2769 = vld [vmem:[#allocation2 + $0x8] sm:$0xf]
      %v2770 = vld [vmem:[#allocation2 + $0xc] sm:$0xf]
      %v2771 = vld [vmem:[#allocation2 + $0x10] sm:$0xf]
      %v2772 = vld [vmem:[#allocation2 + $0x14] sm:$0xf]
      %v2773 = vld [vmem:[#allocation2 + $0x18] sm:$0xf]
      %v2774 = vld [vmem:[#allocation2 + $0x1c] sm:$0xf]
      %v2775 = vld [vmem:[#allocation2 + $0x20] sm:$0xf]
      %v2776 = vld [vmem:[#allocation2 + $0x24] sm:$0xf]
      %v2777 = vld [vmem:[#allocation2 + $0x28] sm:$0xf]
      %v2778 = vld [vmem:[#allocation2 + $0x2c] sm:$0xf]
      %v2779 = vld [vmem:[#allocation2 + $0x30] sm:$0x1]
      %s2780 = scalar_lea.vmem %s3, 320
      %v2781 = vld [vmem:[%s2780] sm:$0xf]
      %v2782 = vld [vmem:[%s2780 + $0x4] sm:$0xf]
      %v2783 = vld [vmem:[%s2780 + $0x8] sm:$0xf]
      %v2784 = vld [vmem:[%s2780 + $0xc] sm:$0xf]
      %v2785 = vld [vmem:[%s2780 + $0x10] sm:$0xf]
      %v2786 = vld [vmem:[%s2780 + $0x14] sm:$0xf]
      %v2787 = vld [vmem:[%s2780 + $0x18] sm:$0xf]
      %v2788 = vld [vmem:[%s2780 + $0x1c] sm:$0xf]
      %v2789 = vld [vmem:[%s2780 + $0x20] sm:$0xf]
      %v2790 = vld [vmem:[%s2780 + $0x24] sm:$0xf]
      %v2791 = vld [vmem:[%s2780 + $0x28] sm:$0xf]
      %v2792 = vld [vmem:[%s2780 + $0x2c] sm:$0xf]
      %v2793 = vld [vmem:[%s2780 + $0x30] sm:$0xf]
      %v2794 = vld [vmem:[%s2780 + $0x34] sm:$0xf]
      %v2795 = vld [vmem:[%s2780 + $0x38] sm:$0xf]
      %v2796 = vld [vmem:[%s2780 + $0x3c] sm:$0xf]
      %v2808 = vunpack.c.l.b16 %v2769
      %v2809 = vunpack.c.l.b16 %v2770
      %v2810 = vunpack.c.l.b16 %v2771
      %v2811 = vunpack.c.l.b16 %v2772
      %v2812 = vunpack.c.l.b16 %v2773
      %v2813 = vunpack.c.l.b16 %v2774
      %v2814 = vunpack.c.l.b16 %v2775
      %v2815 = vunpack.c.l.b16 %v2776
      %v2816 = vunpack.c.l.b16 %v2777
      %v2817 = vunpack.c.l.b16 %v2778
      %v2818 = vunpack.c.l.b16 %v2779
      %v2819 = vpack.c.b16 %v2809, %v2808
      %v2820 = vpack.c.b16 %v2811, %v2810
      %v2821 = vpack.c.b16 %v2813, %v2812
      %v2822 = vpack.c.b16 %v2815, %v2814
      %v2823 = vpack.c.b16 %v2817, %v2816
      %v2824 = vpack.c.b16 %v2818, %v2818
      %v2826 = vshrl.u32 %v2819, 16
      %v2828 = vshll.u32 %v2819, 16
      %v2830 = vrot.slane %v2828, 1
      %v2831 = vor.u32 %v2826, %v2830
      %v2833 = vshll.u32 %v2820, 16
      %v2835 = vrot.slane %v2833, 1
      %v2836 = vsel %vm622, %v2831, %v2835
      %v2837 = vshrl.u32 %v2820, 16
      %v2839 = vor.u32 %v2837, %v2835
      %v2841 = vshll.u32 %v2821, 16
      %v2843 = vrot.slane %v2841, 1
      %v2844 = vsel %vm622, %v2839, %v2843
      %v2845 = vshrl.u32 %v2821, 16
      %v2847 = vor.u32 %v2845, %v2843
      %v2849 = vshll.u32 %v2822, 16
      %v2851 = vrot.slane %v2849, 1
      %v2852 = vsel %vm622, %v2847, %v2851
      %v2853 = vshrl.u32 %v2822, 16
      %v2855 = vor.u32 %v2853, %v2851
      %v2857 = vshll.u32 %v2823, 16
      %v2859 = vrot.slane %v2857, 1
      %v2860 = vsel %vm622, %v2855, %v2859
      %v2861 = vshrl.u32 %v2823, 16
      %v2863 = vor.u32 %v2861, %v2859
      %v2865 = vshll.u32 %v2824, 16
      %v2867 = vrot.slane %v2865, 1
      %v2868 = vsel %vm622, %v2863, %v2867
      %v2890 = vunpack.c.l.b16 %v2781
      %v2891 = vunpack.c.l.b16 %v2782
      %v2892 = vunpack.c.l.b16 %v2783
      %v2893 = vunpack.c.l.b16 %v2784
      %v2894 = vunpack.c.l.b16 %v2785
      %v2895 = vunpack.c.l.b16 %v2786
      %v2896 = vunpack.c.l.b16 %v2787
      %v2897 = vunpack.c.l.b16 %v2788
      %v2898 = vunpack.c.l.b16 %v2789
      %v2899 = vunpack.c.l.b16 %v2790
      %v2900 = vunpack.c.l.b16 %v2791
      %v2901 = vunpack.c.l.b16 %v2792
      %v2902 = vunpack.c.l.b16 %v2793
      %v2903 = vunpack.c.l.b16 %v2794
      %v2904 = vunpack.c.l.b16 %v2795
      %v2905 = vunpack.c.l.b16 %v2796
      %v2906 = vpack.c.b16 %v2891, %v2890
      %v2907 = vpack.c.b16 %v2893, %v2892
      %v2908 = vpack.c.b16 %v2895, %v2894
      %v2909 = vpack.c.b16 %v2897, %v2896
      %v2910 = vpack.c.b16 %v2899, %v2898
      %v2911 = vpack.c.b16 %v2901, %v2900
      %v2912 = vpack.c.b16 %v2903, %v2902
      %v2913 = vpack.c.b16 %v2905, %v2904
      %2922 = vmatpush.bf16.msra.mxu0 %v2913
      %2923 = vmatpush.bf16.msra.mxu0 %v2912
      %2924 = vmatpush.bf16.msra.mxu0 %v2911
      %2925 = vmatpush.bf16.msra.mxu0 %v2910
      %2926 = vmatpush.bf16.msra.mxu0 %v2909
      %2927 = vmatpush.bf16.msra.mxu0 %v2908
      %2928 = vmatpush.bf16.msra.mxu0 %v2907
      %2929 = vmatpush.bf16.msra.mxu0 %v2906
      %2930 = vmatmul.bf16.gmra.mxu0 %v2836
      %v2931 = vpop.f32.mrf.mxu0
      %v2932 = vadd.f32 0.0, %v2931
      %v2933 = vpop.f32.mrf.mxu0
      %v2934 = vadd.f32 0.0, %v2933
      %2935 = vmatmul.bf16.gmra.mxu0 %v2844
      %v2936 = vpop.f32.mrf.mxu0
      %v2937 = vadd.f32 0.0, %v2936
      %v2938 = vpop.f32.mrf.mxu0
      %v2939 = vadd.f32 0.0, %v2938
      %2940 = vmatmul.bf16.gmra.mxu0 %v2852
      %v2941 = vpop.f32.mrf.mxu0
      %v2942 = vadd.f32 0.0, %v2941
      %v2943 = vpop.f32.mrf.mxu0
      %v2944 = vadd.f32 0.0, %v2943
      %2945 = vmatmul.bf16.gmra.mxu0 %v2860
      %v2946 = vpop.f32.mrf.mxu0
      %v2947 = vadd.f32 0.0, %v2946
      %v2948 = vpop.f32.mrf.mxu0
      %v2949 = vadd.f32 0.0, %v2948
      %2950 = vmatmul.bf16.gmra.mxu0 %v2868
      %v2951 = vpop.f32.mrf.mxu0
      %v2952 = vadd.f32 0.0, %v2951
      %v2953 = vpop.f32.mrf.mxu0
      %v2954 = vadd.f32 0.0, %v2953
      %2955 = vdwg.mxu0
      %v2956 = vadd.f32 %v2759, %v2932
      %v2957 = vadd.f32 %v2760, %v2934
      %v2958 = vadd.f32 %v2761, %v2937
      %v2959 = vadd.f32 %v2762, %v2939
      %v2960 = vadd.f32 %v2763, %v2942
      %v2961 = vadd.f32 %v2764, %v2944
      %v2962 = vadd.f32 %v2765, %v2947
      %v2963 = vadd.f32 %v2766, %v2949
      %v2964 = vadd.f32 %v2767, %v2952
      %v2965 = vadd.f32 %v2768, %v2954
      %2966 = vst [vmem:[#allocation3] sm:$0xff] %v2956
      %2967 = vst [vmem:[#allocation3 + $0x8] sm:$0xff] %v2957
      %2968 = vst [vmem:[#allocation3 + $0x10] sm:$0xff] %v2958
      %2969 = vst [vmem:[#allocation3 + $0x18] sm:$0xff] %v2959
      %2970 = vst [vmem:[#allocation3 + $0x20] sm:$0xff] %v2960
      %2971 = vst [vmem:[#allocation3 + $0x28] sm:$0xff] %v2961
      %2972 = vst [vmem:[#allocation3 + $0x30] sm:$0xff] %v2962
      %2973 = vst [vmem:[#allocation3 + $0x38] sm:$0xff] %v2963
      %2974 = vst [vmem:[#allocation3 + $0x40] sm:$0xff] %v2964
      %2975 = vst [vmem:[#allocation3 + $0x48] sm:$0xff] %v2965
      %v2976 = vld [vmem:[#allocation3] sm:$0xff]
      %v2977 = vld [vmem:[#allocation3 + $0x8] sm:$0xff]
      %v2978 = vld [vmem:[#allocation3 + $0x10] sm:$0xff]
      %v2979 = vld [vmem:[#allocation3 + $0x18] sm:$0xff]
      %v2980 = vld [vmem:[#allocation3 + $0x20] sm:$0xff]
      %v2981 = vld [vmem:[#allocation3 + $0x28] sm:$0xff]
      %v2982 = vld [vmem:[#allocation3 + $0x30] sm:$0xff]
      %v2983 = vld [vmem:[#allocation3 + $0x38] sm:$0xff]
      %v2984 = vld [vmem:[#allocation3 + $0x40] sm:$0xff]
      %v2985 = vld [vmem:[#allocation3 + $0x48] sm:$0xff]
      %v2986 = vld [vmem:[#allocation2 + $0xc] sm:$0xf]
      %v2987 = vld [vmem:[#allocation2 + $0x10] sm:$0xf]
      %v2988 = vld [vmem:[#allocation2 + $0x14] sm:$0xf]
      %v2989 = vld [vmem:[#allocation2 + $0x18] sm:$0xf]
      %v2990 = vld [vmem:[#allocation2 + $0x1c] sm:$0xf]
      %v2991 = vld [vmem:[#allocation2 + $0x20] sm:$0xf]
      %v2992 = vld [vmem:[#allocation2 + $0x24] sm:$0xf]
      %v2993 = vld [vmem:[#allocation2 + $0x28] sm:$0xf]
      %v2994 = vld [vmem:[#allocation2 + $0x2c] sm:$0xf]
      %v2995 = vld [vmem:[#allocation2 + $0x30] sm:$0xf]
      %v2996 = vld [vmem:[#allocation2 + $0x34] sm:$0x1]
      %s2997 = scalar_lea.vmem %s3, 384
      %v2998 = vld [vmem:[%s2997] sm:$0xf]
      %v2999 = vld [vmem:[%s2997 + $0x4] sm:$0xf]
      %v3000 = vld [vmem:[%s2997 + $0x8] sm:$0xf]
      %v3001 = vld [vmem:[%s2997 + $0xc] sm:$0xf]
      %v3002 = vld [vmem:[%s2997 + $0x10] sm:$0xf]
      %v3003 = vld [vmem:[%s2997 + $0x14] sm:$0xf]
      %v3004 = vld [vmem:[%s2997 + $0x18] sm:$0xf]
      %v3005 = vld [vmem:[%s2997 + $0x1c] sm:$0xf]
      %v3006 = vld [vmem:[%s2997 + $0x20] sm:$0xf]
      %v3007 = vld [vmem:[%s2997 + $0x24] sm:$0xf]
      %v3008 = vld [vmem:[%s2997 + $0x28] sm:$0xf]
      %v3009 = vld [vmem:[%s2997 + $0x2c] sm:$0xf]
      %v3010 = vld [vmem:[%s2997 + $0x30] sm:$0xf]
      %v3011 = vld [vmem:[%s2997 + $0x34] sm:$0xf]
      %v3012 = vld [vmem:[%s2997 + $0x38] sm:$0xf]
      %v3013 = vld [vmem:[%s2997 + $0x3c] sm:$0xf]
      %v3025 = vunpack.c.l.b16 %v2986
      %v3026 = vunpack.c.l.b16 %v2987
      %v3027 = vunpack.c.l.b16 %v2988
      %v3028 = vunpack.c.l.b16 %v2989
      %v3029 = vunpack.c.l.b16 %v2990
      %v3030 = vunpack.c.l.b16 %v2991
      %v3031 = vunpack.c.l.b16 %v2992
      %v3032 = vunpack.c.l.b16 %v2993
      %v3033 = vunpack.c.l.b16 %v2994
      %v3034 = vunpack.c.l.b16 %v2995
      %v3035 = vunpack.c.l.b16 %v2996
      %v3036 = vpack.c.b16 %v3026, %v3025
      %v3037 = vpack.c.b16 %v3028, %v3027
      %v3038 = vpack.c.b16 %v3030, %v3029
      %v3039 = vpack.c.b16 %v3032, %v3031
      %v3040 = vpack.c.b16 %v3034, %v3033
      %v3041 = vpack.c.b16 %v3035, %v3035
      %v3043 = vshrl.u32 %v3036, 16
      %v3045 = vshll.u32 %v3036, 16
      %v3047 = vrot.slane %v3045, 1
      %v3048 = vor.u32 %v3043, %v3047
      %v3050 = vshll.u32 %v3037, 16
      %v3052 = vrot.slane %v3050, 1
      %v3053 = vsel %vm622, %v3048, %v3052
      %v3054 = vshrl.u32 %v3037, 16
      %v3056 = vor.u32 %v3054, %v3052
      %v3058 = vshll.u32 %v3038, 16
      %v3060 = vrot.slane %v3058, 1
      %v3061 = vsel %vm622, %v3056, %v3060
      %v3062 = vshrl.u32 %v3038, 16
      %v3064 = vor.u32 %v3062, %v3060
      %v3066 = vshll.u32 %v3039, 16
      %v3068 = vrot.slane %v3066, 1
      %v3069 = vsel %vm622, %v3064, %v3068
      %v3070 = vshrl.u32 %v3039, 16
      %v3072 = vor.u32 %v3070, %v3068
      %v3074 = vshll.u32 %v3040, 16
      %v3076 = vrot.slane %v3074, 1
      %v3077 = vsel %vm622, %v3072, %v3076
      %v3078 = vshrl.u32 %v3040, 16
      %v3080 = vor.u32 %v3078, %v3076
      %v3082 = vshll.u32 %v3041, 16
      %v3084 = vrot.slane %v3082, 1
      %v3085 = vsel %vm622, %v3080, %v3084
      %v3107 = vunpack.c.l.b16 %v2998
      %v3108 = vunpack.c.l.b16 %v2999
      %v3109 = vunpack.c.l.b16 %v3000
      %v3110 = vunpack.c.l.b16 %v3001
      %v3111 = vunpack.c.l.b16 %v3002
      %v3112 = vunpack.c.l.b16 %v3003
      %v3113 = vunpack.c.l.b16 %v3004
      %v3114 = vunpack.c.l.b16 %v3005
      %v3115 = vunpack.c.l.b16 %v3006
      %v3116 = vunpack.c.l.b16 %v3007
      %v3117 = vunpack.c.l.b16 %v3008
      %v3118 = vunpack.c.l.b16 %v3009
      %v3119 = vunpack.c.l.b16 %v3010
      %v3120 = vunpack.c.l.b16 %v3011
      %v3121 = vunpack.c.l.b16 %v3012
      %v3122 = vunpack.c.l.b16 %v3013
      %v3123 = vpack.c.b16 %v3108, %v3107
      %v3124 = vpack.c.b16 %v3110, %v3109
      %v3125 = vpack.c.b16 %v3112, %v3111
      %v3126 = vpack.c.b16 %v3114, %v3113
      %v3127 = vpack.c.b16 %v3116, %v3115
      %v3128 = vpack.c.b16 %v3118, %v3117
      %v3129 = vpack.c.b16 %v3120, %v3119
      %v3130 = vpack.c.b16 %v3122, %v3121
      %3139 = vmatpush.bf16.msra.mxu0 %v3130
      %3140 = vmatpush.bf16.msra.mxu0 %v3129
      %3141 = vmatpush.bf16.msra.mxu0 %v3128
      %3142 = vmatpush.bf16.msra.mxu0 %v3127
      %3143 = vmatpush.bf16.msra.mxu0 %v3126
      %3144 = vmatpush.bf16.msra.mxu0 %v3125
      %3145 = vmatpush.bf16.msra.mxu0 %v3124
      %3146 = vmatpush.bf16.msra.mxu0 %v3123
      %3147 = vmatmul.bf16.gmra.mxu0 %v3053
      %v3148 = vpop.f32.mrf.mxu0
      %v3149 = vadd.f32 0.0, %v3148
      %v3150 = vpop.f32.mrf.mxu0
      %v3151 = vadd.f32 0.0, %v3150
      %3152 = vmatmul.bf16.gmra.mxu0 %v3061
      %v3153 = vpop.f32.mrf.mxu0
      %v3154 = vadd.f32 0.0, %v3153
      %v3155 = vpop.f32.mrf.mxu0
      %v3156 = vadd.f32 0.0, %v3155
      %3157 = vmatmul.bf16.gmra.mxu0 %v3069
      %v3158 = vpop.f32.mrf.mxu0
      %v3159 = vadd.f32 0.0, %v3158
      %v3160 = vpop.f32.mrf.mxu0
      %v3161 = vadd.f32 0.0, %v3160
      %3162 = vmatmul.bf16.gmra.mxu0 %v3077
      %v3163 = vpop.f32.mrf.mxu0
      %v3164 = vadd.f32 0.0, %v3163
      %v3165 = vpop.f32.mrf.mxu0
      %v3166 = vadd.f32 0.0, %v3165
      %3167 = vmatmul.bf16.gmra.mxu0 %v3085
      %v3168 = vpop.f32.mrf.mxu0
      %v3169 = vadd.f32 0.0, %v3168
      %v3170 = vpop.f32.mrf.mxu0
      %v3171 = vadd.f32 0.0, %v3170
      %3172 = vdwg.mxu0
      %v3173 = vadd.f32 %v2976, %v3149
      %v3174 = vadd.f32 %v2977, %v3151
      %v3175 = vadd.f32 %v2978, %v3154
      %v3176 = vadd.f32 %v2979, %v3156
      %v3177 = vadd.f32 %v2980, %v3159
      %v3178 = vadd.f32 %v2981, %v3161
      %v3179 = vadd.f32 %v2982, %v3164
      %v3180 = vadd.f32 %v2983, %v3166
      %v3181 = vadd.f32 %v2984, %v3169
      %v3182 = vadd.f32 %v2985, %v3171
      %3183 = vst [vmem:[#allocation3] sm:$0xff] %v3173
      %3184 = vst [vmem:[#allocation3 + $0x8] sm:$0xff] %v3174
      %3185 = vst [vmem:[#allocation3 + $0x10] sm:$0xff] %v3175
      %3186 = vst [vmem:[#allocation3 + $0x18] sm:$0xff] %v3176
      %3187 = vst [vmem:[#allocation3 + $0x20] sm:$0xff] %v3177
      %3188 = vst [vmem:[#allocation3 + $0x28] sm:$0xff] %v3178
      %3189 = vst [vmem:[#allocation3 + $0x30] sm:$0xff] %v3179
      %3190 = vst [vmem:[#allocation3 + $0x38] sm:$0xff] %v3180
      %3191 = vst [vmem:[#allocation3 + $0x40] sm:$0xff] %v3181
      %3192 = vst [vmem:[#allocation3 + $0x48] sm:$0xff] %v3182
      %v3193 = vld [vmem:[#allocation3] sm:$0xff]
      %v3194 = vld [vmem:[#allocation3 + $0x8] sm:$0xff]
      %v3195 = vld [vmem:[#allocation3 + $0x10] sm:$0xff]
      %v3196 = vld [vmem:[#allocation3 + $0x18] sm:$0xff]
      %v3197 = vld [vmem:[#allocation3 + $0x20] sm:$0xff]
      %v3198 = vld [vmem:[#allocation3 + $0x28] sm:$0xff]
      %v3199 = vld [vmem:[#allocation3 + $0x30] sm:$0xff]
      %v3200 = vld [vmem:[#allocation3 + $0x38] sm:$0xff]
      %v3201 = vld [vmem:[#allocation3 + $0x40] sm:$0xff]
      %v3202 = vld [vmem:[#allocation3 + $0x48] sm:$0xff]
      %v3203 = vld [vmem:[#allocation2 + $0xc] sm:$0xe]
      %v3204 = vld [vmem:[#allocation2 + $0x10] sm:$0xf]
      %v3205 = vld [vmem:[#allocation2 + $0x14] sm:$0xf]
      %v3206 = vld [vmem:[#allocation2 + $0x18] sm:$0xf]
      %v3207 = vld [vmem:[#allocation2 + $0x1c] sm:$0xf]
      %v3208 = vld [vmem:[#allocation2 + $0x20] sm:$0xf]
      %v3209 = vld [vmem:[#allocation2 + $0x24] sm:$0xf]
      %v3210 = vld [vmem:[#allocation2 + $0x28] sm:$0xf]
      %v3211 = vld [vmem:[#allocation2 + $0x2c] sm:$0xf]
      %v3212 = vld [vmem:[#allocation2 + $0x30] sm:$0xf]
      %v3213 = vld [vmem:[#allocation2 + $0x34] sm:$0x1]
      %s3214 = scalar_lea.vmem %s3, 448
      %v3215 = vld [vmem:[%s3214] sm:$0xf]
      %v3216 = vld [vmem:[%s3214 + $0x4] sm:$0xf]
      %v3217 = vld [vmem:[%s3214 + $0x8] sm:$0xf]
      %v3218 = vld [vmem:[%s3214 + $0xc] sm:$0xf]
      %v3219 = vld [vmem:[%s3214 + $0x10] sm:$0xf]
      %v3220 = vld [vmem:[%s3214 + $0x14] sm:$0xf]
      %v3221 = vld [vmem:[%s3214 + $0x18] sm:$0xf]
      %v3222 = vld [vmem:[%s3214 + $0x1c] sm:$0xf]
      %v3223 = vld [vmem:[%s3214 + $0x20] sm:$0xf]
      %v3224 = vld [vmem:[%s3214 + $0x24] sm:$0xf]
      %v3225 = vld [vmem:[%s3214 + $0x28] sm:$0xf]
      %v3226 = vld [vmem:[%s3214 + $0x2c] sm:$0xf]
      %v3227 = vld [vmem:[%s3214 + $0x30] sm:$0xf]
      %v3228 = vld [vmem:[%s3214 + $0x34] sm:$0xf]
      %v3229 = vld [vmem:[%s3214 + $0x38] sm:$0xf]
      %v3230 = vld [vmem:[%s3214 + $0x3c] sm:$0xf]
      %v3242 = vunpack.c.l.b16 %v3203
      %v3243 = vunpack.c.l.b16 %v3204
      %v3244 = vunpack.c.l.b16 %v3205
      %v3245 = vunpack.c.l.b16 %v3206
      %v3246 = vunpack.c.l.b16 %v3207
      %v3247 = vunpack.c.l.b16 %v3208
      %v3248 = vunpack.c.l.b16 %v3209
      %v3249 = vunpack.c.l.b16 %v3210
      %v3250 = vunpack.c.l.b16 %v3211
      %v3251 = vunpack.c.l.b16 %v3212
      %v3252 = vunpack.c.l.b16 %v3213
      %v3253 = vpack.c.b16 %v3243, %v3242
      %v3254 = vpack.c.b16 %v3245, %v3244
      %v3255 = vpack.c.b16 %v3247, %v3246
      %v3256 = vpack.c.b16 %v3249, %v3248
      %v3257 = vpack.c.b16 %v3251, %v3250
      %v3258 = vpack.c.b16 %v3252, %v3252
      %v3259 = vrot.slane %v3253, 1
      %v3260 = vrot.slane %v3254, 1
      %v3261 = vsel %vm1197, %v3259, %v3260
      %v3262 = vrot.slane %v3255, 1
      %v3263 = vsel %vm1197, %v3260, %v3262
      %v3264 = vrot.slane %v3256, 1
      %v3265 = vsel %vm1197, %v3262, %v3264
      %v3266 = vrot.slane %v3257, 1
      %v3267 = vsel %vm1197, %v3264, %v3266
      %v3268 = vrot.slane %v3258, 1
      %v3269 = vsel %vm1197, %v3266, %v3268
      %v3291 = vunpack.c.l.b16 %v3215
      %v3292 = vunpack.c.l.b16 %v3216
      %v3293 = vunpack.c.l.b16 %v3217
      %v3294 = vunpack.c.l.b16 %v3218
      %v3295 = vunpack.c.l.b16 %v3219
      %v3296 = vunpack.c.l.b16 %v3220
      %v3297 = vunpack.c.l.b16 %v3221
      %v3298 = vunpack.c.l.b16 %v3222
      %v3299 = vunpack.c.l.b16 %v3223
      %v3300 = vunpack.c.l.b16 %v3224
      %v3301 = vunpack.c.l.b16 %v3225
      %v3302 = vunpack.c.l.b16 %v3226
      %v3303 = vunpack.c.l.b16 %v3227
      %v3304 = vunpack.c.l.b16 %v3228
      %v3305 = vunpack.c.l.b16 %v3229
      %v3306 = vunpack.c.l.b16 %v3230
      %v3307 = vpack.c.b16 %v3292, %v3291
      %v3308 = vpack.c.b16 %v3294, %v3293
      %v3309 = vpack.c.b16 %v3296, %v3295
      %v3310 = vpack.c.b16 %v3298, %v3297
      %v3311 = vpack.c.b16 %v3300, %v3299
      %v3312 = vpack.c.b16 %v3302, %v3301
      %v3313 = vpack.c.b16 %v3304, %v3303
      %v3314 = vpack.c.b16 %v3306, %v3305
      %3323 = vmatpush.bf16.msra.mxu0 %v3314
      %3324 = vmatpush.bf16.msra.mxu0 %v3313
      %3325 = vmatpush.bf16.msra.mxu0 %v3312
      %3326 = vmatpush.bf16.msra.mxu0 %v3311
      %3327 = vmatpush.bf16.msra.mxu0 %v3310
      %3328 = vmatpush.bf16.msra.mxu0 %v3309
      %3329 = vmatpush.bf16.msra.mxu0 %v3308
      %3330 = vmatpush.bf16.msra.mxu0 %v3307
      %3331 = vmatmul.bf16.gmra.mxu0 %v3261
      %v3332 = vpop.f32.mrf.mxu0
      %v3333 = vadd.f32 0.0, %v3332
      %v3334 = vpop.f32.mrf.mxu0
      %v3335 = vadd.f32 0.0, %v3334
      %3336 = vmatmul.bf16.gmra.mxu0 %v3263
      %v3337 = vpop.f32.mrf.mxu0
      %v3338 = vadd.f32 0.0, %v3337
      %v3339 = vpop.f32.mrf.mxu0
      %v3340 = vadd.f32 0.0, %v3339
      %3341 = vmatmul.bf16.gmra.mxu0 %v3265
      %v3342 = vpop.f32.mrf.mxu0
      %v3343 = vadd.f32 0.0, %v3342
      %v3344 = vpop.f32.mrf.mxu0
      %v3345 = vadd.f32 0.0, %v3344
      %3346 = vmatmul.bf16.gmra.mxu0 %v3267
      %v3347 = vpop.f32.mrf.mxu0
      %v3348 = vadd.f32 0.0, %v3347
      %v3349 = vpop.f32.mrf.mxu0
      %v3350 = vadd.f32 0.0, %v3349
      %3351 = vmatmul.bf16.gmra.mxu0 %v3269
      %v3352 = vpop.f32.mrf.mxu0
      %v3353 = vadd.f32 0.0, %v3352
      %v3354 = vpop.f32.mrf.mxu0
      %v3355 = vadd.f32 0.0, %v3354
      %3356 = vdwg.mxu0
      %v3357 = vadd.f32 %v3193, %v3333
      %v3358 = vadd.f32 %v3194, %v3335
      %v3359 = vadd.f32 %v3195, %v3338
      %v3360 = vadd.f32 %v3196, %v3340
      %v3361 = vadd.f32 %v3197, %v3343
      %v3362 = vadd.f32 %v3198, %v3345
      %v3363 = vadd.f32 %v3199, %v3348
      %v3364 = vadd.f32 %v3200, %v3350
      %v3365 = vadd.f32 %v3201, %v3353
      %v3366 = vadd.f32 %v3202, %v3355
      %3367 = vst [vmem:[#allocation3] sm:$0xff] %v3357
      %3368 = vst [vmem:[#allocation3 + $0x8] sm:$0xff] %v3358
      %3369 = vst [vmem:[#allocation3 + $0x10] sm:$0xff] %v3359
      %3370 = vst [vmem:[#allocation3 + $0x18] sm:$0xff] %v3360
      %3371 = vst [vmem:[#allocation3 + $0x20] sm:$0xff] %v3361
      %3372 = vst [vmem:[#allocation3 + $0x28] sm:$0xff] %v3362
      %3373 = vst [vmem:[#allocation3 + $0x30] sm:$0xff] %v3363
      %3374 = vst [vmem:[#allocation3 + $0x38] sm:$0xff] %v3364
      %3375 = vst [vmem:[#allocation3 + $0x40] sm:$0xff] %v3365
      %3376 = vst [vmem:[#allocation3 + $0x48] sm:$0xff] %v3366
      %v3377 = vld [vmem:[#allocation3] sm:$0xff]
      %v3378 = vld [vmem:[#allocation3 + $0x8] sm:$0xff]
      %v3379 = vld [vmem:[#allocation3 + $0x10] sm:$0xff]
      %v3380 = vld [vmem:[#allocation3 + $0x18] sm:$0xff]
      %v3381 = vld [vmem:[#allocation3 + $0x20] sm:$0xff]
      %v3382 = vld [vmem:[#allocation3 + $0x28] sm:$0xff]
      %v3383 = vld [vmem:[#allocation3 + $0x30] sm:$0xff]
      %v3384 = vld [vmem:[#allocation3 + $0x38] sm:$0xff]
      %v3385 = vld [vmem:[#allocation3 + $0x40] sm:$0xff]
      %v3386 = vld [vmem:[#allocation3 + $0x48] sm:$0xff]
      %v3387 = vld [vmem:[#allocation2 + $0xc] sm:$0xe]
      %v3388 = vld [vmem:[#allocation2 + $0x10] sm:$0xf]
      %v3389 = vld [vmem:[#allocation2 + $0x14] sm:$0xf]
      %v3390 = vld [vmem:[#allocation2 + $0x18] sm:$0xf]
      %v3391 = vld [vmem:[#allocation2 + $0x1c] sm:$0xf]
      %v3392 = vld [vmem:[#allocation2 + $0x20] sm:$0xf]
      %v3393 = vld [vmem:[#allocation2 + $0x24] sm:$0xf]
      %v3394 = vld [vmem:[#allocation2 + $0x28] sm:$0xf]
      %v3395 = vld [vmem:[#allocation2 + $0x2c] sm:$0xf]
      %v3396 = vld [vmem:[#allocation2 + $0x30] sm:$0xf]
      %v3397 = vld [vmem:[#allocation2 + $0x34] sm:$0x3]
      %s3398 = scalar_lea.vmem %s3, 512
      %v3399 = vld [vmem:[%s3398] sm:$0xf]
      %v3400 = vld [vmem:[%s3398 + $0x4] sm:$0xf]
      %v3401 = vld [vmem:[%s3398 + $0x8] sm:$0xf]
      %v3402 = vld [vmem:[%s3398 + $0xc] sm:$0xf]
      %v3403 = vld [vmem:[%s3398 + $0x10] sm:$0xf]
      %v3404 = vld [vmem:[%s3398 + $0x14] sm:$0xf]
      %v3405 = vld [vmem:[%s3398 + $0x18] sm:$0xf]
      %v3406 = vld [vmem:[%s3398 + $0x1c] sm:$0xf]
      %v3407 = vld [vmem:[%s3398 + $0x20] sm:$0xf]
      %v3408 = vld [vmem:[%s3398 + $0x24] sm:$0xf]
      %v3409 = vld [vmem:[%s3398 + $0x28] sm:$0xf]
      %v3410 = vld [vmem:[%s3398 + $0x2c] sm:$0xf]
      %v3411 = vld [vmem:[%s3398 + $0x30] sm:$0xf]
      %v3412 = vld [vmem:[%s3398 + $0x34] sm:$0xf]
      %v3413 = vld [vmem:[%s3398 + $0x38] sm:$0xf]
      %v3414 = vld [vmem:[%s3398 + $0x3c] sm:$0xf]
      %v3426 = vunpack.c.l.b16 %v3387
      %v3427 = vunpack.c.l.b16 %v3388
      %v3428 = vunpack.c.l.b16 %v3389
      %v3429 = vunpack.c.l.b16 %v3390
      %v3430 = vunpack.c.l.b16 %v3391
      %v3431 = vunpack.c.l.b16 %v3392
      %v3432 = vunpack.c.l.b16 %v3393
      %v3433 = vunpack.c.l.b16 %v3394
      %v3434 = vunpack.c.l.b16 %v3395
      %v3435 = vunpack.c.l.b16 %v3396
      %v3436 = vunpack.c.l.b16 %v3397
      %v3437 = vpack.c.b16 %v3427, %v3426
      %v3438 = vpack.c.b16 %v3429, %v3428
      %v3439 = vpack.c.b16 %v3431, %v3430
      %v3440 = vpack.c.b16 %v3433, %v3432
      %v3441 = vpack.c.b16 %v3435, %v3434
      %v3442 = vpack.c.b16 %v3436, %v3436
      %v3444 = vshrl.u32 %v3437, 16
      %v3446 = vrot.slane %v3444, 1
      %v3447 = vshll.u32 %v3437, 16
      %v3449 = vrot.slane %v3447, 2
      %v3450 = vor.u32 %v3446, %v3449
      %v3452 = vshrl.u32 %v3438, 16
      %v3454 = vrot.slane %v3452, 1
      %v3455 = vshll.u32 %v3438, 16
      %v3457 = vrot.slane %v3455, 2
      %v3458 = vor.u32 %v3454, %v3457
      %v3459 = vsel %vm1466, %v3450, %v3458
      %v3461 = vshrl.u32 %v3439, 16
      %v3463 = vrot.slane %v3461, 1
      %v3464 = vshll.u32 %v3439, 16
      %v3466 = vrot.slane %v3464, 2
      %v3467 = vor.u32 %v3463, %v3466
      %v3468 = vsel %vm1466, %v3458, %v3467
      %v3470 = vshrl.u32 %v3440, 16
      %v3472 = vrot.slane %v3470, 1
      %v3473 = vshll.u32 %v3440, 16
      %v3475 = vrot.slane %v3473, 2
      %v3476 = vor.u32 %v3472, %v3475
      %v3477 = vsel %vm1466, %v3467, %v3476
      %v3479 = vshrl.u32 %v3441, 16
      %v3481 = vrot.slane %v3479, 1
      %v3482 = vshll.u32 %v3441, 16
      %v3484 = vrot.slane %v3482, 2
      %v3485 = vor.u32 %v3481, %v3484
      %v3486 = vsel %vm1466, %v3476, %v3485
      %v3488 = vshrl.u32 %v3442, 16
      %v3490 = vrot.slane %v3488, 1
      %v3491 = vshll.u32 %v3442, 16
      %v3493 = vrot.slane %v3491, 2
      %v3494 = vor.u32 %v3490, %v3493
      %v3495 = vsel %vm1466, %v3485, %v3494
      %v3517 = vunpack.c.l.b16 %v3399
      %v3518 = vunpack.c.l.b16 %v3400
      %v3519 = vunpack.c.l.b16 %v3401
      %v3520 = vunpack.c.l.b16 %v3402
      %v3521 = vunpack.c.l.b16 %v3403
      %v3522 = vunpack.c.l.b16 %v3404
      %v3523 = vunpack.c.l.b16 %v3405
      %v3524 = vunpack.c.l.b16 %v3406
      %v3525 = vunpack.c.l.b16 %v3407
      %v3526 = vunpack.c.l.b16 %v3408
      %v3527 = vunpack.c.l.b16 %v3409
      %v3528 = vunpack.c.l.b16 %v3410
      %v3529 = vunpack.c.l.b16 %v3411
      %v3530 = vunpack.c.l.b16 %v3412
      %v3531 = vunpack.c.l.b16 %v3413
      %v3532 = vunpack.c.l.b16 %v3414
      %v3533 = vpack.c.b16 %v3518, %v3517
      %v3534 = vpack.c.b16 %v3520, %v3519
      %v3535 = vpack.c.b16 %v3522, %v3521
      %v3536 = vpack.c.b16 %v3524, %v3523
      %v3537 = vpack.c.b16 %v3526, %v3525
      %v3538 = vpack.c.b16 %v3528, %v3527
      %v3539 = vpack.c.b16 %v3530, %v3529
      %v3540 = vpack.c.b16 %v3532, %v3531
      %3549 = vmatpush.bf16.msra.mxu0 %v3540
      %3550 = vmatpush.bf16.msra.mxu0 %v3539
      %3551 = vmatpush.bf16.msra.mxu0 %v3538
      %3552 = vmatpush.bf16.msra.mxu0 %v3537
      %3553 = vmatpush.bf16.msra.mxu0 %v3536
      %3554 = vmatpush.bf16.msra.mxu0 %v3535
      %3555 = vmatpush.bf16.msra.mxu0 %v3534
      %3556 = vmatpush.bf16.msra.mxu0 %v3533
      %3557 = vmatmul.bf16.gmra.mxu0 %v3459
      %v3558 = vpop.f32.mrf.mxu0
      %v3559 = vadd.f32 0.0, %v3558
      %v3560 = vpop.f32.mrf.mxu0
      %v3561 = vadd.f32 0.0, %v3560
      %3562 = vmatmul.bf16.gmra.mxu0 %v3468
      %v3563 = vpop.f32.mrf.mxu0
      %v3564 = vadd.f32 0.0, %v3563
      %v3565 = vpop.f32.mrf.mxu0
      %v3566 = vadd.f32 0.0, %v3565
      %3567 = vmatmul.bf16.gmra.mxu0 %v3477
      %v3568 = vpop.f32.mrf.mxu0
      %v3569 = vadd.f32 0.0, %v3568
      %v3570 = vpop.f32.mrf.mxu0
      %v3571 = vadd.f32 0.0, %v3570
      %3572 = vmatmul.bf16.gmra.mxu0 %v3486
      %v3573 = vpop.f32.mrf.mxu0
      %v3574 = vadd.f32 0.0, %v3573
      %v3575 = vpop.f32.mrf.mxu0
      %v3576 = vadd.f32 0.0, %v3575
      %3577 = vmatmul.bf16.gmra.mxu0 %v3495
      %v3578 = vpop.f32.mrf.mxu0
      %v3579 = vadd.f32 0.0, %v3578
      %v3580 = vpop.f32.mrf.mxu0
      %v3581 = vadd.f32 0.0, %v3580
      %3582 = vdwg.mxu0
      %v3583 = vadd.f32 %v3377, %v3559
      %v3584 = vadd.f32 %v3378, %v3561
      %v3585 = vadd.f32 %v3379, %v3564
      %v3586 = vadd.f32 %v3380, %v3566
      %v3587 = vadd.f32 %v3381, %v3569
      %v3588 = vadd.f32 %v3382, %v3571
      %v3589 = vadd.f32 %v3383, %v3574
      %v3590 = vadd.f32 %v3384, %v3576
      %v3591 = vadd.f32 %v3385, %v3579
      %v3592 = vadd.f32 %v3386, %v3581
      %3593 = vst [vmem:[#allocation3] sm:$0xff] %v3583
      %3594 = vst [vmem:[#allocation3 + $0x8] sm:$0xff] %v3584
      %3595 = vst [vmem:[#allocation3 + $0x10] sm:$0xff] %v3585
      %3596 = vst [vmem:[#allocation3 + $0x18] sm:$0xff] %v3586
      %3597 = vst [vmem:[#allocation3 + $0x20] sm:$0xff] %v3587
      %3598 = vst [vmem:[#allocation3 + $0x28] sm:$0xff] %v3588
      %3599 = vst [vmem:[#allocation3 + $0x30] sm:$0xff] %v3589
      %3600 = vst [vmem:[#allocation3 + $0x38] sm:$0xff] %v3590
      %3601 = vst [vmem:[#allocation3 + $0x40] sm:$0xff] %v3591
      %3602 = vst [vmem:[#allocation3 + $0x48] sm:$0xff] %v3592
      %v3603 = vld [vmem:[#allocation3] sm:$0xff]
      %v3604 = vld [vmem:[#allocation3 + $0x8] sm:$0xff]
      %v3605 = vld [vmem:[#allocation3 + $0x10] sm:$0xff]
      %v3606 = vld [vmem:[#allocation3 + $0x18] sm:$0xff]
      %v3607 = vld [vmem:[#allocation3 + $0x20] sm:$0xff]
      %v3608 = vld [vmem:[#allocation3 + $0x28] sm:$0xff]
      %v3609 = vld [vmem:[#allocation3 + $0x30] sm:$0xff]
      %v3610 = vld [vmem:[#allocation3 + $0x38] sm:$0xff]
      %v3611 = vld [vmem:[#allocation3 + $0x40] sm:$0xff]
      %v3612 = vld [vmem:[#allocation3 + $0x48] sm:$0xff]
      %v3613 = vld [vmem:[%s869] sm:$0xf]
      %v3614 = vld [vmem:[%s869 + $0x4] sm:$0xf]
      %v3615 = vld [vmem:[%s869 + $0x8] sm:$0xf]
      %v3616 = vld [vmem:[%s869 + $0xc] sm:$0xf]
      %v3617 = vld [vmem:[%s869 + $0x10] sm:$0xf]
      %v3618 = vld [vmem:[%s869 + $0x14] sm:$0xf]
      %v3619 = vld [vmem:[%s869 + $0x18] sm:$0xf]
      %v3620 = vld [vmem:[%s869 + $0x1c] sm:$0xf]
      %v3621 = vld [vmem:[%s869 + $0x20] sm:$0xf]
      %v3622 = vld [vmem:[%s869 + $0x24] sm:$0xf]
      %v3623 = vld [vmem:[%s6] sm:$0x3]
      %v3634 = vunpack.c.l.b16 %v3613
      %v3635 = vunpack.c.l.b16 %v3614
      %v3636 = vunpack.c.l.b16 %v3615
      %v3637 = vunpack.c.l.b16 %v3616
      %v3638 = vunpack.c.l.b16 %v3617
      %v3639 = vunpack.c.l.b16 %v3618
      %v3640 = vunpack.c.l.b16 %v3619
      %v3641 = vunpack.c.l.b16 %v3620
      %v3642 = vunpack.c.l.b16 %v3621
      %v3643 = vunpack.c.l.b16 %v3622
      %v3644 = vpack.c.b16 %v3635, %v3634
      %v3645 = vpack.c.b16 %v3637, %v3636
      %v3646 = vpack.c.b16 %v3639, %v3638
      %v3647 = vpack.c.b16 %v3641, %v3640
      %v3648 = vpack.c.b16 %v3643, %v3642
      %v3650 = vsel %vm377, %v3644, 0
      %v3653 = vsel %vm377, %v3645, 0
      %v3656 = vsel %vm377, %v3646, 0
      %v3659 = vsel %vm377, %v3647, 0
      %v3662 = vsel %vm377, %v3648, 0
      %v3665 = vsel %vm393, %v3623, 0
      %3667 = vmatpush.bf16.msra.mxu0 0
      %3668 = vmatpush.bf16.msra.mxu0 0
      %3669 = vmatpush.bf16.msra.mxu0 0
      %3670 = vmatpush.bf16.msra.mxu0 0
      %3671 = vmatpush.bf16.msra.mxu0 0
      %3672 = vmatpush.bf16.msra.mxu0 0
      %3673 = vmatpush.bf16.msra.mxu0 0
      %3674 = vmatpush.bf16.msra.mxu0 %v3665
      %3675 = vmatmul.bf16.gmra.mxu0 %v3650
      %v3676 = vpop.f32.mrf.mxu0
      %v3677 = vadd.f32 0.0, %v3676
      %v3678 = vpop.f32.mrf.mxu0
      %v3679 = vadd.f32 0.0, %v3678
      %3680 = vmatmul.bf16.gmra.mxu0 %v3653
      %v3681 = vpop.f32.mrf.mxu0
      %v3682 = vadd.f32 0.0, %v3681
      %v3683 = vpop.f32.mrf.mxu0
      %v3684 = vadd.f32 0.0, %v3683
      %3685 = vmatmul.bf16.gmra.mxu0 %v3656
      %v3686 = vpop.f32.mrf.mxu0
      %v3687 = vadd.f32 0.0, %v3686
      %v3688 = vpop.f32.mrf.mxu0
      %v3689 = vadd.f32 0.0, %v3688
      %3690 = vmatmul.bf16.gmra.mxu0 %v3659
      %v3691 = vpop.f32.mrf.mxu0
      %v3692 = vadd.f32 0.0, %v3691
      %v3693 = vpop.f32.mrf.mxu0
      %v3694 = vadd.f32 0.0, %v3693
      %3695 = vmatmul.bf16.gmra.mxu0 %v3662
      %v3696 = vpop.f32.mrf.mxu0
      %v3697 = vadd.f32 0.0, %v3696
      %v3698 = vpop.f32.mrf.mxu0
      %v3699 = vadd.f32 0.0, %v3698
      %3700 = vdwg.mxu0
      %v3701 = vadd.f32 %v3603, %v3677
      %v3702 = vadd.f32 %v3604, %v3679
      %v3703 = vadd.f32 %v3605, %v3682
      %v3704 = vadd.f32 %v3606, %v3684
      %v3705 = vadd.f32 %v3607, %v3687
      %v3706 = vadd.f32 %v3608, %v3689
      %v3707 = vadd.f32 %v3609, %v3692
      %v3708 = vadd.f32 %v3610, %v3694
      %v3709 = vadd.f32 %v3611, %v3697
      %v3710 = vadd.f32 %v3612, %v3699
      %3711 = vst [vmem:[#allocation3] sm:$0xff] %v3701
      %3712 = vst [vmem:[#allocation3 + $0x8] sm:$0xff] %v3702
      %3713 = vst [vmem:[#allocation3 + $0x10] sm:$0xff] %v3703
      %3714 = vst [vmem:[#allocation3 + $0x18] sm:$0xff] %v3704
      %3715 = vst [vmem:[#allocation3 + $0x20] sm:$0xff] %v3705
      %3716 = vst [vmem:[#allocation3 + $0x28] sm:$0xff] %v3706
      %3717 = vst [vmem:[#allocation3 + $0x30] sm:$0xff] %v3707
      %3718 = vst [vmem:[#allocation3 + $0x38] sm:$0xff] %v3708
      %3719 = vst [vmem:[#allocation3 + $0x40] sm:$0xff] %v3709
      %3720 = vst [vmem:[#allocation3 + $0x48] sm:$0xff] %v3710
      %v3721 = vld [vmem:[#allocation3] sm:$0xff]
      %v3722 = vld [vmem:[#allocation3 + $0x8] sm:$0xff]
      %v3723 = vld [vmem:[#allocation3 + $0x10] sm:$0xff]
      %v3724 = vld [vmem:[#allocation3 + $0x18] sm:$0xff]
      %v3725 = vld [vmem:[#allocation3 + $0x20] sm:$0xff]
      %v3726 = vld [vmem:[#allocation3 + $0x28] sm:$0xff]
      %v3727 = vld [vmem:[#allocation3 + $0x30] sm:$0xff]
      %v3728 = vld [vmem:[#allocation3 + $0x38] sm:$0xff]
      %v3729 = vld [vmem:[#allocation3 + $0x40] sm:$0xff]
      %v3730 = vld [vmem:[#allocation3 + $0x48] sm:$0xff]
      %v3731 = vld [vmem:[%s4] sm:$0x1]
      %v3733 = vperm.slane %v3731, 0
      %v3735 = vadd.f32 %v3721, %v3733
      %v3736 = vadd.f32 %v3722, %v3733
      %v3737 = vadd.f32 %v3723, %v3733
      %v3738 = vadd.f32 %v3724, %v3733
      %v3739 = vadd.f32 %v3725, %v3733
      %v3740 = vadd.f32 %v3726, %v3733
      %v3741 = vadd.f32 %v3727, %v3733
      %v3742 = vadd.f32 %v3728, %v3733
      %v3743 = vadd.f32 %v3729, %v3733
      %v3744 = vadd.f32 %v3730, %v3733
      %v3745 = vld [vmem:[%s7] sm:$0x1]
      %v3747 = vperm.slane %v3745, 0
      %v3749 = vadd.f32 %v3735, %v3747
      %v3750 = vadd.f32 %v3736, %v3747
      %v3751 = vadd.f32 %v3737, %v3747
      %v3752 = vadd.f32 %v3738, %v3747
      %v3753 = vadd.f32 %v3739, %v3747
      %v3754 = vadd.f32 %v3740, %v3747
      %v3755 = vadd.f32 %v3741, %v3747
      %v3756 = vadd.f32 %v3742, %v3747
      %v3757 = vadd.f32 %v3743, %v3747
      %v3758 = vadd.f32 %v3744, %v3747
      %v3759 = vmax.f32 %v3749, 0.0
      %v3760 = vmax.f32 %v3750, 0.0
      %v3761 = vmax.f32 %v3751, 0.0
      %v3762 = vmax.f32 %v3752, 0.0
      %v3763 = vmax.f32 %v3753, 0.0
      %v3764 = vmax.f32 %v3754, 0.0
      %v3765 = vmax.f32 %v3755, 0.0
      %v3766 = vmax.f32 %v3756, 0.0
      %v3767 = vmax.f32 %v3757, 0.0
      %v3768 = vmax.f32 %v3758, 0.0
      %v3769 = vpack.c.bf16 %v3759, %v3759
      %v3770 = vpack.c.bf16 %v3760, %v3760
      %v3771 = vpack.c.bf16 %v3761, %v3761
      %v3772 = vpack.c.bf16 %v3762, %v3762
      %v3773 = vpack.c.bf16 %v3763, %v3763
      %v3774 = vpack.c.bf16 %v3764, %v3764
      %v3775 = vpack.c.bf16 %v3765, %v3765
      %v3776 = vpack.c.bf16 %v3766, %v3766
      %v3777 = vpack.c.bf16 %v3767, %v3767
      %v3778 = vpack.c.bf16 %v3768, %v3768
      %3779 = vst [vmem:[%s305] sm:$0xf] %v3769
      %3780 = vst [vmem:[%s305 + $0x4] sm:$0xf] %v3770
      %3781 = vst [vmem:[%s305 + $0x8] sm:$0xf] %v3771
      %3782 = vst [vmem:[%s305 + $0xc] sm:$0xf] %v3772
      %3783 = vst [vmem:[%s305 + $0x10] sm:$0xf] %v3773
      %3784 = vst [vmem:[%s305 + $0x14] sm:$0xf] %v3774
      %3785 = vst [vmem:[%s305 + $0x18] sm:$0xf] %v3775
      %3786 = vst [vmem:[%s305 + $0x1c] sm:$0xf] %v3776
      %3787 = vst [vmem:[%s305 + $0x20] sm:$0xf] %v3777
      %3788 = vst [vmem:[%s305 + $0x24] sm:$0xf] %v3778
      %p3789 = scmp.lt.s32.totalorder %s19, 1
      %s3790 = scalar_select %p3789, %s19, 1
      %s3791 = smul.addr %s3790, 10
      %s3792 = smul.addr %s3791, 4
      %s3793 = scalar_lea.vmem %s8, %s3792
      // Predicated region
      $region53: #{basic_block_forward.1} parent=51 // pred_check
        %p3794 = pneg %p210
      $region54: #{basic_block_forward.1} parent=51 // pred_check_branch
        %3796 = sbr.rel (%p3794) target = $region56
      $region55: #{basic_block_forward.1} parent=51 // pred_region
        _
      $region56: #{basic_block_forward.1} parent=51 // pred_fallthru
        _
    $region52: #{basic_block_forward.1} parent=5 // pred_fallthru
      _
    %p3797 = scmp.le.s32.totalorder 2, %s14
    // Predicated region
    $region57: #{basic_block_forward.1} parent=5 // pred_check
      %p3798 = pneg %p3797
    $region58: #{basic_block_forward.1} parent=5 // pred_check_branch
      %3800 = sbr.rel (%p3798) target = $region60
    $region59: #{basic_block_forward.1} parent=5 // pred_region
      %s3801 = ssub.s32 %s14, 2
      // Predicated region
      $region61: #{basic_block_forward.1} parent=59 // pred_check
        %p3802 = pneg %p216
      $region62: #{basic_block_forward.1} parent=59 // pred_check_branch
        %3804 = sbr.rel (%p3802) target = $region64
      $region63: #{basic_block_forward.1} parent=59 // pred_region
        %p3805 = scmp.lt.s32.totalorder %s20, 1
        %s3806 = scalar_select %p3805, %s20, 1
        %s3807 = smul.addr %s3806, 10
        %s3808 = smul.addr %s3807, 4
        %s3809 = scalar_lea.vmem %s8, %s3808
      $region64: #{basic_block_forward.1} parent=59 // pred_fallthru
        _
    $region60: #{basic_block_forward.1} parent=5 // pred_fallthru
      _
  $region6: #{basic_block_forward.1} parent=0 // loop_footer
    %s18 = sadd.s32 1, %s14
  $region7: #{basic_block_forward.1} parent=0 // loop_footer_branch
    %13 = sbr.rel target = $region3
  $region8: #{basic_block_forward.1} parent=0 // loop_exit
    _

</llo_original>
